<compile_context>
chip_gen: v6e
topology: v6e:2x2x1
jax: 0.10.0
libtpu: 0.0.40
codegen_flags: <defaults>
</compile_context>

<pallas_src>
import numpy as np
import jax
import jax.numpy as jnp
from jax.experimental import pallas as pl
from jax.experimental.pallas import tpu as pltpu


# ----------------------------- host-side glue ------------------------------ #

def _adaptive_pool_matrix(in_size, out_size):
    """Row i averages input[start_i:end_i] exactly like AdaptiveAvgPool."""
    P = np.zeros((out_size, in_size), np.float32)
    for i in range(out_size):
        start = (i * in_size) // out_size
        end = -((-(i + 1) * in_size) // out_size)  # ceil((i+1)*in/out)
        P[i, start:end] = 1.0 / (end - start)
    return P


def _bilinear_matrix(in_size, out_size):
    """1-D align_corners=True bilinear resize matrix: out = A @ in."""
    A = np.zeros((out_size, in_size), np.float32)
    if in_size == 1:
        A[:, 0] = 1.0
        return A
    if out_size == 1:
        A[0, 0] = 1.0
        return A
    scale = (in_size - 1) / (out_size - 1)
    for o in range(out_size):
        s = o * scale
        s0 = min(int(np.floor(s)), in_size - 1)
        s1 = min(s0 + 1, in_size - 1)
        f = s - s0
        A[o, s0] += 1.0 - f
        A[o, s1] += f
    return A


# --------------------------------- kernel ---------------------------------- #

def mf_kernel(x_ref, p1_ref, p2_ref, wstk_ref, ah0_ref, ah1_ref, ah2_ref,
              e3_ref, aw22c_ref, bias_ref, x3_ref, x6_ref):
    f32 = jnp.float32
    TB, C, HW = x_ref.shape
    W = aw22c_ref.shape[1]

    bias = bias_ref[...]          # (TB*C, 1)  conv bias, tiled per image
    p1 = p1_ref[...]              # (HW, 20)   mean-over-W + adaptive-pool-H
    p2 = p2_ref[...]              # (HW, 20)   mean-over-H + adaptive-pool-W
    wstk = wstk_ref[...]          # (3C, C)    [W_kh0; W_kh1; W_kh2]
    ah0 = ah0_ref[...]            # (20, H)    interp matrices with conv shifts
    ah1 = ah1_ref[...]            # (20, H)    folded in on the host
    ah2 = ah2_ref[...]            # (20, H)
    e3 = e3_ref[...]              # (H, HW)    e3[h, h*W+w] = wm[w]
    aw22c = aw22c_ref[...]        # (20, W)    aw22[:, 1:21].T

    # Pooling batched across the whole tile: one big MXU matmul each
    # (the reshape only merges leading dims over a 128-row C axis: layout no-op).
    xf = x_ref[...].astype(f32).reshape(TB * C, HW)              # (TB*C, HW)
    x1t = jnp.dot(xf, p1, preferred_element_type=f32)            # (TB*C, 20)
    x4t = jnp.dot(xf, p2, preferred_element_type=f32)            # (TB*C, 20)

    u_parts, y4_parts = [], []
    for n in range(TB):           # small static tile -> unrolled (conv mixes
        x1n = x1t[n * C:(n + 1) * C]                             # channels per image)
        x4n = x4t[n * C:(n + 1) * C]
        # ---- branch 1: h_avg -> (3,1) conv -> bilinear (20,3)->(H,W) ----
        ys = jnp.dot(wstk, x1n, preferred_element_type=f32)      # (3C, 20)
        u_parts.append(
            jnp.dot(ys[0:C], ah0, preferred_element_type=f32)
            + jnp.dot(ys[C:2 * C], ah1, preferred_element_type=f32)
            + jnp.dot(ys[2 * C:3 * C], ah2, preferred_element_type=f32))    # (C, H)
        # ---- branch 2: w_avg -> (3,1) conv (center tap only) ----
        y4_parts.append(jnp.dot(wstk[C:2 * C], x4n,
                                preferred_element_type=f32))                # (C, 20)

    u_all = u_parts[0] if TB == 1 else jnp.concatenate(u_parts, axis=0)     # (TB*C, H)
    y4_all = y4_parts[0] if TB == 1 else jnp.concatenate(y4_parts, axis=0)  # (TB*C, 20)

    # x3[c, h*W+w] = bias[c] + wm[w] * u[c, h]   (single matmul + lane-dense store)
    x3_all = bias + jnp.dot(u_all, e3, preferred_element_type=f32)          # (TB*C, HW)
    # x6_row[c, w] = bias[c] + sum_j aw22[w, j+1] * y4[c, j]
    x6_all = bias + jnp.dot(y4_all, aw22c, preferred_element_type=f32)      # (TB*C, W)

    x3_ref[...] = x3_all.reshape(TB, C, HW).astype(x3_ref.dtype)
    x6_ref[...] = x6_all.reshape(TB, C, W).astype(x6_ref.dtype)


# -------------------------------- wrapper ----------------------------------- #

def mf_model_forward(x_nchw, conv_w, conv_b):
    """x_nchw: (B, 128, H, W) f32; conv_w: (128,128,3,1); conv_b: (128,)."""
    B, C, H, W = x_nchw.shape
    assert C == 128, "MFModel uses Conv2d(128, 128, ...)"
    HW = H * W
    x_flat = x_nchw.reshape(B, C, HW).astype(jnp.float32)   # free reshape, no transpose

    # Small linear operators, precomputed on host.
    ph20 = _adaptive_pool_matrix(H, 20)                      # (20, H)
    pw20 = _adaptive_pool_matrix(W, 20)                      # (20, W)
    ah_t = _bilinear_matrix(20, H).T                         # (20, H)
    aw3 = _bilinear_matrix(3, W)                             # (W, 3)
    aw22 = _bilinear_matrix(22, W)                           # (W, 22)

    p1 = jnp.asarray((np.repeat(ph20.T, W, axis=0) / W).astype(np.float32))   # (HW, 20)
    p2 = jnp.asarray((np.tile(pw20.T, (H, 1)) / H).astype(np.float32))        # (HW, 20)
    # conv H-shifts folded into the H-interpolation matrices
    ah0 = jnp.asarray(np.vstack([ah_t[1:20], np.zeros((1, H), np.float32)]))  # tap kh=0
    ah1 = jnp.asarray(ah_t)                                                   # tap kh=1
    ah2 = jnp.asarray(np.vstack([np.zeros((1, H), np.float32), ah_t[0:19]]))  # tap kh=2
    # W-interpolation of the middle conv column, flattened over (h, w)
    e3 = jnp.asarray(np.kron(np.eye(H, dtype=np.float32),
                             aw3[:, 1][None, :]).astype(np.float32))          # (H, HW)
    aw22c = jnp.asarray(np.ascontiguousarray(aw22[:, 1:21].T))                # (20, W)

    w = conv_w[:, :, :, 0].astype(jnp.float32)               # (oc, ic, kh)
    wstk = jnp.concatenate([w[:, :, 0], w[:, :, 1], w[:, :, 2]], axis=0)      # (3C, C)

    # Batch tile: several images per grid step; conservative VMEM budget
    # (pipeline double-buffers in/out x3-sized blocks + in-kernel intermediates).
    cap = max(1, min(16, (8 << 20) // (16 * C * HW)))
    TB = 1
    for d in range(1, min(B, cap) + 1):
        if B % d == 0:
            TB = d
    grid = (B // TB,)

    bias_tb = jnp.tile(conv_b.reshape(C, 1).astype(jnp.float32), (TB, 1))     # (TB*C, 1)

    c2 = lambda b: (0, 0)
    x3_flat, x6_row = pl.pallas_call(
        mf_kernel,
        out_shape=(jax.ShapeDtypeStruct((B, C, HW), jnp.float32),
                   jax.ShapeDtypeStruct((B, C, W), jnp.float32)),
        grid=grid,
        in_specs=[
            pl.BlockSpec((TB, C, HW), lambda b: (b, 0, 0)),   # x (channel-major)
            pl.BlockSpec((HW, 20), c2),                       # p1
            pl.BlockSpec((HW, 20), c2),                       # p2
            pl.BlockSpec((3 * C, C), c2),                     # conv taps stacked
            pl.BlockSpec((20, H), c2),                        # ah0
            pl.BlockSpec((20, H), c2),                        # ah1
            pl.BlockSpec((20, H), c2),                        # ah2
            pl.BlockSpec((H, HW), c2),                        # e3
            pl.BlockSpec((20, W), c2),                        # aw22c
            pl.BlockSpec((TB * C, 1), c2),                    # bias (tiled per image)
        ],
        out_specs=(
            pl.BlockSpec((TB, C, HW), lambda b: (b, 0, 0)),   # x3 (C, H*W) lane-dense
            pl.BlockSpec((TB, C, W), lambda b: (b, 0, 0)),    # x6 single row (const in H)
        ),
        compiler_params=pltpu.CompilerParams(dimension_semantics=("parallel",)),
    )(x_flat, p1, p2, wstk, ah0, ah1, ah2, e3, aw22c, bias_tb)

    x3 = x3_flat.reshape(B, C, H, W)                          # free reshape
    x6 = jnp.broadcast_to(x6_row[:, :, None, :], (B, C, H, W))  # single write pass
    return x3, x6


# --------------------------- pure-JAX reference ----------------------------- #

def _reference(x, conv_w, conv_b):
    """Direct (un-simplified) evaluation of MFModel.forward semantics."""
    B, C, H, W = x.shape
    hi = jax.lax.Precision.HIGHEST
    ph = jnp.asarray(_adaptive_pool_matrix(H, 20))
    pw = jnp.asarray(_adaptive_pool_matrix(W, 20))
    ah = jnp.asarray(_bilinear_matrix(20, H))
    aw3 = jnp.asarray(_bilinear_matrix(3, W))
    aw22 = jnp.asarray(_bilinear_matrix(22, W))
    w = conv_w[:, :, :, 0]
    b_ = conv_b

    # branch 1
    x1 = jnp.einsum('ih,bchw->bci', ph, x, precision=hi) / W        # (B,C,20)
    x1p = jnp.pad(x1, ((0, 0), (0, 0), (1, 1)))                     # (B,C,22)
    conv_mid = b_[None, :, None] + sum(
        jnp.einsum('oi,bij->boj', w[:, :, kh], x1p[:, :, kh:kh + 20], precision=hi)
        for kh in range(3))                                         # (B,C,20)
    side = jnp.broadcast_to(b_[None, :, None], conv_mid.shape)
    x2 = jnp.stack([side, conv_mid, side], axis=-1)                 # (B,C,20,3)
    x3 = jnp.einsum('hi,bcij,wj->bchw', ah, x2, aw3, precision=hi)  # (B,C,H,W)

    # branch 2
    x4 = jnp.einsum('jw,bchw->bcj', pw, x, precision=hi) / H        # (B,C,20)
    x4p = jnp.pad(x4, ((0, 0), (0, 0), (1, 1)))                     # (B,C,22)
    x5 = b_[None, :, None] + jnp.einsum('oi,bij->boj', w[:, :, 1], x4p, precision=hi)
    x6r = jnp.einsum('wj,bcj->bcw', aw22, x5, precision=hi)         # (B,C,W)
    x6 = jnp.broadcast_to(x6r[:, :, None, :], (B, C, H, W))
    return x3, x6


if __name__ == "__main__":
    key = jax.random.PRNGKey(0)
    k_x, k_w, k_b = jax.random.split(key, 3)

    B, C, H, W = 2, 128, 16, 16          # C fixed to 128 by Conv2d(128, 128, ...)
    x = jax.random.normal(k_x, (B, C, H, W), jnp.float32)
    # Deterministic synthetic parameters for F_1 (F_2 is never used in forward).
    conv_w = 0.05 * jax.random.normal(k_w, (128, 128, 3, 1), jnp.float32)
    conv_b = 0.10 * jax.random.normal(k_b, (128,), jnp.float32)

    x3, x6 = mf_model_forward(x, conv_w, conv_b)
    jax.block_until_ready((x3, x6))
    assert x3.shape == (B, C, H, W) and x6.shape == (B, C, H, W)

    r3, r6 = _reference(x, conv_w, conv_b)
    np.testing.assert_allclose(np.asarray(x3), np.asarray(r3), rtol=2e-2, atol=2e-2)
    np.testing.assert_allclose(np.asarray(x6), np.asarray(r6), rtol=2e-2, atol=2e-2)
    print("KERNEL_OK")
</pallas_src>

<mosaic_0001>
module attributes {stable_mosaic.version = 11 : i64} {
  func.func @mf_kernel(%arg0: i32, %arg1: memref<2x128x256xf32, #tpu.memory_space<vmem>>, %arg2: memref<256x20xf32, #tpu.memory_space<vmem>>, %arg3: memref<256x20xf32, #tpu.memory_space<vmem>>, %arg4: memref<384x128xf32, #tpu.memory_space<vmem>>, %arg5: memref<20x16xf32, #tpu.memory_space<vmem>>, %arg6: memref<20x16xf32, #tpu.memory_space<vmem>>, %arg7: memref<20x16xf32, #tpu.memory_space<vmem>>, %arg8: memref<16x256xf32, #tpu.memory_space<vmem>>, %arg9: memref<20x16xf32, #tpu.memory_space<vmem>>, %arg10: memref<256x1xf32, #tpu.memory_space<vmem>>, %arg11: memref<2x128x256xf32, #tpu.memory_space<vmem>>, %arg12: memref<2x128x16xf32, #tpu.memory_space<vmem>>) attributes {dimension_semantics = [#tpu.dimension_semantics<parallel>], iteration_bounds = array<i64: 1>, scalar_prefetch = 0 : i64, scratch_operands = 0 : i64, tpu.core_type = #tpu.core_type<tc>, window_params = [{transform_indices = @transform_0, window_bounds = array<i64: 2, 128, 256>}, {pipeline_mode = #tpu.pipeline_mode<synchronous>, transform_indices = @transform_1, window_bounds = array<i64: 256, 20>}, {pipeline_mode = #tpu.pipeline_mode<synchronous>, transform_indices = @transform_2, window_bounds = array<i64: 256, 20>}, {pipeline_mode = #tpu.pipeline_mode<synchronous>, transform_indices = @transform_3, window_bounds = array<i64: 384, 128>}, {pipeline_mode = #tpu.pipeline_mode<synchronous>, transform_indices = @transform_4, window_bounds = array<i64: 20, 16>}, {pipeline_mode = #tpu.pipeline_mode<synchronous>, transform_indices = @transform_5, window_bounds = array<i64: 20, 16>}, {pipeline_mode = #tpu.pipeline_mode<synchronous>, transform_indices = @transform_6, window_bounds = array<i64: 20, 16>}, {pipeline_mode = #tpu.pipeline_mode<synchronous>, transform_indices = @transform_7, window_bounds = array<i64: 16, 256>}, {pipeline_mode = #tpu.pipeline_mode<synchronous>, transform_indices = @transform_8, window_bounds = array<i64: 20, 16>}, {pipeline_mode = #tpu.pipeline_mode<synchronous>, transform_indices = @transform_9, window_bounds = array<i64: 256, 1>}, {transform_indices = @transform_10, window_bounds = array<i64: 2, 128, 256>}, {transform_indices = @transform_11, window_bounds = array<i64: 2, 128, 16>}]} {
    %c0 = arith.constant 0 : index
    %c0_0 = arith.constant 0 : index
    %0 = vector.load %arg10[%c0, %c0_0] : memref<256x1xf32, #tpu.memory_space<vmem>>, vector<256x1xf32>
    %c0_1 = arith.constant 0 : index
    %c0_2 = arith.constant 0 : index
    %1 = vector.load %arg2[%c0_1, %c0_2] : memref<256x20xf32, #tpu.memory_space<vmem>>, vector<256x20xf32>
    %c0_3 = arith.constant 0 : index
    %c0_4 = arith.constant 0 : index
    %2 = vector.load %arg3[%c0_3, %c0_4] : memref<256x20xf32, #tpu.memory_space<vmem>>, vector<256x20xf32>
    %c0_5 = arith.constant 0 : index
    %c0_6 = arith.constant 0 : index
    %3 = vector.load %arg4[%c0_5, %c0_6] : memref<384x128xf32, #tpu.memory_space<vmem>>, vector<384x128xf32>
    %c0_7 = arith.constant 0 : index
    %c0_8 = arith.constant 0 : index
    %4 = vector.load %arg5[%c0_7, %c0_8] : memref<20x16xf32, #tpu.memory_space<vmem>>, vector<20x16xf32>
    %c0_9 = arith.constant 0 : index
    %c0_10 = arith.constant 0 : index
    %5 = vector.load %arg6[%c0_9, %c0_10] : memref<20x16xf32, #tpu.memory_space<vmem>>, vector<20x16xf32>
    %c0_11 = arith.constant 0 : index
    %c0_12 = arith.constant 0 : index
    %6 = vector.load %arg7[%c0_11, %c0_12] : memref<20x16xf32, #tpu.memory_space<vmem>>, vector<20x16xf32>
    %c0_13 = arith.constant 0 : index
    %c0_14 = arith.constant 0 : index
    %7 = vector.load %arg8[%c0_13, %c0_14] : memref<16x256xf32, #tpu.memory_space<vmem>>, vector<16x256xf32>
    %c0_15 = arith.constant 0 : index
    %c0_16 = arith.constant 0 : index
    %8 = vector.load %arg9[%c0_15, %c0_16] : memref<20x16xf32, #tpu.memory_space<vmem>>, vector<20x16xf32>
    %c0_17 = arith.constant 0 : index
    %c0_18 = arith.constant 0 : index
    %c0_19 = arith.constant 0 : index
    %9 = vector.load %arg1[%c0_17, %c0_18, %c0_19] : memref<2x128x256xf32, #tpu.memory_space<vmem>>, vector<2x128x256xf32>
    %10 = vector.shape_cast %9 : vector<2x128x256xf32> to vector<256x256xf32>
    %cst = arith.constant dense<0.000000e+00> : vector<256x20xf32>
    %11 = tpu.matmul %10, %1, %cst {dimension_numbers = #tpu.dot_dimension_numbers<[1], [0], [0], [1], [0, 0, 1, 1], [], []>} : vector<256x256xf32>, vector<256x20xf32>, vector<256x20xf32> -> vector<256x20xf32>
    %cst_20 = arith.constant dense<0.000000e+00> : vector<256x20xf32>
    %12 = tpu.matmul %10, %2, %cst_20 {dimension_numbers = #tpu.dot_dimension_numbers<[1], [0], [0], [1], [0, 0, 1, 1], [], []>} : vector<256x256xf32>, vector<256x20xf32>, vector<256x20xf32> -> vector<256x20xf32>
    %13 = vector.extract_strided_slice %11 {offsets = [0, 0], sizes = [128, 20], strides = [1, 1]} : vector<256x20xf32> to vector<128x20xf32>
    %14 = vector.extract_strided_slice %12 {offsets = [0, 0], sizes = [128, 20], strides = [1, 1]} : vector<256x20xf32> to vector<128x20xf32>
    %cst_21 = arith.constant dense<0.000000e+00> : vector<384x20xf32>
    %15 = tpu.matmul %3, %13, %cst_21 {dimension_numbers = #tpu.dot_dimension_numbers<[1], [0], [0], [1], [0, 0, 1, 1], [], []>} : vector<384x128xf32>, vector<128x20xf32>, vector<384x20xf32> -> vector<384x20xf32>
    %16 = vector.extract_strided_slice %15 {offsets = [0, 0], sizes = [128, 20], strides = [1, 1]} : vector<384x20xf32> to vector<128x20xf32>
    %cst_22 = arith.constant dense<0.000000e+00> : vector<128x16xf32>
    %17 = tpu.matmul %16, %4, %cst_22 {dimension_numbers = #tpu.dot_dimension_numbers<[1], [0], [0], [1], [0, 0, 1, 1], [], []>} : vector<128x20xf32>, vector<20x16xf32>, vector<128x16xf32> -> vector<128x16xf32>
    %18 = vector.extract_strided_slice %15 {offsets = [128, 0], sizes = [128, 20], strides = [1, 1]} : vector<384x20xf32> to vector<128x20xf32>
    %cst_23 = arith.constant dense<0.000000e+00> : vector<128x16xf32>
    %19 = tpu.matmul %18, %5, %cst_23 {dimension_numbers = #tpu.dot_dimension_numbers<[1], [0], [0], [1], [0, 0, 1, 1], [], []>} : vector<128x20xf32>, vector<20x16xf32>, vector<128x16xf32> -> vector<128x16xf32>
    %20 = arith.addf %17, %19 : vector<128x16xf32>
    %21 = vector.extract_strided_slice %15 {offsets = [256, 0], sizes = [128, 20], strides = [1, 1]} : vector<384x20xf32> to vector<128x20xf32>
    %cst_24 = arith.constant dense<0.000000e+00> : vector<128x16xf32>
    %22 = tpu.matmul %21, %6, %cst_24 {dimension_numbers = #tpu.dot_dimension_numbers<[1], [0], [0], [1], [0, 0, 1, 1], [], []>} : vector<128x20xf32>, vector<20x16xf32>, vector<128x16xf32> -> vector<128x16xf32>
    %23 = arith.addf %20, %22 : vector<128x16xf32>
    %24 = vector.extract_strided_slice %3 {offsets = [128, 0], sizes = [128, 128], strides = [1, 1]} : vector<384x128xf32> to vector<128x128xf32>
    %cst_25 = arith.constant dense<0.000000e+00> : vector<128x20xf32>
    %25 = tpu.matmul %24, %14, %cst_25 {dimension_numbers = #tpu.dot_dimension_numbers<[1], [0], [0], [1], [0, 0, 1, 1], [], []>} : vector<128x128xf32>, vector<128x20xf32>, vector<128x20xf32> -> vector<128x20xf32>
    %26 = vector.extract_strided_slice %11 {offsets = [128, 0], sizes = [128, 20], strides = [1, 1]} : vector<256x20xf32> to vector<128x20xf32>
    %27 = vector.extract_strided_slice %12 {offsets = [128, 0], sizes = [128, 20], strides = [1, 1]} : vector<256x20xf32> to vector<128x20xf32>
    %cst_26 = arith.constant dense<0.000000e+00> : vector<384x20xf32>
    %28 = tpu.matmul %3, %26, %cst_26 {dimension_numbers = #tpu.dot_dimension_numbers<[1], [0], [0], [1], [0, 0, 1, 1], [], []>} : vector<384x128xf32>, vector<128x20xf32>, vector<384x20xf32> -> vector<384x20xf32>
    %29 = vector.extract_strided_slice %28 {offsets = [0, 0], sizes = [128, 20], strides = [1, 1]} : vector<384x20xf32> to vector<128x20xf32>
    %cst_27 = arith.constant dense<0.000000e+00> : vector<128x16xf32>
    %30 = tpu.matmul %29, %4, %cst_27 {dimension_numbers = #tpu.dot_dimension_numbers<[1], [0], [0], [1], [0, 0, 1, 1], [], []>} : vector<128x20xf32>, vector<20x16xf32>, vector<128x16xf32> -> vector<128x16xf32>
    %31 = vector.extract_strided_slice %28 {offsets = [128, 0], sizes = [128, 20], strides = [1, 1]} : vector<384x20xf32> to vector<128x20xf32>
    %cst_28 = arith.constant dense<0.000000e+00> : vector<128x16xf32>
    %32 = tpu.matmul %31, %5, %cst_28 {dimension_numbers = #tpu.dot_dimension_numbers<[1], [0], [0], [1], [0, 0, 1, 1], [], []>} : vector<128x20xf32>, vector<20x16xf32>, vector<128x16xf32> -> vector<128x16xf32>
    %33 = arith.addf %30, %32 : vector<128x16xf32>
    %34 = vector.extract_strided_slice %28 {offsets = [256, 0], sizes = [128, 20], strides = [1, 1]} : vector<384x20xf32> to vector<128x20xf32>
    %cst_29 = arith.constant dense<0.000000e+00> : vector<128x16xf32>
    %35 = tpu.matmul %34, %6, %cst_29 {dimension_numbers = #tpu.dot_dimension_numbers<[1], [0], [0], [1], [0, 0, 1, 1], [], []>} : vector<128x20xf32>, vector<20x16xf32>, vector<128x16xf32> -> vector<128x16xf32>
    %36 = arith.addf %33, %35 : vector<128x16xf32>
    %37 = vector.extract_strided_slice %3 {offsets = [128, 0], sizes = [128, 128], strides = [1, 1]} : vector<384x128xf32> to vector<128x128xf32>
    %cst_30 = arith.constant dense<0.000000e+00> : vector<128x20xf32>
    %38 = tpu.matmul %37, %27, %cst_30 {dimension_numbers = #tpu.dot_dimension_numbers<[1], [0], [0], [1], [0, 0, 1, 1], [], []>} : vector<128x128xf32>, vector<128x20xf32>, vector<128x20xf32> -> vector<128x20xf32>
    %39 = tpu.concatenate %23, %36 in 0 : vector<128x16xf32>, vector<128x16xf32> -> vector<256x16xf32>
    %40 = tpu.concatenate %25, %38 in 0 : vector<128x20xf32>, vector<128x20xf32> -> vector<256x20xf32>
    %cst_31 = arith.constant dense<0.000000e+00> : vector<256x256xf32>
    %41 = tpu.matmul %39, %7, %cst_31 {dimension_numbers = #tpu.dot_dimension_numbers<[1], [0], [0], [1], [0, 0, 1, 1], [], []>} : vector<256x16xf32>, vector<16x256xf32>, vector<256x256xf32> -> vector<256x256xf32>
    %42 = vector.broadcast %0 : vector<256x1xf32> to vector<256x256xf32>
    %43 = arith.addf %42, %41 : vector<256x256xf32>
    %cst_32 = arith.constant dense<0.000000e+00> : vector<256x16xf32>
    %44 = tpu.matmul %40, %8, %cst_32 {dimension_numbers = #tpu.dot_dimension_numbers<[1], [0], [0], [1], [0, 0, 1, 1], [], []>} : vector<256x20xf32>, vector<20x16xf32>, vector<256x16xf32> -> vector<256x16xf32>
    %45 = vector.broadcast %0 : vector<256x1xf32> to vector<256x16xf32>
    %46 = arith.addf %45, %44 : vector<256x16xf32>
    %47 = vector.shape_cast %43 : vector<256x256xf32> to vector<2x128x256xf32>
    %c0_33 = arith.constant 0 : index
    %c0_34 = arith.constant 0 : index
    %c0_35 = arith.constant 0 : index
    %48 = vector.load %arg11[%c0_33, %c0_34, %c0_35] : memref<2x128x256xf32, #tpu.memory_space<vmem>>, vector<2x128x256xf32>
    tpu.vector_store %arg11[%c0_33, %c0_34, %c0_35], %47 {strides = array<i32>} : memref<2x128x256xf32, #tpu.memory_space<vmem>>, vector<2x128x256xf32>,
    %49 = vector.shape_cast %46 : vector<256x16xf32> to vector<2x128x16xf32>
    %c0_36 = arith.constant 0 : index
    %c0_37 = arith.constant 0 : index
    %c0_38 = arith.constant 0 : index
    %50 = vector.load %arg12[%c0_36, %c0_37, %c0_38] : memref<2x128x16xf32, #tpu.memory_space<vmem>>, vector<2x128x16xf32>
    tpu.vector_store %arg12[%c0_36, %c0_37, %c0_38], %49 {strides = array<i32>} : memref<2x128x16xf32, #tpu.memory_space<vmem>>, vector<2x128x16xf32>,
    return
  }
  func.func @transform_0(%arg0: i32) -> (i32, i32, i32) {
    %c0_i32 = arith.constant 0 : i32
    %c0_i32_0 = arith.constant 0 : i32
    %c0_i32_1 = arith.constant 0 : i32
    return %arg0, %c0_i32, %c0_i32_0 : i32, i32, i32
  }
  func.func @transform_1(%arg0: i32) -> (i32, i32) {
    %c0_i32 = arith.constant 0 : i32
    %c0_i32_0 = arith.constant 0 : i32
    %c0_i32_1 = arith.constant 0 : i32
    return %c0_i32, %c0_i32_0 : i32, i32
  }
  func.func @transform_2(%arg0: i32) -> (i32, i32) {
    %c0_i32 = arith.constant 0 : i32
    %c0_i32_0 = arith.constant 0 : i32
    %c0_i32_1 = arith.constant 0 : i32
    return %c0_i32, %c0_i32_0 : i32, i32
  }
  func.func @transform_3(%arg0: i32) -> (i32, i32) {
    %c0_i32 = arith.constant 0 : i32
    %c0_i32_0 = arith.constant 0 : i32
    %c0_i32_1 = arith.constant 0 : i32
    return %c0_i32, %c0_i32_0 : i32, i32
  }
  func.func @transform_4(%arg0: i32) -> (i32, i32) {
    %c0_i32 = arith.constant 0 : i32
    %c0_i32_0 = arith.constant 0 : i32
    %c0_i32_1 = arith.constant 0 : i32
    return %c0_i32, %c0_i32_0 : i32, i32
  }
  func.func @transform_5(%arg0: i32) -> (i32, i32) {
    %c0_i32 = arith.constant 0 : i32
    %c0_i32_0 = arith.constant 0 : i32
    %c0_i32_1 = arith.constant 0 : i32
    return %c0_i32, %c0_i32_0 : i32, i32
  }
  func.func @transform_6(%arg0: i32) -> (i32, i32) {
    %c0_i32 = arith.constant 0 : i32
    %c0_i32_0 = arith.constant 0 : i32
    %c0_i32_1 = arith.constant 0 : i32
    return %c0_i32, %c0_i32_0 : i32, i32
  }
  func.func @transform_7(%arg0: i32) -> (i32, i32) {
    %c0_i32 = arith.constant 0 : i32
    %c0_i32_0 = arith.constant 0 : i32
    %c0_i32_1 = arith.constant 0 : i32
    return %c0_i32, %c0_i32_0 : i32, i32
  }
  func.func @transform_8(%arg0: i32) -> (i32, i32) {
    %c0_i32 = arith.constant 0 : i32
    %c0_i32_0 = arith.constant 0 : i32
    %c0_i32_1 = arith.constant 0 : i32
    return %c0_i32, %c0_i32_0 : i32, i32
  }
  func.func @transform_9(%arg0: i32) -> (i32, i32) {
    %c0_i32 = arith.constant 0 : i32
    %c0_i32_0 = arith.constant 0 : i32
    %c0_i32_1 = arith.constant 0 : i32
    return %c0_i32, %c0_i32_0 : i32, i32
  }
  func.func @transform_10(%arg0: i32) -> (i32, i32, i32) {
    %c0_i32 = arith.constant 0 : i32
    %c0_i32_0 = arith.constant 0 : i32
    %c0_i32_1 = arith.constant 0 : i32
    return %arg0, %c0_i32, %c0_i32_0 : i32, i32, i32
  }
  func.func @transform_11(%arg0: i32) -> (i32, i32, i32) {
    %c0_i32 = arith.constant 0 : i32
    %c0_i32_0 = arith.constant 0 : i32
    %c0_i32_1 = arith.constant 0 : i32
    return %arg0, %c0_i32, %c0_i32_0 : i32, i32, i32
  }
}

</mosaic_0001>

<llo_original>
// kernel: tpu_custom_call.1
$region0: #{tpu_custom_call.1}
  #allocation0 [shape = 'u32[]', space=smem, size = 0x4, offset = 0x4, fixed_abs, tag = 'smem constant byte address 0x4 - core index']
  #allocation1 [shape = 'u32[144,128]{1,0:T(1,128)}', space=vmem, size = 0x12000, scoped, tag = 'internal scratch']
  %s0 = inlined_call_operand.vmem [shape: f32[2,128,256], index: 0, kind: input, shape index: {}]
  %s1 = inlined_call_operand.vmem [shape: f32[256,20], index: 1, kind: input, shape index: {}]
  %s2 = inlined_call_operand.vmem [shape: f32[256,20], index: 2, kind: input, shape index: {}]
  %s3 = inlined_call_operand.vmem [shape: f32[384,128], index: 3, kind: input, shape index: {}]
  %s4 = inlined_call_operand.vmem [shape: f32[20,16], index: 4, kind: input, shape index: {}]
  %s5 = inlined_call_operand.vmem [shape: f32[20,16], index: 5, kind: input, shape index: {}]
  %s6 = inlined_call_operand.vmem [shape: f32[20,16], index: 6, kind: input, shape index: {}]
  %s7 = inlined_call_operand.vmem [shape: f32[16,256], index: 7, kind: input, shape index: {}]
  %s8 = inlined_call_operand.vmem [shape: f32[20,16], index: 8, kind: input, shape index: {}]
  %s9 = inlined_call_operand.vmem [shape: f32[256,1], index: 9, kind: input, shape index: {}]
  %s10 = inlined_call_operand.hbm [shape: f32[2,128,256], index: 10, kind: output, shape index: {0}]
  %s11 = inlined_call_operand.vmem [shape: f32[2,128,16], index: 11, kind: output, shape index: {1}]
  %12 = xla_tuple %s10, %s11
  %s13 = sld [smem:[#allocation0]]
  $region58: #{tpu_custom_call.1} parent=0
    _
  %s15 = ssub.s32 1, %s13
  %s16 = scalar_select 0, %s15, %s13
  $region1: #{tpu_custom_call.1} parent=0
    #allocation2 [shape = 'u8[262144]{0}', space=vmem, size = 0x40000, scoped, tag = 'output window, operand 0, single buffered']
    #allocation3 [shape = 's32[1]{0}', space=sflag, size = 0x4, scoped, tag = 'scoped memory for tpu_custom_call.1']
    %17 = vsyncpa [#allocation3], 0
    // Predicated region
    $region2: #{tpu_custom_call.1} parent=1 // pred_check
      _
    $region3: #{tpu_custom_call.1} parent=1 // pred_check_branch
      %19 = sbr.rel (0) target = $region5
    $region4: #{tpu_custom_call.1} parent=1 // pred_region
      _
    $region5: #{tpu_custom_call.1} parent=1 // pred_fallthru
      _
    // Predicated region
    $region6: #{tpu_custom_call.1} parent=1 // pred_check
      _
    $region7: #{tpu_custom_call.1} parent=1 // pred_check_branch
      %21 = sbr.rel (0) target = $region9
    $region8: #{tpu_custom_call.1} parent=1 // pred_region
      _
    $region9: #{tpu_custom_call.1} parent=1 // pred_fallthru
      _
    // Predicated region
    $region10: #{tpu_custom_call.1} parent=1 // pred_check
      _
    $region11: #{tpu_custom_call.1} parent=1 // pred_check_branch
      %23 = sbr.rel (0) target = $region13
    $region12: #{tpu_custom_call.1} parent=1 // pred_region
      _
    $region13: #{tpu_custom_call.1} parent=1 // pred_fallthru
      _
    // Predicated region
    $region14: #{tpu_custom_call.1} parent=1 // pred_check
      _
    $region15: #{tpu_custom_call.1} parent=1 // pred_check_branch
      %25 = sbr.rel (0) target = $region17
    $region16: #{tpu_custom_call.1} parent=1 // pred_region
      _
    $region17: #{tpu_custom_call.1} parent=1 // pred_fallthru
      _
    // Predicated region
    $region18: #{tpu_custom_call.1} parent=1 // pred_check
      _
    $region19: #{tpu_custom_call.1} parent=1 // pred_check_branch
      %27 = sbr.rel (0) target = $region21
    $region20: #{tpu_custom_call.1} parent=1 // pred_region
      _
    $region21: #{tpu_custom_call.1} parent=1 // pred_fallthru
      _
    // Predicated region
    $region22: #{tpu_custom_call.1} parent=1 // pred_check
      _
    $region23: #{tpu_custom_call.1} parent=1 // pred_check_branch
      %29 = sbr.rel (0) target = $region25
    $region24: #{tpu_custom_call.1} parent=1 // pred_region
      _
    $region25: #{tpu_custom_call.1} parent=1 // pred_fallthru
      _
    // Predicated region
    $region26: #{tpu_custom_call.1} parent=1 // pred_check
      _
    $region27: #{tpu_custom_call.1} parent=1 // pred_check_branch
      %31 = sbr.rel (0) target = $region29
    $region28: #{tpu_custom_call.1} parent=1 // pred_region
      _
    $region29: #{tpu_custom_call.1} parent=1 // pred_fallthru
      _
    // Predicated region
    $region30: #{tpu_custom_call.1} parent=1 // pred_check
      _
    $region31: #{tpu_custom_call.1} parent=1 // pred_check_branch
      %33 = sbr.rel (0) target = $region33
    $region32: #{tpu_custom_call.1} parent=1 // pred_region
      _
    $region33: #{tpu_custom_call.1} parent=1 // pred_fallthru
      _
    // Predicated region
    $region34: #{tpu_custom_call.1} parent=1 // pred_check
      _
    $region35: #{tpu_custom_call.1} parent=1 // pred_check_branch
      %35 = sbr.rel (0) target = $region37
    $region36: #{tpu_custom_call.1} parent=1 // pred_region
      _
    $region37: #{tpu_custom_call.1} parent=1 // pred_fallthru
      _
    // Predicated region
    $region38: #{tpu_custom_call.1} parent=1 // pred_check
      _
    $region39: #{tpu_custom_call.1} parent=1 // pred_check_branch
      %37 = sbr.rel (0) target = $region41
    $region40: #{tpu_custom_call.1} parent=1 // pred_region
      _
    $region41: #{tpu_custom_call.1} parent=1 // pred_fallthru
      _
    %v38 = vld [vmem:[%s9] sm:$0xff]
    %v39 = vld [vmem:[%s9 + $0x8] sm:$0xff]
    %v40 = vld [vmem:[%s9 + $0x10] sm:$0xff]
    %v41 = vld [vmem:[%s9 + $0x18] sm:$0xff]
    %v42 = vld [vmem:[%s9 + $0x20] sm:$0xff]
    %v43 = vld [vmem:[%s9 + $0x28] sm:$0xff]
    %v44 = vld [vmem:[%s9 + $0x30] sm:$0xff]
    %v45 = vld [vmem:[%s9 + $0x38] sm:$0xff]
    %v46 = vld [vmem:[%s9 + $0x40] sm:$0xff]
    %v47 = vld [vmem:[%s9 + $0x48] sm:$0xff]
    %v48 = vld [vmem:[%s9 + $0x50] sm:$0xff]
    %v49 = vld [vmem:[%s9 + $0x58] sm:$0xff]
    %v50 = vld [vmem:[%s9 + $0x60] sm:$0xff]
    %v51 = vld [vmem:[%s9 + $0x68] sm:$0xff]
    %v52 = vld [vmem:[%s9 + $0x70] sm:$0xff]
    %v53 = vld [vmem:[%s9 + $0x78] sm:$0xff]
    %v54 = vld [vmem:[%s9 + $0x80] sm:$0xff]
    %v55 = vld [vmem:[%s9 + $0x88] sm:$0xff]
    %v56 = vld [vmem:[%s9 + $0x90] sm:$0xff]
    %v57 = vld [vmem:[%s9 + $0x98] sm:$0xff]
    %v58 = vld [vmem:[%s9 + $0xa0] sm:$0xff]
    %v59 = vld [vmem:[%s9 + $0xa8] sm:$0xff]
    %v60 = vld [vmem:[%s9 + $0xb0] sm:$0xff]
    %v61 = vld [vmem:[%s9 + $0xb8] sm:$0xff]
    %v62 = vld [vmem:[%s9 + $0xc0] sm:$0xff]
    %v63 = vld [vmem:[%s9 + $0xc8] sm:$0xff]
    %v64 = vld [vmem:[%s9 + $0xd0] sm:$0xff]
    %v65 = vld [vmem:[%s9 + $0xd8] sm:$0xff]
    %v66 = vld [vmem:[%s9 + $0xe0] sm:$0xff]
    %v67 = vld [vmem:[%s9 + $0xe8] sm:$0xff]
    %v68 = vld [vmem:[%s9 + $0xf0] sm:$0xff]
    %v69 = vld [vmem:[%s9 + $0xf8] sm:$0xff]
    %v70 = vld [vmem:[%s1] sm:$0xff]
    %v71 = vld [vmem:[%s1 + $0x8] sm:$0xff]
    %v72 = vld [vmem:[%s1 + $0x10] sm:$0xff]
    %v73 = vld [vmem:[%s1 + $0x18] sm:$0xff]
    %v74 = vld [vmem:[%s1 + $0x20] sm:$0xff]
    %v75 = vld [vmem:[%s1 + $0x28] sm:$0xff]
    %v76 = vld [vmem:[%s1 + $0x30] sm:$0xff]
    %v77 = vld [vmem:[%s1 + $0x38] sm:$0xff]
    %v78 = vld [vmem:[%s1 + $0x40] sm:$0xff]
    %v79 = vld [vmem:[%s1 + $0x48] sm:$0xff]
    %v80 = vld [vmem:[%s1 + $0x50] sm:$0xff]
    %v81 = vld [vmem:[%s1 + $0x58] sm:$0xff]
    %v82 = vld [vmem:[%s1 + $0x60] sm:$0xff]
    %v83 = vld [vmem:[%s1 + $0x68] sm:$0xff]
    %v84 = vld [vmem:[%s1 + $0x70] sm:$0xff]
    %v85 = vld [vmem:[%s1 + $0x78] sm:$0xff]
    %v86 = vld [vmem:[%s1 + $0x80] sm:$0xff]
    %v87 = vld [vmem:[%s1 + $0x88] sm:$0xff]
    %v88 = vld [vmem:[%s1 + $0x90] sm:$0xff]
    %v89 = vld [vmem:[%s1 + $0x98] sm:$0xff]
    %v90 = vld [vmem:[%s1 + $0xa0] sm:$0xff]
    %v91 = vld [vmem:[%s1 + $0xa8] sm:$0xff]
    %v92 = vld [vmem:[%s1 + $0xb0] sm:$0xff]
    %v93 = vld [vmem:[%s1 + $0xb8] sm:$0xff]
    %v94 = vld [vmem:[%s1 + $0xc0] sm:$0xff]
    %v95 = vld [vmem:[%s1 + $0xc8] sm:$0xff]
    %v96 = vld [vmem:[%s1 + $0xd0] sm:$0xff]
    %v97 = vld [vmem:[%s1 + $0xd8] sm:$0xff]
    %v98 = vld [vmem:[%s1 + $0xe0] sm:$0xff]
    %v99 = vld [vmem:[%s1 + $0xe8] sm:$0xff]
    %v100 = vld [vmem:[%s1 + $0xf0] sm:$0xff]
    %v101 = vld [vmem:[%s1 + $0xf8] sm:$0xff]
    %v102 = vld [vmem:[%s2] sm:$0xff]
    %v103 = vld [vmem:[%s2 + $0x8] sm:$0xff]
    %v104 = vld [vmem:[%s2 + $0x10] sm:$0xff]
    %v105 = vld [vmem:[%s2 + $0x18] sm:$0xff]
    %v106 = vld [vmem:[%s2 + $0x20] sm:$0xff]
    %v107 = vld [vmem:[%s2 + $0x28] sm:$0xff]
    %v108 = vld [vmem:[%s2 + $0x30] sm:$0xff]
    %v109 = vld [vmem:[%s2 + $0x38] sm:$0xff]
    %v110 = vld [vmem:[%s2 + $0x40] sm:$0xff]
    %v111 = vld [vmem:[%s2 + $0x48] sm:$0xff]
    %v112 = vld [vmem:[%s2 + $0x50] sm:$0xff]
    %v113 = vld [vmem:[%s2 + $0x58] sm:$0xff]
    %v114 = vld [vmem:[%s2 + $0x60] sm:$0xff]
    %v115 = vld [vmem:[%s2 + $0x68] sm:$0xff]
    %v116 = vld [vmem:[%s2 + $0x70] sm:$0xff]
    %v117 = vld [vmem:[%s2 + $0x78] sm:$0xff]
    %v118 = vld [vmem:[%s2 + $0x80] sm:$0xff]
    %v119 = vld [vmem:[%s2 + $0x88] sm:$0xff]
    %v120 = vld [vmem:[%s2 + $0x90] sm:$0xff]
    %v121 = vld [vmem:[%s2 + $0x98] sm:$0xff]
    %v122 = vld [vmem:[%s2 + $0xa0] sm:$0xff]
    %v123 = vld [vmem:[%s2 + $0xa8] sm:$0xff]
    %v124 = vld [vmem:[%s2 + $0xb0] sm:$0xff]
    %v125 = vld [vmem:[%s2 + $0xb8] sm:$0xff]
    %v126 = vld [vmem:[%s2 + $0xc0] sm:$0xff]
    %v127 = vld [vmem:[%s2 + $0xc8] sm:$0xff]
    %v128 = vld [vmem:[%s2 + $0xd0] sm:$0xff]
    %v129 = vld [vmem:[%s2 + $0xd8] sm:$0xff]
    %v130 = vld [vmem:[%s2 + $0xe0] sm:$0xff]
    %v131 = vld [vmem:[%s2 + $0xe8] sm:$0xff]
    %v132 = vld [vmem:[%s2 + $0xf0] sm:$0xff]
    %v133 = vld [vmem:[%s2 + $0xf8] sm:$0xff]
    %v134 = vld [vmem:[%s3] sm:$0xff]
    %v135 = vld [vmem:[%s3 + $0x8] sm:$0xff]
    %v136 = vld [vmem:[%s3 + $0x10] sm:$0xff]
    %v137 = vld [vmem:[%s3 + $0x18] sm:$0xff]
    %v138 = vld [vmem:[%s3 + $0x20] sm:$0xff]
    %v139 = vld [vmem:[%s3 + $0x28] sm:$0xff]
    %v140 = vld [vmem:[%s3 + $0x30] sm:$0xff]
    %v141 = vld [vmem:[%s3 + $0x38] sm:$0xff]
    %v142 = vld [vmem:[%s3 + $0x40] sm:$0xff]
    %v143 = vld [vmem:[%s3 + $0x48] sm:$0xff]
    %v144 = vld [vmem:[%s3 + $0x50] sm:$0xff]
    %v145 = vld [vmem:[%s3 + $0x58] sm:$0xff]
    %v146 = vld [vmem:[%s3 + $0x60] sm:$0xff]
    %v147 = vld [vmem:[%s3 + $0x68] sm:$0xff]
    %v148 = vld [vmem:[%s3 + $0x70] sm:$0xff]
    %v149 = vld [vmem:[%s3 + $0x78] sm:$0xff]
    %v150 = vld [vmem:[%s3 + $0x80] sm:$0xff]
    %v151 = vld [vmem:[%s3 + $0x88] sm:$0xff]
    %v152 = vld [vmem:[%s3 + $0x90] sm:$0xff]
    %v153 = vld [vmem:[%s3 + $0x98] sm:$0xff]
    %v154 = vld [vmem:[%s3 + $0xa0] sm:$0xff]
    %v155 = vld [vmem:[%s3 + $0xa8] sm:$0xff]
    %v156 = vld [vmem:[%s3 + $0xb0] sm:$0xff]
    %v157 = vld [vmem:[%s3 + $0xb8] sm:$0xff]
    %v158 = vld [vmem:[%s3 + $0xc0] sm:$0xff]
    %v159 = vld [vmem:[%s3 + $0xc8] sm:$0xff]
    %v160 = vld [vmem:[%s3 + $0xd0] sm:$0xff]
    %v161 = vld [vmem:[%s3 + $0xd8] sm:$0xff]
    %v162 = vld [vmem:[%s3 + $0xe0] sm:$0xff]
    %v163 = vld [vmem:[%s3 + $0xe8] sm:$0xff]
    %v164 = vld [vmem:[%s3 + $0xf0] sm:$0xff]
    %v165 = vld [vmem:[%s3 + $0xf8] sm:$0xff]
    %v166 = vld [vmem:[%s3 + $0x100] sm:$0xff]
    %v167 = vld [vmem:[%s3 + $0x108] sm:$0xff]
    %v168 = vld [vmem:[%s3 + $0x110] sm:$0xff]
    %v169 = vld [vmem:[%s3 + $0x118] sm:$0xff]
    %v170 = vld [vmem:[%s3 + $0x120] sm:$0xff]
    %v171 = vld [vmem:[%s3 + $0x128] sm:$0xff]
    %v172 = vld [vmem:[%s3 + $0x130] sm:$0xff]
    %v173 = vld [vmem:[%s3 + $0x138] sm:$0xff]
    %v174 = vld [vmem:[%s3 + $0x140] sm:$0xff]
    %v175 = vld [vmem:[%s3 + $0x148] sm:$0xff]
    %v176 = vld [vmem:[%s3 + $0x150] sm:$0xff]
    %v177 = vld [vmem:[%s3 + $0x158] sm:$0xff]
    %v178 = vld [vmem:[%s3 + $0x160] sm:$0xff]
    %v179 = vld [vmem:[%s3 + $0x168] sm:$0xff]
    %v180 = vld [vmem:[%s3 + $0x170] sm:$0xff]
    %v181 = vld [vmem:[%s3 + $0x178] sm:$0xff]
    %v182 = vld [vmem:[%s4] sm:$0xff]
    %v183 = vld [vmem:[%s4 + $0x8] sm:$0xff]
    %v184 = vld [vmem:[%s4 + $0x10] sm:$0xf]
    %v185 = vld [vmem:[%s5] sm:$0xff]
    %v186 = vld [vmem:[%s5 + $0x8] sm:$0xff]
    %v187 = vld [vmem:[%s5 + $0x10] sm:$0xf]
    %v188 = vld [vmem:[%s6] sm:$0xff]
    %v189 = vld [vmem:[%s6 + $0x8] sm:$0xff]
    %v190 = vld [vmem:[%s6 + $0x10] sm:$0xf]
    %v191 = vld [vmem:[%s7] sm:$0xff]
    %v192 = vld [vmem:[%s7 + $0x8] sm:$0xff]
    %v193 = vld [vmem:[%s7 + $0x10] sm:$0xff]
    %v194 = vld [vmem:[%s7 + $0x18] sm:$0xff]
    %v195 = vld [vmem:[%s8] sm:$0xff]
    %v196 = vld [vmem:[%s8 + $0x8] sm:$0xff]
    %v197 = vld [vmem:[%s8 + $0x10] sm:$0xf]
    %v198 = vld [vmem:[%s0] sm:$0xff]
    %v199 = vld [vmem:[%s0 + $0x8] sm:$0xff]
    %v200 = vld [vmem:[%s0 + $0x10] sm:$0xff]
    %v201 = vld [vmem:[%s0 + $0x18] sm:$0xff]
    %v202 = vld [vmem:[%s0 + $0x20] sm:$0xff]
    %v203 = vld [vmem:[%s0 + $0x28] sm:$0xff]
    %v204 = vld [vmem:[%s0 + $0x30] sm:$0xff]
    %v205 = vld [vmem:[%s0 + $0x38] sm:$0xff]
    %v206 = vld [vmem:[%s0 + $0x40] sm:$0xff]
    %v207 = vld [vmem:[%s0 + $0x48] sm:$0xff]
    %v208 = vld [vmem:[%s0 + $0x50] sm:$0xff]
    %v209 = vld [vmem:[%s0 + $0x58] sm:$0xff]
    %v210 = vld [vmem:[%s0 + $0x60] sm:$0xff]
    %v211 = vld [vmem:[%s0 + $0x68] sm:$0xff]
    %v212 = vld [vmem:[%s0 + $0x70] sm:$0xff]
    %v213 = vld [vmem:[%s0 + $0x78] sm:$0xff]
    %v214 = vld [vmem:[%s0 + $0x80] sm:$0xff]
    %v215 = vld [vmem:[%s0 + $0x88] sm:$0xff]
    %v216 = vld [vmem:[%s0 + $0x90] sm:$0xff]
    %v217 = vld [vmem:[%s0 + $0x98] sm:$0xff]
    %v218 = vld [vmem:[%s0 + $0xa0] sm:$0xff]
    %v219 = vld [vmem:[%s0 + $0xa8] sm:$0xff]
    %v220 = vld [vmem:[%s0 + $0xb0] sm:$0xff]
    %v221 = vld [vmem:[%s0 + $0xb8] sm:$0xff]
    %v222 = vld [vmem:[%s0 + $0xc0] sm:$0xff]
    %v223 = vld [vmem:[%s0 + $0xc8] sm:$0xff]
    %v224 = vld [vmem:[%s0 + $0xd0] sm:$0xff]
    %v225 = vld [vmem:[%s0 + $0xd8] sm:$0xff]
    %v226 = vld [vmem:[%s0 + $0xe0] sm:$0xff]
    %v227 = vld [vmem:[%s0 + $0xe8] sm:$0xff]
    %v228 = vld [vmem:[%s0 + $0xf0] sm:$0xff]
    %v229 = vld [vmem:[%s0 + $0xf8] sm:$0xff]
    %v230 = vld [vmem:[%s0 + $0x100] sm:$0xff]
    %v231 = vld [vmem:[%s0 + $0x108] sm:$0xff]
    %v232 = vld [vmem:[%s0 + $0x110] sm:$0xff]
    %v233 = vld [vmem:[%s0 + $0x118] sm:$0xff]
    %v234 = vld [vmem:[%s0 + $0x120] sm:$0xff]
    %v235 = vld [vmem:[%s0 + $0x128] sm:$0xff]
    %v236 = vld [vmem:[%s0 + $0x130] sm:$0xff]
    %v237 = vld [vmem:[%s0 + $0x138] sm:$0xff]
    %v238 = vld [vmem:[%s0 + $0x140] sm:$0xff]
    %v239 = vld [vmem:[%s0 + $0x148] sm:$0xff]
    %v240 = vld [vmem:[%s0 + $0x150] sm:$0xff]
    %v241 = vld [vmem:[%s0 + $0x158] sm:$0xff]
    %v242 = vld [vmem:[%s0 + $0x160] sm:$0xff]
    %v243 = vld [vmem:[%s0 + $0x168] sm:$0xff]
    %v244 = vld [vmem:[%s0 + $0x170] sm:$0xff]
    %v245 = vld [vmem:[%s0 + $0x178] sm:$0xff]
    %v246 = vld [vmem:[%s0 + $0x180] sm:$0xff]
    %v247 = vld [vmem:[%s0 + $0x188] sm:$0xff]
    %v248 = vld [vmem:[%s0 + $0x190] sm:$0xff]
    %v249 = vld [vmem:[%s0 + $0x198] sm:$0xff]
    %v250 = vld [vmem:[%s0 + $0x1a0] sm:$0xff]
    %v251 = vld [vmem:[%s0 + $0x1a8] sm:$0xff]
    %v252 = vld [vmem:[%s0 + $0x1b0] sm:$0xff]
    %v253 = vld [vmem:[%s0 + $0x1b8] sm:$0xff]
    %v254 = vld [vmem:[%s0 + $0x1c0] sm:$0xff]
    %v255 = vld [vmem:[%s0 + $0x1c8] sm:$0xff]
    %v256 = vld [vmem:[%s0 + $0x1d0] sm:$0xff]
    %v257 = vld [vmem:[%s0 + $0x1d8] sm:$0xff]
    %v258 = vld [vmem:[%s0 + $0x1e0] sm:$0xff]
    %v259 = vld [vmem:[%s0 + $0x1e8] sm:$0xff]
    %v260 = vld [vmem:[%s0 + $0x1f0] sm:$0xff]
    %v261 = vld [vmem:[%s0 + $0x1f8] sm:$0xff]
    %262 = vmatprep.subr.mxu0 0.0
    %263 = vmatpush1.msra.mxu0 %v85
    %264 = vmatprep.subr.mxu0 0.0
    %265 = vmatpush1.msra.mxu0 %v84
    %266 = vmatprep.subr.mxu0 0.0
    %267 = vmatpush1.msra.mxu0 %v83
    %268 = vmatprep.subr.mxu0 0.0
    %269 = vmatpush1.msra.mxu0 %v82
    %270 = vmatprep.subr.mxu0 0.0
    %271 = vmatpush1.msra.mxu0 %v81
    %272 = vmatprep.subr.mxu0 0.0
    %273 = vmatpush1.msra.mxu0 %v80
    %274 = vmatprep.subr.mxu0 0.0
    %275 = vmatpush1.msra.mxu0 %v79
    %276 = vmatprep.subr.mxu0 0.0
    %277 = vmatpush1.msra.mxu0 %v78
    %278 = vmatprep.subr.mxu0 0.0
    %279 = vmatpush1.msra.mxu0 %v77
    %280 = vmatprep.subr.mxu0 0.0
    %281 = vmatpush1.msra.mxu0 %v76
    %282 = vmatprep.subr.mxu0 0.0
    %283 = vmatpush1.msra.mxu0 %v75
    %284 = vmatprep.subr.mxu0 0.0
    %285 = vmatpush1.msra.mxu0 %v74
    %286 = vmatprep.subr.mxu0 0.0
    %287 = vmatpush1.msra.mxu0 %v73
    %288 = vmatprep.subr.mxu0 0.0
    %289 = vmatpush1.msra.mxu0 %v72
    %290 = vmatprep.subr.mxu0 0.0
    %291 = vmatpush1.msra.mxu0 %v71
    %292 = vmatprep.subr.mxu0 0.0
    %293 = vmatpush1.msra.mxu0 %v70
    %294 = vmatprep.subr.mxu0 0.0
    %295 = vmatpush2.msra.mxu0 %v101
    %296 = vmatprep.subr.mxu0 0.0
    %297 = vmatpush2.msra.mxu0 %v100
    %298 = vmatprep.subr.mxu0 0.0
    %299 = vmatpush2.msra.mxu0 %v99
    %300 = vmatprep.subr.mxu0 0.0
    %301 = vmatpush2.msra.mxu0 %v98
    %302 = vmatprep.subr.mxu0 0.0
    %303 = vmatpush2.msra.mxu0 %v97
    %304 = vmatprep.subr.mxu0 0.0
    %305 = vmatpush2.msra.mxu0 %v96
    %306 = vmatprep.subr.mxu0 0.0
    %307 = vmatpush2.msra.mxu0 %v95
    %308 = vmatprep.subr.mxu0 0.0
    %309 = vmatpush2.msra.mxu0 %v94
    %310 = vmatprep.subr.mxu0 0.0
    %311 = vmatpush2.msra.mxu0 %v93
    %312 = vmatprep.subr.mxu0 0.0
    %313 = vmatpush2.msra.mxu0 %v92
    %314 = vmatprep.subr.mxu0 0.0
    %315 = vmatpush2.msra.mxu0 %v91
    %316 = vmatprep.subr.mxu0 0.0
    %317 = vmatpush2.msra.mxu0 %v90
    %318 = vmatprep.subr.mxu0 0.0
    %319 = vmatpush2.msra.mxu0 %v89
    %320 = vmatprep.subr.mxu0 0.0
    %321 = vmatpush2.msra.mxu0 %v88
    %322 = vmatprep.subr.mxu0 0.0
    %323 = vmatpush2.msra.mxu0 %v87
    %324 = vmatprep.subr.mxu0 0.0
    %325 = vmatpush2.msra.mxu0 %v86
    %326 = vmatprep.mubr.f32.mxu0 %v199
    %327 = vmatmul.mubr.f32.gmra.mxu0 %v198
    %v328 = vpop.f32.mrf.mxu0
    %v329 = vadd.f32 0.0, %v328
    %v330 = vpop.f32.mrf.mxu0
    %331 = vmatprep.mubr.f32.mxu0 %v201
    %332 = vmatmul.mubr.f32.gmra.mxu0 %v200
    %v333 = vpop.f32.mrf.mxu0
    %v334 = vadd.f32 0.0, %v333
    %v335 = vpop.f32.mrf.mxu0
    %336 = vmatprep.mubr.f32.mxu0 %v203
    %337 = vmatmul.mubr.f32.gmra.mxu0 %v202
    %v338 = vpop.f32.mrf.mxu0
    %v339 = vadd.f32 0.0, %v338
    %v340 = vpop.f32.mrf.mxu0
    %341 = vmatprep.mubr.f32.mxu0 %v205
    %342 = vmatmul.mubr.f32.gmra.mxu0 %v204
    %v343 = vpop.f32.mrf.mxu0
    %v344 = vadd.f32 0.0, %v343
    %v345 = vpop.f32.mrf.mxu0
    %346 = vmatprep.mubr.f32.mxu0 %v207
    %347 = vmatmul.mubr.f32.gmra.mxu0 %v206
    %v348 = vpop.f32.mrf.mxu0
    %v349 = vadd.f32 0.0, %v348
    %v350 = vpop.f32.mrf.mxu0
    %351 = vmatprep.mubr.f32.mxu0 %v209
    %352 = vmatmul.mubr.f32.gmra.mxu0 %v208
    %v353 = vpop.f32.mrf.mxu0
    %v354 = vadd.f32 0.0, %v353
    %v355 = vpop.f32.mrf.mxu0
    %356 = vmatprep.mubr.f32.mxu0 %v211
    %357 = vmatmul.mubr.f32.gmra.mxu0 %v210
    %v358 = vpop.f32.mrf.mxu0
    %v359 = vadd.f32 0.0, %v358
    %v360 = vpop.f32.mrf.mxu0
    %361 = vmatprep.mubr.f32.mxu0 %v213
    %362 = vmatmul.mubr.f32.gmra.mxu0 %v212
    %v363 = vpop.f32.mrf.mxu0
    %v364 = vadd.f32 0.0, %v363
    %v365 = vpop.f32.mrf.mxu0
    %366 = vmatprep.mubr.f32.mxu0 %v215
    %367 = vmatmul.mubr.f32.gmra.mxu0 %v214
    %v368 = vpop.f32.mrf.mxu0
    %v369 = vadd.f32 0.0, %v368
    %v370 = vpop.f32.mrf.mxu0
    %371 = vmatprep.mubr.f32.mxu0 %v217
    %372 = vmatmul.mubr.f32.gmra.mxu0 %v216
    %v373 = vpop.f32.mrf.mxu0
    %v374 = vadd.f32 0.0, %v373
    %v375 = vpop.f32.mrf.mxu0
    %376 = vmatprep.mubr.f32.mxu0 %v219
    %377 = vmatmul.mubr.f32.gmra.mxu0 %v218
    %v378 = vpop.f32.mrf.mxu0
    %v379 = vadd.f32 0.0, %v378
    %v380 = vpop.f32.mrf.mxu0
    %381 = vmatprep.mubr.f32.mxu0 %v221
    %382 = vmatmul.mubr.f32.gmra.mxu0 %v220
    %v383 = vpop.f32.mrf.mxu0
    %v384 = vadd.f32 0.0, %v383
    %v385 = vpop.f32.mrf.mxu0
    %386 = vmatprep.mubr.f32.mxu0 %v223
    %387 = vmatmul.mubr.f32.gmra.mxu0 %v222
    %v388 = vpop.f32.mrf.mxu0
    %v389 = vadd.f32 0.0, %v388
    %v390 = vpop.f32.mrf.mxu0
    %391 = vmatprep.mubr.f32.mxu0 %v225
    %392 = vmatmul.mubr.f32.gmra.mxu0 %v224
    %v393 = vpop.f32.mrf.mxu0
    %v394 = vadd.f32 0.0, %v393
    %v395 = vpop.f32.mrf.mxu0
    %396 = vmatprep.mubr.f32.mxu0 %v227
    %397 = vmatmul.mubr.f32.gmra.mxu0 %v226
    %v398 = vpop.f32.mrf.mxu0
    %v399 = vadd.f32 0.0, %v398
    %v400 = vpop.f32.mrf.mxu0
    %401 = vmatprep.mubr.f32.mxu0 %v229
    %402 = vmatmul.mubr.f32.gmra.mxu0 %v228
    %v403 = vpop.f32.mrf.mxu0
    %v404 = vadd.f32 0.0, %v403
    %v405 = vpop.f32.mrf.mxu0
    %406 = vmatprep.mubr.f32.mxu0 %v231
    %407 = vmatmul.mubr.f32.gmra.mxu0 %v230
    %v408 = vpop.f32.mrf.mxu0
    %v409 = vadd.f32 0.0, %v408
    %v410 = vpop.f32.mrf.mxu0
    %411 = vmatprep.mubr.f32.mxu0 %v233
    %412 = vmatmul.mubr.f32.gmra.mxu0 %v232
    %v413 = vpop.f32.mrf.mxu0
    %v414 = vadd.f32 0.0, %v413
    %v415 = vpop.f32.mrf.mxu0
    %416 = vmatprep.mubr.f32.mxu0 %v235
    %417 = vmatmul.mubr.f32.gmra.mxu0 %v234
    %v418 = vpop.f32.mrf.mxu0
    %v419 = vadd.f32 0.0, %v418
    %v420 = vpop.f32.mrf.mxu0
    %421 = vmatprep.mubr.f32.mxu0 %v237
    %422 = vmatmul.mubr.f32.gmra.mxu0 %v236
    %v423 = vpop.f32.mrf.mxu0
    %v424 = vadd.f32 0.0, %v423
    %v425 = vpop.f32.mrf.mxu0
    %426 = vmatprep.mubr.f32.mxu0 %v239
    %427 = vmatmul.mubr.f32.gmra.mxu0 %v238
    %v428 = vpop.f32.mrf.mxu0
    %v429 = vadd.f32 0.0, %v428
    %v430 = vpop.f32.mrf.mxu0
    %431 = vmatprep.mubr.f32.mxu0 %v241
    %432 = vmatmul.mubr.f32.gmra.mxu0 %v240
    %v433 = vpop.f32.mrf.mxu0
    %v434 = vadd.f32 0.0, %v433
    %v435 = vpop.f32.mrf.mxu0
    %436 = vmatprep.mubr.f32.mxu0 %v243
    %437 = vmatmul.mubr.f32.gmra.mxu0 %v242
    %v438 = vpop.f32.mrf.mxu0
    %v439 = vadd.f32 0.0, %v438
    %v440 = vpop.f32.mrf.mxu0
    %441 = vmatprep.mubr.f32.mxu0 %v245
    %442 = vmatmul.mubr.f32.gmra.mxu0 %v244
    %v443 = vpop.f32.mrf.mxu0
    %v444 = vadd.f32 0.0, %v443
    %v445 = vpop.f32.mrf.mxu0
    %446 = vmatprep.mubr.f32.mxu0 %v247
    %447 = vmatmul.mubr.f32.gmra.mxu0 %v246
    %v448 = vpop.f32.mrf.mxu0
    %v449 = vadd.f32 0.0, %v448
    %v450 = vpop.f32.mrf.mxu0
    %451 = vmatprep.mubr.f32.mxu0 %v249
    %452 = vmatmul.mubr.f32.gmra.mxu0 %v248
    %v453 = vpop.f32.mrf.mxu0
    %v454 = vadd.f32 0.0, %v453
    %v455 = vpop.f32.mrf.mxu0
    %456 = vmatprep.mubr.f32.mxu0 %v251
    %457 = vmatmul.mubr.f32.gmra.mxu0 %v250
    %v458 = vpop.f32.mrf.mxu0
    %v459 = vadd.f32 0.0, %v458
    %v460 = vpop.f32.mrf.mxu0
    %461 = vmatprep.mubr.f32.mxu0 %v253
    %462 = vmatmul.mubr.f32.gmra.mxu0 %v252
    %v463 = vpop.f32.mrf.mxu0
    %v464 = vadd.f32 0.0, %v463
    %v465 = vpop.f32.mrf.mxu0
    %466 = vmatprep.mubr.f32.mxu0 %v255
    %467 = vmatmul.mubr.f32.gmra.mxu0 %v254
    %v468 = vpop.f32.mrf.mxu0
    %v469 = vadd.f32 0.0, %v468
    %v470 = vpop.f32.mrf.mxu0
    %471 = vmatprep.mubr.f32.mxu0 %v257
    %472 = vmatmul.mubr.f32.gmra.mxu0 %v256
    %v473 = vpop.f32.mrf.mxu0
    %v474 = vadd.f32 0.0, %v473
    %v475 = vpop.f32.mrf.mxu0
    %476 = vmatprep.mubr.f32.mxu0 %v259
    %477 = vmatmul.mubr.f32.gmra.mxu0 %v258
    %v478 = vpop.f32.mrf.mxu0
    %v479 = vadd.f32 0.0, %v478
    %v480 = vpop.f32.mrf.mxu0
    %481 = vmatprep.mubr.f32.mxu0 %v261
    %482 = vmatmul.mubr.f32.gmra.mxu0 %v260
    %v483 = vpop.f32.mrf.mxu0
    %v484 = vadd.f32 0.0, %v483
    %v485 = vpop.f32.mrf.mxu0
    %486 = vdwg.mxu0
    %487 = vmatprep.subr.mxu0 0.0
    %488 = vmatpush1.msra.mxu0 %v117
    %489 = vmatprep.subr.mxu0 0.0
    %490 = vmatpush1.msra.mxu0 %v116
    %491 = vmatprep.subr.mxu0 0.0
    %492 = vmatpush1.msra.mxu0 %v115
    %493 = vmatprep.subr.mxu0 0.0
    %494 = vmatpush1.msra.mxu0 %v114
    %495 = vmatprep.subr.mxu0 0.0
    %496 = vmatpush1.msra.mxu0 %v113
    %497 = vmatprep.subr.mxu0 0.0
    %498 = vmatpush1.msra.mxu0 %v112
    %499 = vmatprep.subr.mxu0 0.0
    %500 = vmatpush1.msra.mxu0 %v111
    %501 = vmatprep.subr.mxu0 0.0
    %502 = vmatpush1.msra.mxu0 %v110
    %503 = vmatprep.subr.mxu0 0.0
    %504 = vmatpush1.msra.mxu0 %v109
    %505 = vmatprep.subr.mxu0 0.0
    %506 = vmatpush1.msra.mxu0 %v108
    %507 = vmatprep.subr.mxu0 0.0
    %508 = vmatpush1.msra.mxu0 %v107
    %509 = vmatprep.subr.mxu0 0.0
    %510 = vmatpush1.msra.mxu0 %v106
    %511 = vmatprep.subr.mxu0 0.0
    %512 = vmatpush1.msra.mxu0 %v105
    %513 = vmatprep.subr.mxu0 0.0
    %514 = vmatpush1.msra.mxu0 %v104
    %515 = vmatprep.subr.mxu0 0.0
    %516 = vmatpush1.msra.mxu0 %v103
    %517 = vmatprep.subr.mxu0 0.0
    %518 = vmatpush1.msra.mxu0 %v102
    %519 = vmatprep.subr.mxu0 0.0
    %520 = vmatpush2.msra.mxu0 %v133
    %521 = vmatprep.subr.mxu0 0.0
    %522 = vmatpush2.msra.mxu0 %v132
    %523 = vmatprep.subr.mxu0 0.0
    %524 = vmatpush2.msra.mxu0 %v131
    %525 = vmatprep.subr.mxu0 0.0
    %526 = vmatpush2.msra.mxu0 %v130
    %527 = vmatprep.subr.mxu0 0.0
    %528 = vmatpush2.msra.mxu0 %v129
    %529 = vmatprep.subr.mxu0 0.0
    %530 = vmatpush2.msra.mxu0 %v128
    %531 = vmatprep.subr.mxu0 0.0
    %532 = vmatpush2.msra.mxu0 %v127
    %533 = vmatprep.subr.mxu0 0.0
    %534 = vmatpush2.msra.mxu0 %v126
    %535 = vmatprep.subr.mxu0 0.0
    %536 = vmatpush2.msra.mxu0 %v125
    %537 = vmatprep.subr.mxu0 0.0
    %538 = vmatpush2.msra.mxu0 %v124
    %539 = vmatprep.subr.mxu0 0.0
    %540 = vmatpush2.msra.mxu0 %v123
    %541 = vmatprep.subr.mxu0 0.0
    %542 = vmatpush2.msra.mxu0 %v122
    %543 = vmatprep.subr.mxu0 0.0
    %544 = vmatpush2.msra.mxu0 %v121
    %545 = vmatprep.subr.mxu0 0.0
    %546 = vmatpush2.msra.mxu0 %v120
    %547 = vmatprep.subr.mxu0 0.0
    %548 = vmatpush2.msra.mxu0 %v119
    %549 = vmatprep.subr.mxu0 0.0
    %550 = vmatpush2.msra.mxu0 %v118
    %551 = vmatprep.mubr.f32.mxu0 %v199
    %552 = vmatmul.mubr.f32.gmra.mxu0 %v198
    %v553 = vpop.f32.mrf.mxu0
    %v554 = vadd.f32 0.0, %v553
    %v555 = vpop.f32.mrf.mxu0
    %556 = vmatprep.mubr.f32.mxu0 %v201
    %557 = vmatmul.mubr.f32.gmra.mxu0 %v200
    %v558 = vpop.f32.mrf.mxu0
    %v559 = vadd.f32 0.0, %v558
    %v560 = vpop.f32.mrf.mxu0
    %561 = vmatprep.mubr.f32.mxu0 %v203
    %562 = vmatmul.mubr.f32.gmra.mxu0 %v202
    %v563 = vpop.f32.mrf.mxu0
    %v564 = vadd.f32 0.0, %v563
    %v565 = vpop.f32.mrf.mxu0
    %566 = vmatprep.mubr.f32.mxu0 %v205
    %567 = vmatmul.mubr.f32.gmra.mxu0 %v204
    %v568 = vpop.f32.mrf.mxu0
    %v569 = vadd.f32 0.0, %v568
    %v570 = vpop.f32.mrf.mxu0
    %571 = vmatprep.mubr.f32.mxu0 %v207
    %572 = vmatmul.mubr.f32.gmra.mxu0 %v206
    %v573 = vpop.f32.mrf.mxu0
    %v574 = vadd.f32 0.0, %v573
    %v575 = vpop.f32.mrf.mxu0
    %576 = vmatprep.mubr.f32.mxu0 %v209
    %577 = vmatmul.mubr.f32.gmra.mxu0 %v208
    %v578 = vpop.f32.mrf.mxu0
    %v579 = vadd.f32 0.0, %v578
    %v580 = vpop.f32.mrf.mxu0
    %581 = vmatprep.mubr.f32.mxu0 %v211
    %582 = vmatmul.mubr.f32.gmra.mxu0 %v210
    %v583 = vpop.f32.mrf.mxu0
    %v584 = vadd.f32 0.0, %v583
    %v585 = vpop.f32.mrf.mxu0
    %586 = vmatprep.mubr.f32.mxu0 %v213
    %587 = vmatmul.mubr.f32.gmra.mxu0 %v212
    %v588 = vpop.f32.mrf.mxu0
    %v589 = vadd.f32 0.0, %v588
    %v590 = vpop.f32.mrf.mxu0
    %591 = vmatprep.mubr.f32.mxu0 %v215
    %592 = vmatmul.mubr.f32.gmra.mxu0 %v214
    %v593 = vpop.f32.mrf.mxu0
    %v594 = vadd.f32 0.0, %v593
    %v595 = vpop.f32.mrf.mxu0
    %596 = vmatprep.mubr.f32.mxu0 %v217
    %597 = vmatmul.mubr.f32.gmra.mxu0 %v216
    %v598 = vpop.f32.mrf.mxu0
    %v599 = vadd.f32 0.0, %v598
    %v600 = vpop.f32.mrf.mxu0
    %601 = vmatprep.mubr.f32.mxu0 %v219
    %602 = vmatmul.mubr.f32.gmra.mxu0 %v218
    %v603 = vpop.f32.mrf.mxu0
    %v604 = vadd.f32 0.0, %v603
    %v605 = vpop.f32.mrf.mxu0
    %606 = vmatprep.mubr.f32.mxu0 %v221
    %607 = vmatmul.mubr.f32.gmra.mxu0 %v220
    %v608 = vpop.f32.mrf.mxu0
    %v609 = vadd.f32 0.0, %v608
    %v610 = vpop.f32.mrf.mxu0
    %611 = vmatprep.mubr.f32.mxu0 %v223
    %612 = vmatmul.mubr.f32.gmra.mxu0 %v222
    %v613 = vpop.f32.mrf.mxu0
    %v614 = vadd.f32 0.0, %v613
    %v615 = vpop.f32.mrf.mxu0
    %616 = vmatprep.mubr.f32.mxu0 %v225
    %617 = vmatmul.mubr.f32.gmra.mxu0 %v224
    %v618 = vpop.f32.mrf.mxu0
    %v619 = vadd.f32 0.0, %v618
    %v620 = vpop.f32.mrf.mxu0
    %621 = vmatprep.mubr.f32.mxu0 %v227
    %622 = vmatmul.mubr.f32.gmra.mxu0 %v226
    %v623 = vpop.f32.mrf.mxu0
    %v624 = vadd.f32 0.0, %v623
    %v625 = vpop.f32.mrf.mxu0
    %626 = vmatprep.mubr.f32.mxu0 %v229
    %627 = vmatmul.mubr.f32.gmra.mxu0 %v228
    %v628 = vpop.f32.mrf.mxu0
    %v629 = vadd.f32 0.0, %v628
    %v630 = vpop.f32.mrf.mxu0
    %631 = vmatprep.mubr.f32.mxu0 %v231
    %632 = vmatmul.mubr.f32.gmra.mxu0 %v230
    %v633 = vpop.f32.mrf.mxu0
    %v634 = vadd.f32 0.0, %v633
    %v635 = vpop.f32.mrf.mxu0
    %636 = vmatprep.mubr.f32.mxu0 %v233
    %637 = vmatmul.mubr.f32.gmra.mxu0 %v232
    %v638 = vpop.f32.mrf.mxu0
    %v639 = vadd.f32 0.0, %v638
    %v640 = vpop.f32.mrf.mxu0
    %641 = vmatprep.mubr.f32.mxu0 %v235
    %642 = vmatmul.mubr.f32.gmra.mxu0 %v234
    %v643 = vpop.f32.mrf.mxu0
    %v644 = vadd.f32 0.0, %v643
    %v645 = vpop.f32.mrf.mxu0
    %646 = vmatprep.mubr.f32.mxu0 %v237
    %647 = vmatmul.mubr.f32.gmra.mxu0 %v236
    %v648 = vpop.f32.mrf.mxu0
    %v649 = vadd.f32 0.0, %v648
    %v650 = vpop.f32.mrf.mxu0
    %651 = vmatprep.mubr.f32.mxu0 %v239
    %652 = vmatmul.mubr.f32.gmra.mxu0 %v238
    %v653 = vpop.f32.mrf.mxu0
    %v654 = vadd.f32 0.0, %v653
    %v655 = vpop.f32.mrf.mxu0
    %656 = vmatprep.mubr.f32.mxu0 %v241
    %657 = vmatmul.mubr.f32.gmra.mxu0 %v240
    %v658 = vpop.f32.mrf.mxu0
    %v659 = vadd.f32 0.0, %v658
    %v660 = vpop.f32.mrf.mxu0
    %661 = vmatprep.mubr.f32.mxu0 %v243
    %662 = vmatmul.mubr.f32.gmra.mxu0 %v242
    %v663 = vpop.f32.mrf.mxu0
    %v664 = vadd.f32 0.0, %v663
    %v665 = vpop.f32.mrf.mxu0
    %666 = vmatprep.mubr.f32.mxu0 %v245
    %667 = vmatmul.mubr.f32.gmra.mxu0 %v244
    %v668 = vpop.f32.mrf.mxu0
    %v669 = vadd.f32 0.0, %v668
    %v670 = vpop.f32.mrf.mxu0
    %671 = vmatprep.mubr.f32.mxu0 %v247
    %672 = vmatmul.mubr.f32.gmra.mxu0 %v246
    %v673 = vpop.f32.mrf.mxu0
    %v674 = vadd.f32 0.0, %v673
    %v675 = vpop.f32.mrf.mxu0
    %676 = vmatprep.mubr.f32.mxu0 %v249
    %677 = vmatmul.mubr.f32.gmra.mxu0 %v248
    %v678 = vpop.f32.mrf.mxu0
    %v679 = vadd.f32 0.0, %v678
    %v680 = vpop.f32.mrf.mxu0
    %681 = vmatprep.mubr.f32.mxu0 %v251
    %682 = vmatmul.mubr.f32.gmra.mxu0 %v250
    %v683 = vpop.f32.mrf.mxu0
    %v684 = vadd.f32 0.0, %v683
    %v685 = vpop.f32.mrf.mxu0
    %686 = vmatprep.mubr.f32.mxu0 %v253
    %687 = vmatmul.mubr.f32.gmra.mxu0 %v252
    %v688 = vpop.f32.mrf.mxu0
    %v689 = vadd.f32 0.0, %v688
    %v690 = vpop.f32.mrf.mxu0
    %691 = vmatprep.mubr.f32.mxu0 %v255
    %692 = vmatmul.mubr.f32.gmra.mxu0 %v254
    %v693 = vpop.f32.mrf.mxu0
    %v694 = vadd.f32 0.0, %v693
    %v695 = vpop.f32.mrf.mxu0
    %696 = vmatprep.mubr.f32.mxu0 %v257
    %697 = vmatmul.mubr.f32.gmra.mxu0 %v256
    %v698 = vpop.f32.mrf.mxu0
    %v699 = vadd.f32 0.0, %v698
    %v700 = vpop.f32.mrf.mxu0
    %701 = vmatprep.mubr.f32.mxu0 %v259
    %702 = vmatmul.mubr.f32.gmra.mxu0 %v258
    %v703 = vpop.f32.mrf.mxu0
    %v704 = vadd.f32 0.0, %v703
    %v705 = vpop.f32.mrf.mxu0
    %706 = vmatprep.mubr.f32.mxu0 %v261
    %707 = vmatmul.mubr.f32.gmra.mxu0 %v260
    %v708 = vpop.f32.mrf.mxu0
    %v709 = vadd.f32 0.0, %v708
    %v710 = vpop.f32.mrf.mxu0
    %711 = vdwg.mxu0
    %712 = vmatprep.subr.mxu0 0.0
    %713 = vmatpush1.msra.mxu0 %v404
    %714 = vmatprep.subr.mxu0 0.0
    %715 = vmatpush1.msra.mxu0 %v399
    %716 = vmatprep.subr.mxu0 0.0
    %717 = vmatpush1.msra.mxu0 %v394
    %718 = vmatprep.subr.mxu0 0.0
    %719 = vmatpush1.msra.mxu0 %v389
    %720 = vmatprep.subr.mxu0 0.0
    %721 = vmatpush1.msra.mxu0 %v384
    %722 = vmatprep.subr.mxu0 0.0
    %723 = vmatpush1.msra.mxu0 %v379
    %724 = vmatprep.subr.mxu0 0.0
    %725 = vmatpush1.msra.mxu0 %v374
    %726 = vmatprep.subr.mxu0 0.0
    %727 = vmatpush1.msra.mxu0 %v369
    %728 = vmatprep.subr.mxu0 0.0
    %729 = vmatpush1.msra.mxu0 %v364
    %730 = vmatprep.subr.mxu0 0.0
    %731 = vmatpush1.msra.mxu0 %v359
    %732 = vmatprep.subr.mxu0 0.0
    %733 = vmatpush1.msra.mxu0 %v354
    %734 = vmatprep.subr.mxu0 0.0
    %735 = vmatpush1.msra.mxu0 %v349
    %736 = vmatprep.subr.mxu0 0.0
    %737 = vmatpush1.msra.mxu0 %v344
    %738 = vmatprep.subr.mxu0 0.0
    %739 = vmatpush1.msra.mxu0 %v339
    %740 = vmatprep.subr.mxu0 0.0
    %741 = vmatpush1.msra.mxu0 %v334
    %742 = vmatprep.subr.mxu0 0.0
    %743 = vmatpush1.msra.mxu0 %v329
    %744 = vmatprep.subr.mxu0 0.0
    %745 = vmatpush2.msra.mxu0 0.0
    %746 = vmatprep.subr.mxu0 0.0
    %747 = vmatpush2.msra.mxu0 0.0
    %748 = vmatprep.subr.mxu0 0.0
    %749 = vmatpush2.msra.mxu0 0.0
    %750 = vmatprep.subr.mxu0 0.0
    %751 = vmatpush2.msra.mxu0 0.0
    %752 = vmatprep.subr.mxu0 0.0
    %753 = vmatpush2.msra.mxu0 0.0
    %754 = vmatprep.subr.mxu0 0.0
    %755 = vmatpush2.msra.mxu0 0.0
    %756 = vmatprep.subr.mxu0 0.0
    %757 = vmatpush2.msra.mxu0 0.0
    %758 = vmatprep.subr.mxu0 0.0
    %759 = vmatpush2.msra.mxu0 0.0
    %760 = vmatprep.subr.mxu0 0.0
    %761 = vmatpush2.msra.mxu0 0.0
    %762 = vmatprep.subr.mxu0 0.0
    %763 = vmatpush2.msra.mxu0 0.0
    %764 = vmatprep.subr.mxu0 0.0
    %765 = vmatpush2.msra.mxu0 0.0
    %766 = vmatprep.subr.mxu0 0.0
    %767 = vmatpush2.msra.mxu0 0.0
    %768 = vmatprep.subr.mxu0 0.0
    %769 = vmatpush2.msra.mxu0 0.0
    %770 = vmatprep.subr.mxu0 0.0
    %771 = vmatpush2.msra.mxu0 0.0
    %772 = vmatprep.subr.mxu0 0.0
    %773 = vmatpush2.msra.mxu0 0.0
    %774 = vmatprep.subr.mxu0 0.0
    %775 = vmatpush2.msra.mxu0 0.0
    %776 = vmatprep.mubr.f32.mxu0 0.0
    %777 = vmatmul.mubr.f32.gmra.mxu0 %v134
    %v778 = vpop.f32.mrf.mxu0
    %v779 = vadd.f32 0.0, %v778
    %v780 = vpop.f32.mrf.mxu0
    %781 = vmatprep.mubr.f32.mxu0 0.0
    %782 = vmatmul.mubr.f32.gmra.mxu0 %v135
    %v783 = vpop.f32.mrf.mxu0
    %v784 = vadd.f32 0.0, %v783
    %v785 = vpop.f32.mrf.mxu0
    %786 = vmatprep.mubr.f32.mxu0 0.0
    %787 = vmatmul.mubr.f32.gmra.mxu0 %v136
    %v788 = vpop.f32.mrf.mxu0
    %v789 = vadd.f32 0.0, %v788
    %v790 = vpop.f32.mrf.mxu0
    %791 = vmatprep.mubr.f32.mxu0 0.0
    %792 = vmatmul.mubr.f32.gmra.mxu0 %v137
    %v793 = vpop.f32.mrf.mxu0
    %v794 = vadd.f32 0.0, %v793
    %v795 = vpop.f32.mrf.mxu0
    %796 = vmatprep.mubr.f32.mxu0 0.0
    %797 = vmatmul.mubr.f32.gmra.mxu0 %v138
    %v798 = vpop.f32.mrf.mxu0
    %v799 = vadd.f32 0.0, %v798
    %v800 = vpop.f32.mrf.mxu0
    %801 = vmatprep.mubr.f32.mxu0 0.0
    %802 = vmatmul.mubr.f32.gmra.mxu0 %v139
    %v803 = vpop.f32.mrf.mxu0
    %v804 = vadd.f32 0.0, %v803
    %v805 = vpop.f32.mrf.mxu0
    %806 = vmatprep.mubr.f32.mxu0 0.0
    %807 = vmatmul.mubr.f32.gmra.mxu0 %v140
    %v808 = vpop.f32.mrf.mxu0
    %v809 = vadd.f32 0.0, %v808
    %v810 = vpop.f32.mrf.mxu0
    %811 = vmatprep.mubr.f32.mxu0 0.0
    %812 = vmatmul.mubr.f32.gmra.mxu0 %v141
    %v813 = vpop.f32.mrf.mxu0
    %v814 = vadd.f32 0.0, %v813
    %v815 = vpop.f32.mrf.mxu0
    %816 = vmatprep.mubr.f32.mxu0 0.0
    %817 = vmatmul.mubr.f32.gmra.mxu0 %v142
    %v818 = vpop.f32.mrf.mxu0
    %v819 = vadd.f32 0.0, %v818
    %v820 = vpop.f32.mrf.mxu0
    %821 = vmatprep.mubr.f32.mxu0 0.0
    %822 = vmatmul.mubr.f32.gmra.mxu0 %v143
    %v823 = vpop.f32.mrf.mxu0
    %v824 = vadd.f32 0.0, %v823
    %v825 = vpop.f32.mrf.mxu0
    %826 = vmatprep.mubr.f32.mxu0 0.0
    %827 = vmatmul.mubr.f32.gmra.mxu0 %v144
    %v828 = vpop.f32.mrf.mxu0
    %v829 = vadd.f32 0.0, %v828
    %v830 = vpop.f32.mrf.mxu0
    %831 = vmatprep.mubr.f32.mxu0 0.0
    %832 = vmatmul.mubr.f32.gmra.mxu0 %v145
    %v833 = vpop.f32.mrf.mxu0
    %v834 = vadd.f32 0.0, %v833
    %v835 = vpop.f32.mrf.mxu0
    %836 = vmatprep.mubr.f32.mxu0 0.0
    %837 = vmatmul.mubr.f32.gmra.mxu0 %v146
    %v838 = vpop.f32.mrf.mxu0
    %v839 = vadd.f32 0.0, %v838
    %v840 = vpop.f32.mrf.mxu0
    %841 = vmatprep.mubr.f32.mxu0 0.0
    %842 = vmatmul.mubr.f32.gmra.mxu0 %v147
    %v843 = vpop.f32.mrf.mxu0
    %v844 = vadd.f32 0.0, %v843
    %v845 = vpop.f32.mrf.mxu0
    %846 = vmatprep.mubr.f32.mxu0 0.0
    %847 = vmatmul.mubr.f32.gmra.mxu0 %v148
    %v848 = vpop.f32.mrf.mxu0
    %v849 = vadd.f32 0.0, %v848
    %v850 = vpop.f32.mrf.mxu0
    %851 = vmatprep.mubr.f32.mxu0 0.0
    %852 = vmatmul.mubr.f32.gmra.mxu0 %v149
    %v853 = vpop.f32.mrf.mxu0
    %v854 = vadd.f32 0.0, %v853
    %v855 = vpop.f32.mrf.mxu0
    %856 = vmatprep.mubr.f32.mxu0 0.0
    %857 = vmatmul.mubr.f32.gmra.mxu0 %v150
    %v858 = vpop.f32.mrf.mxu0
    %v859 = vadd.f32 0.0, %v858
    %v860 = vpop.f32.mrf.mxu0
    %861 = vmatprep.mubr.f32.mxu0 0.0
    %862 = vmatmul.mubr.f32.gmra.mxu0 %v151
    %v863 = vpop.f32.mrf.mxu0
    %v864 = vadd.f32 0.0, %v863
    %v865 = vpop.f32.mrf.mxu0
    %866 = vmatprep.mubr.f32.mxu0 0.0
    %867 = vmatmul.mubr.f32.gmra.mxu0 %v152
    %v868 = vpop.f32.mrf.mxu0
    %v869 = vadd.f32 0.0, %v868
    %v870 = vpop.f32.mrf.mxu0
    %871 = vmatprep.mubr.f32.mxu0 0.0
    %872 = vmatmul.mubr.f32.gmra.mxu0 %v153
    %v873 = vpop.f32.mrf.mxu0
    %v874 = vadd.f32 0.0, %v873
    %v875 = vpop.f32.mrf.mxu0
    %876 = vmatprep.mubr.f32.mxu0 0.0
    %877 = vmatmul.mubr.f32.gmra.mxu0 %v154
    %v878 = vpop.f32.mrf.mxu0
    %v879 = vadd.f32 0.0, %v878
    %v880 = vpop.f32.mrf.mxu0
    %881 = vmatprep.mubr.f32.mxu0 0.0
    %882 = vmatmul.mubr.f32.gmra.mxu0 %v155
    %v883 = vpop.f32.mrf.mxu0
    %v884 = vadd.f32 0.0, %v883
    %v885 = vpop.f32.mrf.mxu0
    %886 = vmatprep.mubr.f32.mxu0 0.0
    %887 = vmatmul.mubr.f32.gmra.mxu0 %v156
    %v888 = vpop.f32.mrf.mxu0
    %v889 = vadd.f32 0.0, %v888
    %v890 = vpop.f32.mrf.mxu0
    %891 = vmatprep.mubr.f32.mxu0 0.0
    %892 = vmatmul.mubr.f32.gmra.mxu0 %v157
    %v893 = vpop.f32.mrf.mxu0
    %v894 = vadd.f32 0.0, %v893
    %v895 = vpop.f32.mrf.mxu0
    %896 = vmatprep.mubr.f32.mxu0 0.0
    %897 = vmatmul.mubr.f32.gmra.mxu0 %v158
    %v898 = vpop.f32.mrf.mxu0
    %v899 = vadd.f32 0.0, %v898
    %v900 = vpop.f32.mrf.mxu0
    %901 = vmatprep.mubr.f32.mxu0 0.0
    %902 = vmatmul.mubr.f32.gmra.mxu0 %v159
    %v903 = vpop.f32.mrf.mxu0
    %v904 = vadd.f32 0.0, %v903
    %v905 = vpop.f32.mrf.mxu0
    %906 = vmatprep.mubr.f32.mxu0 0.0
    %907 = vmatmul.mubr.f32.gmra.mxu0 %v160
    %v908 = vpop.f32.mrf.mxu0
    %v909 = vadd.f32 0.0, %v908
    %v910 = vpop.f32.mrf.mxu0
    %911 = vmatprep.mubr.f32.mxu0 0.0
    %912 = vmatmul.mubr.f32.gmra.mxu0 %v161
    %v913 = vpop.f32.mrf.mxu0
    %v914 = vadd.f32 0.0, %v913
    %v915 = vpop.f32.mrf.mxu0
    %916 = vmatprep.mubr.f32.mxu0 0.0
    %917 = vmatmul.mubr.f32.gmra.mxu0 %v162
    %v918 = vpop.f32.mrf.mxu0
    %v919 = vadd.f32 0.0, %v918
    %v920 = vpop.f32.mrf.mxu0
    %921 = vmatprep.mubr.f32.mxu0 0.0
    %922 = vmatmul.mubr.f32.gmra.mxu0 %v163
    %v923 = vpop.f32.mrf.mxu0
    %v924 = vadd.f32 0.0, %v923
    %v925 = vpop.f32.mrf.mxu0
    %926 = vmatprep.mubr.f32.mxu0 0.0
    %927 = vmatmul.mubr.f32.gmra.mxu0 %v164
    %v928 = vpop.f32.mrf.mxu0
    %v929 = vadd.f32 0.0, %v928
    %v930 = vpop.f32.mrf.mxu0
    %931 = vmatprep.mubr.f32.mxu0 0.0
    %932 = vmatmul.mubr.f32.gmra.mxu0 %v165
    %v933 = vpop.f32.mrf.mxu0
    %v934 = vadd.f32 0.0, %v933
    %v935 = vpop.f32.mrf.mxu0
    %936 = vmatprep.mubr.f32.mxu0 0.0
    %937 = vmatmul.mubr.f32.gmra.mxu0 %v166
    %v938 = vpop.f32.mrf.mxu0
    %v939 = vadd.f32 0.0, %v938
    %v940 = vpop.f32.mrf.mxu0
    %941 = vmatprep.mubr.f32.mxu0 0.0
    %942 = vmatmul.mubr.f32.gmra.mxu0 %v167
    %v943 = vpop.f32.mrf.mxu0
    %v944 = vadd.f32 0.0, %v943
    %v945 = vpop.f32.mrf.mxu0
    %946 = vmatprep.mubr.f32.mxu0 0.0
    %947 = vmatmul.mubr.f32.gmra.mxu0 %v168
    %v948 = vpop.f32.mrf.mxu0
    %v949 = vadd.f32 0.0, %v948
    %v950 = vpop.f32.mrf.mxu0
    %951 = vmatprep.mubr.f32.mxu0 0.0
    %952 = vmatmul.mubr.f32.gmra.mxu0 %v169
    %v953 = vpop.f32.mrf.mxu0
    %v954 = vadd.f32 0.0, %v953
    %v955 = vpop.f32.mrf.mxu0
    %956 = vmatprep.mubr.f32.mxu0 0.0
    %957 = vmatmul.mubr.f32.gmra.mxu0 %v170
    %v958 = vpop.f32.mrf.mxu0
    %v959 = vadd.f32 0.0, %v958
    %v960 = vpop.f32.mrf.mxu0
    %961 = vmatprep.mubr.f32.mxu0 0.0
    %962 = vmatmul.mubr.f32.gmra.mxu0 %v171
    %v963 = vpop.f32.mrf.mxu0
    %v964 = vadd.f32 0.0, %v963
    %v965 = vpop.f32.mrf.mxu0
    %966 = vmatprep.mubr.f32.mxu0 0.0
    %967 = vmatmul.mubr.f32.gmra.mxu0 %v172
    %v968 = vpop.f32.mrf.mxu0
    %v969 = vadd.f32 0.0, %v968
    %v970 = vpop.f32.mrf.mxu0
    %971 = vmatprep.mubr.f32.mxu0 0.0
    %972 = vmatmul.mubr.f32.gmra.mxu0 %v173
    %v973 = vpop.f32.mrf.mxu0
    %v974 = vadd.f32 0.0, %v973
    %v975 = vpop.f32.mrf.mxu0
    %976 = vmatprep.mubr.f32.mxu0 0.0
    %977 = vmatmul.mubr.f32.gmra.mxu0 %v174
    %v978 = vpop.f32.mrf.mxu0
    %v979 = vadd.f32 0.0, %v978
    %v980 = vpop.f32.mrf.mxu0
    %981 = vmatprep.mubr.f32.mxu0 0.0
    %982 = vmatmul.mubr.f32.gmra.mxu0 %v175
    %v983 = vpop.f32.mrf.mxu0
    %v984 = vadd.f32 0.0, %v983
    %v985 = vpop.f32.mrf.mxu0
    %986 = vmatprep.mubr.f32.mxu0 0.0
    %987 = vmatmul.mubr.f32.gmra.mxu0 %v176
    %v988 = vpop.f32.mrf.mxu0
    %v989 = vadd.f32 0.0, %v988
    %v990 = vpop.f32.mrf.mxu0
    %991 = vmatprep.mubr.f32.mxu0 0.0
    %992 = vmatmul.mubr.f32.gmra.mxu0 %v177
    %v993 = vpop.f32.mrf.mxu0
    %v994 = vadd.f32 0.0, %v993
    %v995 = vpop.f32.mrf.mxu0
    %996 = vmatprep.mubr.f32.mxu0 0.0
    %997 = vmatmul.mubr.f32.gmra.mxu0 %v178
    %v998 = vpop.f32.mrf.mxu0
    %v999 = vadd.f32 0.0, %v998
    %v1000 = vpop.f32.mrf.mxu0
    %1001 = vmatprep.mubr.f32.mxu0 0.0
    %1002 = vmatmul.mubr.f32.gmra.mxu0 %v179
    %v1003 = vpop.f32.mrf.mxu0
    %v1004 = vadd.f32 0.0, %v1003
    %v1005 = vpop.f32.mrf.mxu0
    %1006 = vmatprep.mubr.f32.mxu0 0.0
    %1007 = vmatmul.mubr.f32.gmra.mxu0 %v180
    %v1008 = vpop.f32.mrf.mxu0
    %v1009 = vadd.f32 0.0, %v1008
    %v1010 = vpop.f32.mrf.mxu0
    %1011 = vmatprep.mubr.f32.mxu0 0.0
    %1012 = vmatmul.mubr.f32.gmra.mxu0 %v181
    %v1013 = vpop.f32.mrf.mxu0
    %v1014 = vadd.f32 0.0, %v1013
    %v1015 = vpop.f32.mrf.mxu0
    %1016 = vdwg.mxu0
    %vm1017 = vcmask 162816
    %v1019 = vsel %vm1017, %v859, 0
    %v1022 = vsel %vm1017, %v864, 0
    %v1025 = vsel %vm1017, %v869, 0
    %v1028 = vsel %vm1017, %v874, 0
    %v1031 = vsel %vm1017, %v879, 0
    %v1034 = vsel %vm1017, %v884, 0
    %v1037 = vsel %vm1017, %v889, 0
    %v1040 = vsel %vm1017, %v894, 0
    %v1043 = vsel %vm1017, %v899, 0
    %v1046 = vsel %vm1017, %v904, 0
    %v1049 = vsel %vm1017, %v909, 0
    %v1052 = vsel %vm1017, %v914, 0
    %v1055 = vsel %vm1017, %v919, 0
    %v1058 = vsel %vm1017, %v924, 0
    %v1061 = vsel %vm1017, %v929, 0
    %v1064 = vsel %vm1017, %v934, 0
    %vm1066 = vcmask 1043456
    %v1068 = vsel %vm1066, %v187, 0
    %1070 = vmatprep.subr.mxu0 0.0
    %1071 = vmatpush1.msra.mxu0 0.0
    %1072 = vmatprep.subr.mxu0 0.0
    %1073 = vmatpush1.msra.mxu0 0.0
    %1074 = vmatprep.subr.mxu0 0.0
    %1075 = vmatpush1.msra.mxu0 0.0
    %1076 = vmatprep.subr.mxu0 0.0
    %1077 = vmatpush1.msra.mxu0 0.0
    %1078 = vmatprep.subr.mxu0 0.0
    %1079 = vmatpush1.msra.mxu0 0.0
    %1080 = vmatprep.subr.mxu0 0.0
    %1081 = vmatpush1.msra.mxu0 0.0
    %1082 = vmatprep.subr.mxu0 0.0
    %1083 = vmatpush1.msra.mxu0 0.0
    %1084 = vmatprep.subr.mxu0 0.0
    %1085 = vmatpush1.msra.mxu0 0.0
    %1086 = vmatprep.subr.mxu0 0.0
    %1087 = vmatpush1.msra.mxu0 0.0
    %1088 = vmatprep.subr.mxu0 0.0
    %1089 = vmatpush1.msra.mxu0 0.0
    %1090 = vmatprep.subr.mxu0 0.0
    %1091 = vmatpush1.msra.mxu0 0.0
    %1092 = vmatprep.subr.mxu0 0.0
    %1093 = vmatpush1.msra.mxu0 0.0
    %1094 = vmatprep.subr.mxu0 0.0
    %1095 = vmatpush1.msra.mxu0 0.0
    %1096 = vmatprep.subr.mxu0 0.0
    %1097 = vmatpush1.msra.mxu0 %v1068
    %1098 = vmatprep.subr.mxu0 0.0
    %1099 = vmatpush1.msra.mxu0 %v186
    %1100 = vmatprep.subr.mxu0 0.0
    %1101 = vmatpush1.msra.mxu0 %v185
    %1102 = vmatprep.subr.mxu0 0.0
    %1103 = vmatpush2.msra.mxu0 0.0
    %1104 = vmatprep.subr.mxu0 0.0
    %1105 = vmatpush2.msra.mxu0 0.0
    %1106 = vmatprep.subr.mxu0 0.0
    %1107 = vmatpush2.msra.mxu0 0.0
    %1108 = vmatprep.subr.mxu0 0.0
    %1109 = vmatpush2.msra.mxu0 0.0
    %1110 = vmatprep.subr.mxu0 0.0
    %1111 = vmatpush2.msra.mxu0 0.0
    %1112 = vmatprep.subr.mxu0 0.0
    %1113 = vmatpush2.msra.mxu0 0.0
    %1114 = vmatprep.subr.mxu0 0.0
    %1115 = vmatpush2.msra.mxu0 0.0
    %1116 = vmatprep.subr.mxu0 0.0
    %1117 = vmatpush2.msra.mxu0 0.0
    %1118 = vmatprep.subr.mxu0 0.0
    %1119 = vmatpush2.msra.mxu0 0.0
    %1120 = vmatprep.subr.mxu0 0.0
    %1121 = vmatpush2.msra.mxu0 0.0
    %1122 = vmatprep.subr.mxu0 0.0
    %1123 = vmatpush2.msra.mxu0 0.0
    %1124 = vmatprep.subr.mxu0 0.0
    %1125 = vmatpush2.msra.mxu0 0.0
    %1126 = vmatprep.subr.mxu0 0.0
    %1127 = vmatpush2.msra.mxu0 0.0
    %1128 = vmatprep.subr.mxu0 0.0
    %1129 = vmatpush2.msra.mxu0 0.0
    %1130 = vmatprep.subr.mxu0 0.0
    %1131 = vmatpush2.msra.mxu0 0.0
    %1132 = vmatprep.subr.mxu0 0.0
    %1133 = vmatpush2.msra.mxu0 0.0
    %1134 = vmatprep.mubr.f32.mxu0 0.0
    %1135 = vmatmul.mubr.f32.gmra.mxu0 %v1019
    %v1136 = vpop.f32.mrf.mxu0
    %v1137 = vadd.f32 0.0, %v1136
    %v1138 = vpop.f32.mrf.mxu0
    %1139 = vmatprep.mubr.f32.mxu0 0.0
    %1140 = vmatmul.mubr.f32.gmra.mxu0 %v1022
    %v1141 = vpop.f32.mrf.mxu0
    %v1142 = vadd.f32 0.0, %v1141
    %v1143 = vpop.f32.mrf.mxu0
    %1144 = vmatprep.mubr.f32.mxu0 0.0
    %1145 = vmatmul.mubr.f32.gmra.mxu0 %v1025
    %v1146 = vpop.f32.mrf.mxu0
    %v1147 = vadd.f32 0.0, %v1146
    %v1148 = vpop.f32.mrf.mxu0
    %1149 = vmatprep.mubr.f32.mxu0 0.0
    %1150 = vmatmul.mubr.f32.gmra.mxu0 %v1028
    %v1151 = vpop.f32.mrf.mxu0
    %v1152 = vadd.f32 0.0, %v1151
    %v1153 = vpop.f32.mrf.mxu0
    %1154 = vmatprep.mubr.f32.mxu0 0.0
    %1155 = vmatmul.mubr.f32.gmra.mxu0 %v1031
    %v1156 = vpop.f32.mrf.mxu0
    %v1157 = vadd.f32 0.0, %v1156
    %v1158 = vpop.f32.mrf.mxu0
    %1159 = vmatprep.mubr.f32.mxu0 0.0
    %1160 = vmatmul.mubr.f32.gmra.mxu0 %v1034
    %v1161 = vpop.f32.mrf.mxu0
    %v1162 = vadd.f32 0.0, %v1161
    %v1163 = vpop.f32.mrf.mxu0
    %1164 = vmatprep.mubr.f32.mxu0 0.0
    %1165 = vmatmul.mubr.f32.gmra.mxu0 %v1037
    %v1166 = vpop.f32.mrf.mxu0
    %v1167 = vadd.f32 0.0, %v1166
    %v1168 = vpop.f32.mrf.mxu0
    %1169 = vmatprep.mubr.f32.mxu0 0.0
    %1170 = vmatmul.mubr.f32.gmra.mxu0 %v1040
    %v1171 = vpop.f32.mrf.mxu0
    %v1172 = vadd.f32 0.0, %v1171
    %v1173 = vpop.f32.mrf.mxu0
    %1174 = vmatprep.mubr.f32.mxu0 0.0
    %1175 = vmatmul.mubr.f32.gmra.mxu0 %v1043
    %v1176 = vpop.f32.mrf.mxu0
    %v1177 = vadd.f32 0.0, %v1176
    %v1178 = vpop.f32.mrf.mxu0
    %1179 = vmatprep.mubr.f32.mxu0 0.0
    %1180 = vmatmul.mubr.f32.gmra.mxu0 %v1046
    %v1181 = vpop.f32.mrf.mxu0
    %v1182 = vadd.f32 0.0, %v1181
    %v1183 = vpop.f32.mrf.mxu0
    %1184 = vmatprep.mubr.f32.mxu0 0.0
    %1185 = vmatmul.mubr.f32.gmra.mxu0 %v1049
    %v1186 = vpop.f32.mrf.mxu0
    %v1187 = vadd.f32 0.0, %v1186
    %v1188 = vpop.f32.mrf.mxu0
    %1189 = vmatprep.mubr.f32.mxu0 0.0
    %1190 = vmatmul.mubr.f32.gmra.mxu0 %v1052
    %v1191 = vpop.f32.mrf.mxu0
    %v1192 = vadd.f32 0.0, %v1191
    %v1193 = vpop.f32.mrf.mxu0
    %1194 = vmatprep.mubr.f32.mxu0 0.0
    %1195 = vmatmul.mubr.f32.gmra.mxu0 %v1055
    %v1196 = vpop.f32.mrf.mxu0
    %v1197 = vadd.f32 0.0, %v1196
    %v1198 = vpop.f32.mrf.mxu0
    %1199 = vmatprep.mubr.f32.mxu0 0.0
    %1200 = vmatmul.mubr.f32.gmra.mxu0 %v1058
    %v1201 = vpop.f32.mrf.mxu0
    %v1202 = vadd.f32 0.0, %v1201
    %v1203 = vpop.f32.mrf.mxu0
    %1204 = vmatprep.mubr.f32.mxu0 0.0
    %1205 = vmatmul.mubr.f32.gmra.mxu0 %v1061
    %v1206 = vpop.f32.mrf.mxu0
    %v1207 = vadd.f32 0.0, %v1206
    %v1208 = vpop.f32.mrf.mxu0
    %1209 = vmatprep.mubr.f32.mxu0 0.0
    %1210 = vmatmul.mubr.f32.gmra.mxu0 %v1064
    %v1211 = vpop.f32.mrf.mxu0
    %v1212 = vadd.f32 0.0, %v1211
    %v1213 = vpop.f32.mrf.mxu0
    %1214 = vdwg.mxu0
    %v1216 = vsel %vm1017, %v779, 0
    %v1219 = vsel %vm1017, %v784, 0
    %v1222 = vsel %vm1017, %v789, 0
    %v1225 = vsel %vm1017, %v794, 0
    %v1228 = vsel %vm1017, %v799, 0
    %v1231 = vsel %vm1017, %v804, 0
    %v1234 = vsel %vm1017, %v809, 0
    %v1237 = vsel %vm1017, %v814, 0
    %v1240 = vsel %vm1017, %v819, 0
    %v1243 = vsel %vm1017, %v824, 0
    %v1246 = vsel %vm1017, %v829, 0
    %v1249 = vsel %vm1017, %v834, 0
    %v1252 = vsel %vm1017, %v839, 0
    %v1255 = vsel %vm1017, %v844, 0
    %v1258 = vsel %vm1017, %v849, 0
    %v1261 = vsel %vm1017, %v854, 0
    %v1264 = vsel %vm1066, %v184, 0
    %1266 = vmatprep.subr.mxu0 0.0
    %1267 = vmatpush1.msra.mxu0 0.0
    %1268 = vmatprep.subr.mxu0 0.0
    %1269 = vmatpush1.msra.mxu0 0.0
    %1270 = vmatprep.subr.mxu0 0.0
    %1271 = vmatpush1.msra.mxu0 0.0
    %1272 = vmatprep.subr.mxu0 0.0
    %1273 = vmatpush1.msra.mxu0 0.0
    %1274 = vmatprep.subr.mxu0 0.0
    %1275 = vmatpush1.msra.mxu0 0.0
    %1276 = vmatprep.subr.mxu0 0.0
    %1277 = vmatpush1.msra.mxu0 0.0
    %1278 = vmatprep.subr.mxu0 0.0
    %1279 = vmatpush1.msra.mxu0 0.0
    %1280 = vmatprep.subr.mxu0 0.0
    %1281 = vmatpush1.msra.mxu0 0.0
    %1282 = vmatprep.subr.mxu0 0.0
    %1283 = vmatpush1.msra.mxu0 0.0
    %1284 = vmatprep.subr.mxu0 0.0
    %1285 = vmatpush1.msra.mxu0 0.0
    %1286 = vmatprep.subr.mxu0 0.0
    %1287 = vmatpush1.msra.mxu0 0.0
    %1288 = vmatprep.subr.mxu0 0.0
    %1289 = vmatpush1.msra.mxu0 0.0
    %1290 = vmatprep.subr.mxu0 0.0
    %1291 = vmatpush1.msra.mxu0 0.0
    %1292 = vmatprep.subr.mxu0 0.0
    %1293 = vmatpush1.msra.mxu0 %v1264
    %1294 = vmatprep.subr.mxu0 0.0
    %1295 = vmatpush1.msra.mxu0 %v183
    %1296 = vmatprep.subr.mxu0 0.0
    %1297 = vmatpush1.msra.mxu0 %v182
    %1298 = vmatprep.subr.mxu0 0.0
    %1299 = vmatpush2.msra.mxu0 0.0
    %1300 = vmatprep.subr.mxu0 0.0
    %1301 = vmatpush2.msra.mxu0 0.0
    %1302 = vmatprep.subr.mxu0 0.0
    %1303 = vmatpush2.msra.mxu0 0.0
    %1304 = vmatprep.subr.mxu0 0.0
    %1305 = vmatpush2.msra.mxu0 0.0
    %1306 = vmatprep.subr.mxu0 0.0
    %1307 = vmatpush2.msra.mxu0 0.0
    %1308 = vmatprep.subr.mxu0 0.0
    %1309 = vmatpush2.msra.mxu0 0.0
    %1310 = vmatprep.subr.mxu0 0.0
    %1311 = vmatpush2.msra.mxu0 0.0
    %1312 = vmatprep.subr.mxu0 0.0
    %1313 = vmatpush2.msra.mxu0 0.0
    %1314 = vmatprep.subr.mxu0 0.0
    %1315 = vmatpush2.msra.mxu0 0.0
    %1316 = vmatprep.subr.mxu0 0.0
    %1317 = vmatpush2.msra.mxu0 0.0
    %1318 = vmatprep.subr.mxu0 0.0
    %1319 = vmatpush2.msra.mxu0 0.0
    %1320 = vmatprep.subr.mxu0 0.0
    %1321 = vmatpush2.msra.mxu0 0.0
    %1322 = vmatprep.subr.mxu0 0.0
    %1323 = vmatpush2.msra.mxu0 0.0
    %1324 = vmatprep.subr.mxu0 0.0
    %1325 = vmatpush2.msra.mxu0 0.0
    %1326 = vmatprep.subr.mxu0 0.0
    %1327 = vmatpush2.msra.mxu0 0.0
    %1328 = vmatprep.subr.mxu0 0.0
    %1329 = vmatpush2.msra.mxu0 0.0
    %1330 = vmatprep.mubr.f32.mxu0 0.0
    %1331 = vmatmul.mubr.f32.gmra.mxu0 %v1216
    %v1332 = vpop.f32.mrf.mxu0
    %v1333 = vadd.f32 %v1137, %v1332
    %v1334 = vpop.f32.mrf.mxu0
    %1335 = vmatprep.mubr.f32.mxu0 0.0
    %1336 = vmatmul.mubr.f32.gmra.mxu0 %v1219
    %v1337 = vpop.f32.mrf.mxu0
    %v1338 = vadd.f32 %v1142, %v1337
    %v1339 = vpop.f32.mrf.mxu0
    %1340 = vmatprep.mubr.f32.mxu0 0.0
    %1341 = vmatmul.mubr.f32.gmra.mxu0 %v1222
    %v1342 = vpop.f32.mrf.mxu0
    %v1343 = vadd.f32 %v1147, %v1342
    %v1344 = vpop.f32.mrf.mxu0
    %1345 = vmatprep.mubr.f32.mxu0 0.0
    %1346 = vmatmul.mubr.f32.gmra.mxu0 %v1225
    %v1347 = vpop.f32.mrf.mxu0
    %v1348 = vadd.f32 %v1152, %v1347
    %v1349 = vpop.f32.mrf.mxu0
    %1350 = vmatprep.mubr.f32.mxu0 0.0
    %1351 = vmatmul.mubr.f32.gmra.mxu0 %v1228
    %v1352 = vpop.f32.mrf.mxu0
    %v1353 = vadd.f32 %v1157, %v1352
    %v1354 = vpop.f32.mrf.mxu0
    %1355 = vmatprep.mubr.f32.mxu0 0.0
    %1356 = vmatmul.mubr.f32.gmra.mxu0 %v1231
    %v1357 = vpop.f32.mrf.mxu0
    %v1358 = vadd.f32 %v1162, %v1357
    %v1359 = vpop.f32.mrf.mxu0
    %1360 = vmatprep.mubr.f32.mxu0 0.0
    %1361 = vmatmul.mubr.f32.gmra.mxu0 %v1234
    %v1362 = vpop.f32.mrf.mxu0
    %v1363 = vadd.f32 %v1167, %v1362
    %v1364 = vpop.f32.mrf.mxu0
    %1365 = vmatprep.mubr.f32.mxu0 0.0
    %1366 = vmatmul.mubr.f32.gmra.mxu0 %v1237
    %v1367 = vpop.f32.mrf.mxu0
    %v1368 = vadd.f32 %v1172, %v1367
    %v1369 = vpop.f32.mrf.mxu0
    %1370 = vmatprep.mubr.f32.mxu0 0.0
    %1371 = vmatmul.mubr.f32.gmra.mxu0 %v1240
    %v1372 = vpop.f32.mrf.mxu0
    %v1373 = vadd.f32 %v1177, %v1372
    %v1374 = vpop.f32.mrf.mxu0
    %1375 = vmatprep.mubr.f32.mxu0 0.0
    %1376 = vmatmul.mubr.f32.gmra.mxu0 %v1243
    %v1377 = vpop.f32.mrf.mxu0
    %v1378 = vadd.f32 %v1182, %v1377
    %v1379 = vpop.f32.mrf.mxu0
    %1380 = vmatprep.mubr.f32.mxu0 0.0
    %1381 = vmatmul.mubr.f32.gmra.mxu0 %v1246
    %v1382 = vpop.f32.mrf.mxu0
    %v1383 = vadd.f32 %v1187, %v1382
    %v1384 = vpop.f32.mrf.mxu0
    %1385 = vmatprep.mubr.f32.mxu0 0.0
    %1386 = vmatmul.mubr.f32.gmra.mxu0 %v1249
    %v1387 = vpop.f32.mrf.mxu0
    %v1388 = vadd.f32 %v1192, %v1387
    %v1389 = vpop.f32.mrf.mxu0
    %1390 = vmatprep.mubr.f32.mxu0 0.0
    %1391 = vmatmul.mubr.f32.gmra.mxu0 %v1252
    %v1392 = vpop.f32.mrf.mxu0
    %v1393 = vadd.f32 %v1197, %v1392
    %v1394 = vpop.f32.mrf.mxu0
    %1395 = vmatprep.mubr.f32.mxu0 0.0
    %1396 = vmatmul.mubr.f32.gmra.mxu0 %v1255
    %v1397 = vpop.f32.mrf.mxu0
    %v1398 = vadd.f32 %v1202, %v1397
    %v1399 = vpop.f32.mrf.mxu0
    %1400 = vmatprep.mubr.f32.mxu0 0.0
    %1401 = vmatmul.mubr.f32.gmra.mxu0 %v1258
    %v1402 = vpop.f32.mrf.mxu0
    %v1403 = vadd.f32 %v1207, %v1402
    %v1404 = vpop.f32.mrf.mxu0
    %1405 = vmatprep.mubr.f32.mxu0 0.0
    %1406 = vmatmul.mubr.f32.gmra.mxu0 %v1261
    %v1407 = vpop.f32.mrf.mxu0
    %v1408 = vadd.f32 %v1212, %v1407
    %v1409 = vpop.f32.mrf.mxu0
    %1410 = vdwg.mxu0
    %v1412 = vsel %vm1017, %v939, 0
    %v1415 = vsel %vm1017, %v944, 0
    %v1418 = vsel %vm1017, %v949, 0
    %v1421 = vsel %vm1017, %v954, 0
    %v1424 = vsel %vm1017, %v959, 0
    %v1427 = vsel %vm1017, %v964, 0
    %v1430 = vsel %vm1017, %v969, 0
    %v1433 = vsel %vm1017, %v974, 0
    %v1436 = vsel %vm1017, %v979, 0
    %v1439 = vsel %vm1017, %v984, 0
    %v1442 = vsel %vm1017, %v989, 0
    %v1445 = vsel %vm1017, %v994, 0
    %v1448 = vsel %vm1017, %v999, 0
    %v1451 = vsel %vm1017, %v1004, 0
    %v1454 = vsel %vm1017, %v1009, 0
    %v1457 = vsel %vm1017, %v1014, 0
    %v1460 = vsel %vm1066, %v190, 0
    %1462 = vmatprep.subr.mxu0 0.0
    %1463 = vmatpush1.msra.mxu0 0.0
    %1464 = vmatprep.subr.mxu0 0.0
    %1465 = vmatpush1.msra.mxu0 0.0
    %1466 = vmatprep.subr.mxu0 0.0
    %1467 = vmatpush1.msra.mxu0 0.0
    %1468 = vmatprep.subr.mxu0 0.0
    %1469 = vmatpush1.msra.mxu0 0.0
    %1470 = vmatprep.subr.mxu0 0.0
    %1471 = vmatpush1.msra.mxu0 0.0
    %1472 = vmatprep.subr.mxu0 0.0
    %1473 = vmatpush1.msra.mxu0 0.0
    %1474 = vmatprep.subr.mxu0 0.0
    %1475 = vmatpush1.msra.mxu0 0.0
    %1476 = vmatprep.subr.mxu0 0.0
    %1477 = vmatpush1.msra.mxu0 0.0
    %1478 = vmatprep.subr.mxu0 0.0
    %1479 = vmatpush1.msra.mxu0 0.0
    %1480 = vmatprep.subr.mxu0 0.0
    %1481 = vmatpush1.msra.mxu0 0.0
    %1482 = vmatprep.subr.mxu0 0.0
    %1483 = vmatpush1.msra.mxu0 0.0
    %1484 = vmatprep.subr.mxu0 0.0
    %1485 = vmatpush1.msra.mxu0 0.0
    %1486 = vmatprep.subr.mxu0 0.0
    %1487 = vmatpush1.msra.mxu0 0.0
    %1488 = vmatprep.subr.mxu0 0.0
    %1489 = vmatpush1.msra.mxu0 %v1460
    %1490 = vmatprep.subr.mxu0 0.0
    %1491 = vmatpush1.msra.mxu0 %v189
    %1492 = vmatprep.subr.mxu0 0.0
    %1493 = vmatpush1.msra.mxu0 %v188
    %1494 = vmatprep.subr.mxu0 0.0
    %1495 = vmatpush2.msra.mxu0 0.0
    %1496 = vmatprep.subr.mxu0 0.0
    %1497 = vmatpush2.msra.mxu0 0.0
    %1498 = vmatprep.subr.mxu0 0.0
    %1499 = vmatpush2.msra.mxu0 0.0
    %1500 = vmatprep.subr.mxu0 0.0
    %1501 = vmatpush2.msra.mxu0 0.0
    %1502 = vmatprep.subr.mxu0 0.0
    %1503 = vmatpush2.msra.mxu0 0.0
    %1504 = vmatprep.subr.mxu0 0.0
    %1505 = vmatpush2.msra.mxu0 0.0
    %1506 = vmatprep.subr.mxu0 0.0
    %1507 = vmatpush2.msra.mxu0 0.0
    %1508 = vmatprep.subr.mxu0 0.0
    %1509 = vmatpush2.msra.mxu0 0.0
    %1510 = vmatprep.subr.mxu0 0.0
    %1511 = vmatpush2.msra.mxu0 0.0
    %1512 = vmatprep.subr.mxu0 0.0
    %1513 = vmatpush2.msra.mxu0 0.0
    %1514 = vmatprep.subr.mxu0 0.0
    %1515 = vmatpush2.msra.mxu0 0.0
    %1516 = vmatprep.subr.mxu0 0.0
    %1517 = vmatpush2.msra.mxu0 0.0
    %1518 = vmatprep.subr.mxu0 0.0
    %1519 = vmatpush2.msra.mxu0 0.0
    %1520 = vmatprep.subr.mxu0 0.0
    %1521 = vmatpush2.msra.mxu0 0.0
    %1522 = vmatprep.subr.mxu0 0.0
    %1523 = vmatpush2.msra.mxu0 0.0
    %1524 = vmatprep.subr.mxu0 0.0
    %1525 = vmatpush2.msra.mxu0 0.0
    %1526 = vmatprep.mubr.f32.mxu0 0.0
    %1527 = vmatmul.mubr.f32.gmra.mxu0 %v1412
    %v1528 = vpop.f32.mrf.mxu0
    %v1529 = vadd.f32 0.0, %v1528
    %v1530 = vpop.f32.mrf.mxu0
    %1531 = vmatprep.mubr.f32.mxu0 0.0
    %1532 = vmatmul.mubr.f32.gmra.mxu0 %v1415
    %v1533 = vpop.f32.mrf.mxu0
    %v1534 = vadd.f32 0.0, %v1533
    %v1535 = vpop.f32.mrf.mxu0
    %1536 = vmatprep.mubr.f32.mxu0 0.0
    %1537 = vmatmul.mubr.f32.gmra.mxu0 %v1418
    %v1538 = vpop.f32.mrf.mxu0
    %v1539 = vadd.f32 0.0, %v1538
    %v1540 = vpop.f32.mrf.mxu0
    %1541 = vmatprep.mubr.f32.mxu0 0.0
    %1542 = vmatmul.mubr.f32.gmra.mxu0 %v1421
    %v1543 = vpop.f32.mrf.mxu0
    %v1544 = vadd.f32 0.0, %v1543
    %v1545 = vpop.f32.mrf.mxu0
    %1546 = vmatprep.mubr.f32.mxu0 0.0
    %1547 = vmatmul.mubr.f32.gmra.mxu0 %v1424
    %v1548 = vpop.f32.mrf.mxu0
    %v1549 = vadd.f32 0.0, %v1548
    %v1550 = vpop.f32.mrf.mxu0
    %1551 = vmatprep.mubr.f32.mxu0 0.0
    %1552 = vmatmul.mubr.f32.gmra.mxu0 %v1427
    %v1553 = vpop.f32.mrf.mxu0
    %v1554 = vadd.f32 0.0, %v1553
    %v1555 = vpop.f32.mrf.mxu0
    %1556 = vmatprep.mubr.f32.mxu0 0.0
    %1557 = vmatmul.mubr.f32.gmra.mxu0 %v1430
    %v1558 = vpop.f32.mrf.mxu0
    %v1559 = vadd.f32 0.0, %v1558
    %v1560 = vpop.f32.mrf.mxu0
    %1561 = vmatprep.mubr.f32.mxu0 0.0
    %1562 = vmatmul.mubr.f32.gmra.mxu0 %v1433
    %v1563 = vpop.f32.mrf.mxu0
    %v1564 = vadd.f32 0.0, %v1563
    %v1565 = vpop.f32.mrf.mxu0
    %1566 = vmatprep.mubr.f32.mxu0 0.0
    %1567 = vmatmul.mubr.f32.gmra.mxu0 %v1436
    %v1568 = vpop.f32.mrf.mxu0
    %v1569 = vadd.f32 0.0, %v1568
    %v1570 = vpop.f32.mrf.mxu0
    %1571 = vmatprep.mubr.f32.mxu0 0.0
    %1572 = vmatmul.mubr.f32.gmra.mxu0 %v1439
    %v1573 = vpop.f32.mrf.mxu0
    %v1574 = vadd.f32 0.0, %v1573
    %v1575 = vpop.f32.mrf.mxu0
    %1576 = vmatprep.mubr.f32.mxu0 0.0
    %1577 = vmatmul.mubr.f32.gmra.mxu0 %v1442
    %v1578 = vpop.f32.mrf.mxu0
    %v1579 = vadd.f32 0.0, %v1578
    %v1580 = vpop.f32.mrf.mxu0
    %1581 = vmatprep.mubr.f32.mxu0 0.0
    %1582 = vmatmul.mubr.f32.gmra.mxu0 %v1445
    %v1583 = vpop.f32.mrf.mxu0
    %v1584 = vadd.f32 0.0, %v1583
    %v1585 = vpop.f32.mrf.mxu0
    %1586 = vmatprep.mubr.f32.mxu0 0.0
    %1587 = vmatmul.mubr.f32.gmra.mxu0 %v1448
    %v1588 = vpop.f32.mrf.mxu0
    %v1589 = vadd.f32 0.0, %v1588
    %v1590 = vpop.f32.mrf.mxu0
    %1591 = vmatprep.mubr.f32.mxu0 0.0
    %1592 = vmatmul.mubr.f32.gmra.mxu0 %v1451
    %v1593 = vpop.f32.mrf.mxu0
    %v1594 = vadd.f32 0.0, %v1593
    %v1595 = vpop.f32.mrf.mxu0
    %1596 = vmatprep.mubr.f32.mxu0 0.0
    %1597 = vmatmul.mubr.f32.gmra.mxu0 %v1454
    %v1598 = vpop.f32.mrf.mxu0
    %v1599 = vadd.f32 0.0, %v1598
    %v1600 = vpop.f32.mrf.mxu0
    %1601 = vmatprep.mubr.f32.mxu0 0.0
    %1602 = vmatmul.mubr.f32.gmra.mxu0 %v1457
    %v1603 = vpop.f32.mrf.mxu0
    %v1604 = vadd.f32 0.0, %v1603
    %v1605 = vpop.f32.mrf.mxu0
    %1606 = vdwg.mxu0
    %v1607 = vadd.f32 %v1333, %v1529
    %v1608 = vadd.f32 %v1338, %v1534
    %v1609 = vadd.f32 %v1343, %v1539
    %v1610 = vadd.f32 %v1348, %v1544
    %v1611 = vadd.f32 %v1353, %v1549
    %v1612 = vadd.f32 %v1358, %v1554
    %v1613 = vadd.f32 %v1363, %v1559
    %v1614 = vadd.f32 %v1368, %v1564
    %v1615 = vadd.f32 %v1373, %v1569
    %v1616 = vadd.f32 %v1378, %v1574
    %v1617 = vadd.f32 %v1383, %v1579
    %v1618 = vadd.f32 %v1388, %v1584
    %v1619 = vadd.f32 %v1393, %v1589
    %v1620 = vadd.f32 %v1398, %v1594
    %v1621 = vadd.f32 %v1403, %v1599
    %v1622 = vadd.f32 %v1408, %v1604
    %1623 = vmatprep.subr.mxu0 0.0
    %1624 = vmatpush1.msra.mxu0 %v629
    %1625 = vmatprep.subr.mxu0 0.0
    %1626 = vmatpush1.msra.mxu0 %v624
    %1627 = vmatprep.subr.mxu0 0.0
    %1628 = vmatpush1.msra.mxu0 %v619
    %1629 = vmatprep.subr.mxu0 0.0
    %1630 = vmatpush1.msra.mxu0 %v614
    %1631 = vmatprep.subr.mxu0 0.0
    %1632 = vmatpush1.msra.mxu0 %v609
    %1633 = vmatprep.subr.mxu0 0.0
    %1634 = vmatpush1.msra.mxu0 %v604
    %1635 = vmatprep.subr.mxu0 0.0
    %1636 = vmatpush1.msra.mxu0 %v599
    %1637 = vmatprep.subr.mxu0 0.0
    %1638 = vmatpush1.msra.mxu0 %v594
    %1639 = vmatprep.subr.mxu0 0.0
    %1640 = vmatpush1.msra.mxu0 %v589
    %1641 = vmatprep.subr.mxu0 0.0
    %1642 = vmatpush1.msra.mxu0 %v584
    %1643 = vmatprep.subr.mxu0 0.0
    %1644 = vmatpush1.msra.mxu0 %v579
    %1645 = vmatprep.subr.mxu0 0.0
    %1646 = vmatpush1.msra.mxu0 %v574
    %1647 = vmatprep.subr.mxu0 0.0
    %1648 = vmatpush1.msra.mxu0 %v569
    %1649 = vmatprep.subr.mxu0 0.0
    %1650 = vmatpush1.msra.mxu0 %v564
    %1651 = vmatprep.subr.mxu0 0.0
    %1652 = vmatpush1.msra.mxu0 %v559
    %1653 = vmatprep.subr.mxu0 0.0
    %1654 = vmatpush1.msra.mxu0 %v554
    %1655 = vmatprep.subr.mxu0 0.0
    %1656 = vmatpush2.msra.mxu0 0.0
    %1657 = vmatprep.subr.mxu0 0.0
    %1658 = vmatpush2.msra.mxu0 0.0
    %1659 = vmatprep.subr.mxu0 0.0
    %1660 = vmatpush2.msra.mxu0 0.0
    %1661 = vmatprep.subr.mxu0 0.0
    %1662 = vmatpush2.msra.mxu0 0.0
    %1663 = vmatprep.subr.mxu0 0.0
    %1664 = vmatpush2.msra.mxu0 0.0
    %1665 = vmatprep.subr.mxu0 0.0
    %1666 = vmatpush2.msra.mxu0 0.0
    %1667 = vmatprep.subr.mxu0 0.0
    %1668 = vmatpush2.msra.mxu0 0.0
    %1669 = vmatprep.subr.mxu0 0.0
    %1670 = vmatpush2.msra.mxu0 0.0
    %1671 = vmatprep.subr.mxu0 0.0
    %1672 = vmatpush2.msra.mxu0 0.0
    %1673 = vmatprep.subr.mxu0 0.0
    %1674 = vmatpush2.msra.mxu0 0.0
    %1675 = vmatprep.subr.mxu0 0.0
    %1676 = vmatpush2.msra.mxu0 0.0
    %1677 = vmatprep.subr.mxu0 0.0
    %1678 = vmatpush2.msra.mxu0 0.0
    %1679 = vmatprep.subr.mxu0 0.0
    %1680 = vmatpush2.msra.mxu0 0.0
    %1681 = vmatprep.subr.mxu0 0.0
    %1682 = vmatpush2.msra.mxu0 0.0
    %1683 = vmatprep.subr.mxu0 0.0
    %1684 = vmatpush2.msra.mxu0 0.0
    %1685 = vmatprep.subr.mxu0 0.0
    %1686 = vmatpush2.msra.mxu0 0.0
    %1687 = vmatprep.mubr.f32.mxu0 0.0
    %1688 = vmatmul.mubr.f32.gmra.mxu0 %v150
    %v1689 = vpop.f32.mrf.mxu0
    %v1690 = vadd.f32 0.0, %v1689
    %v1691 = vpop.f32.mrf.mxu0
    %1692 = vmatprep.mubr.f32.mxu0 0.0
    %1693 = vmatmul.mubr.f32.gmra.mxu0 %v151
    %v1694 = vpop.f32.mrf.mxu0
    %v1695 = vadd.f32 0.0, %v1694
    %v1696 = vpop.f32.mrf.mxu0
    %1697 = vmatprep.mubr.f32.mxu0 0.0
    %1698 = vmatmul.mubr.f32.gmra.mxu0 %v152
    %v1699 = vpop.f32.mrf.mxu0
    %v1700 = vadd.f32 0.0, %v1699
    %v1701 = vpop.f32.mrf.mxu0
    %1702 = vmatprep.mubr.f32.mxu0 0.0
    %1703 = vmatmul.mubr.f32.gmra.mxu0 %v153
    %v1704 = vpop.f32.mrf.mxu0
    %v1705 = vadd.f32 0.0, %v1704
    %v1706 = vpop.f32.mrf.mxu0
    %1707 = vmatprep.mubr.f32.mxu0 0.0
    %1708 = vmatmul.mubr.f32.gmra.mxu0 %v154
    %v1709 = vpop.f32.mrf.mxu0
    %v1710 = vadd.f32 0.0, %v1709
    %v1711 = vpop.f32.mrf.mxu0
    %1712 = vmatprep.mubr.f32.mxu0 0.0
    %1713 = vmatmul.mubr.f32.gmra.mxu0 %v155
    %v1714 = vpop.f32.mrf.mxu0
    %v1715 = vadd.f32 0.0, %v1714
    %v1716 = vpop.f32.mrf.mxu0
    %1717 = vmatprep.mubr.f32.mxu0 0.0
    %1718 = vmatmul.mubr.f32.gmra.mxu0 %v156
    %v1719 = vpop.f32.mrf.mxu0
    %v1720 = vadd.f32 0.0, %v1719
    %v1721 = vpop.f32.mrf.mxu0
    %1722 = vmatprep.mubr.f32.mxu0 0.0
    %1723 = vmatmul.mubr.f32.gmra.mxu0 %v157
    %v1724 = vpop.f32.mrf.mxu0
    %v1725 = vadd.f32 0.0, %v1724
    %v1726 = vpop.f32.mrf.mxu0
    %1727 = vmatprep.mubr.f32.mxu0 0.0
    %1728 = vmatmul.mubr.f32.gmra.mxu0 %v158
    %v1729 = vpop.f32.mrf.mxu0
    %v1730 = vadd.f32 0.0, %v1729
    %v1731 = vpop.f32.mrf.mxu0
    %1732 = vmatprep.mubr.f32.mxu0 0.0
    %1733 = vmatmul.mubr.f32.gmra.mxu0 %v159
    %v1734 = vpop.f32.mrf.mxu0
    %v1735 = vadd.f32 0.0, %v1734
    %v1736 = vpop.f32.mrf.mxu0
    %1737 = vmatprep.mubr.f32.mxu0 0.0
    %1738 = vmatmul.mubr.f32.gmra.mxu0 %v160
    %v1739 = vpop.f32.mrf.mxu0
    %v1740 = vadd.f32 0.0, %v1739
    %v1741 = vpop.f32.mrf.mxu0
    %1742 = vmatprep.mubr.f32.mxu0 0.0
    %1743 = vmatmul.mubr.f32.gmra.mxu0 %v161
    %v1744 = vpop.f32.mrf.mxu0
    %v1745 = vadd.f32 0.0, %v1744
    %v1746 = vpop.f32.mrf.mxu0
    %1747 = vmatprep.mubr.f32.mxu0 0.0
    %1748 = vmatmul.mubr.f32.gmra.mxu0 %v162
    %v1749 = vpop.f32.mrf.mxu0
    %v1750 = vadd.f32 0.0, %v1749
    %v1751 = vpop.f32.mrf.mxu0
    %1752 = vmatprep.mubr.f32.mxu0 0.0
    %1753 = vmatmul.mubr.f32.gmra.mxu0 %v163
    %v1754 = vpop.f32.mrf.mxu0
    %v1755 = vadd.f32 0.0, %v1754
    %v1756 = vpop.f32.mrf.mxu0
    %1757 = vmatprep.mubr.f32.mxu0 0.0
    %1758 = vmatmul.mubr.f32.gmra.mxu0 %v164
    %v1759 = vpop.f32.mrf.mxu0
    %v1760 = vadd.f32 0.0, %v1759
    %v1761 = vpop.f32.mrf.mxu0
    %1762 = vmatprep.mubr.f32.mxu0 0.0
    %1763 = vmatmul.mubr.f32.gmra.mxu0 %v165
    %v1764 = vpop.f32.mrf.mxu0
    %v1765 = vadd.f32 0.0, %v1764
    %v1766 = vpop.f32.mrf.mxu0
    %1767 = vdwg.mxu0
    %1768 = vmatprep.subr.mxu0 0.0
    %1769 = vmatpush1.msra.mxu0 %v484
    %1770 = vmatprep.subr.mxu0 0.0
    %1771 = vmatpush1.msra.mxu0 %v479
    %1772 = vmatprep.subr.mxu0 0.0
    %1773 = vmatpush1.msra.mxu0 %v474
    %1774 = vmatprep.subr.mxu0 0.0
    %1775 = vmatpush1.msra.mxu0 %v469
    %1776 = vmatprep.subr.mxu0 0.0
    %1777 = vmatpush1.msra.mxu0 %v464
    %1778 = vmatprep.subr.mxu0 0.0
    %1779 = vmatpush1.msra.mxu0 %v459
    %1780 = vmatprep.subr.mxu0 0.0
    %1781 = vmatpush1.msra.mxu0 %v454
    %1782 = vmatprep.subr.mxu0 0.0
    %1783 = vmatpush1.msra.mxu0 %v449
    %1784 = vmatprep.subr.mxu0 0.0
    %1785 = vmatpush1.msra.mxu0 %v444
    %1786 = vmatprep.subr.mxu0 0.0
    %1787 = vmatpush1.msra.mxu0 %v439
    %1788 = vmatprep.subr.mxu0 0.0
    %1789 = vmatpush1.msra.mxu0 %v434
    %1790 = vmatprep.subr.mxu0 0.0
    %1791 = vmatpush1.msra.mxu0 %v429
    %1792 = vmatprep.subr.mxu0 0.0
    %1793 = vmatpush1.msra.mxu0 %v424
    %1794 = vmatprep.subr.mxu0 0.0
    %1795 = vmatpush1.msra.mxu0 %v419
    %1796 = vmatprep.subr.mxu0 0.0
    %1797 = vmatpush1.msra.mxu0 %v414
    %1798 = vmatprep.subr.mxu0 0.0
    %1799 = vmatpush1.msra.mxu0 %v409
    %1800 = vmatprep.subr.mxu0 0.0
    %1801 = vmatpush2.msra.mxu0 0.0
    %1802 = vmatprep.subr.mxu0 0.0
    %1803 = vmatpush2.msra.mxu0 0.0
    %1804 = vmatprep.subr.mxu0 0.0
    %1805 = vmatpush2.msra.mxu0 0.0
    %1806 = vmatprep.subr.mxu0 0.0
    %1807 = vmatpush2.msra.mxu0 0.0
    %1808 = vmatprep.subr.mxu0 0.0
    %1809 = vmatpush2.msra.mxu0 0.0
    %1810 = vmatprep.subr.mxu0 0.0
    %1811 = vmatpush2.msra.mxu0 0.0
    %1812 = vmatprep.subr.mxu0 0.0
    %1813 = vmatpush2.msra.mxu0 0.0
    %1814 = vmatprep.subr.mxu0 0.0
    %1815 = vmatpush2.msra.mxu0 0.0
    %1816 = vmatprep.subr.mxu0 0.0
    %1817 = vmatpush2.msra.mxu0 0.0
    %1818 = vmatprep.subr.mxu0 0.0
    %1819 = vmatpush2.msra.mxu0 0.0
    %1820 = vmatprep.subr.mxu0 0.0
    %1821 = vmatpush2.msra.mxu0 0.0
    %1822 = vmatprep.subr.mxu0 0.0
    %1823 = vmatpush2.msra.mxu0 0.0
    %1824 = vmatprep.subr.mxu0 0.0
    %1825 = vmatpush2.msra.mxu0 0.0
    %1826 = vmatprep.subr.mxu0 0.0
    %1827 = vmatpush2.msra.mxu0 0.0
    %1828 = vmatprep.subr.mxu0 0.0
    %1829 = vmatpush2.msra.mxu0 0.0
    %1830 = vmatprep.subr.mxu0 0.0
    %1831 = vmatpush2.msra.mxu0 0.0
    %1832 = vmatprep.mubr.f32.mxu0 0.0
    %1833 = vmatmul.mubr.f32.gmra.mxu0 %v134
    %v1834 = vpop.f32.mrf.mxu0
    %v1835 = vadd.f32 0.0, %v1834
    %v1836 = vpop.f32.mrf.mxu0
    %1837 = vmatprep.mubr.f32.mxu0 0.0
    %1838 = vmatmul.mubr.f32.gmra.mxu0 %v135
    %v1839 = vpop.f32.mrf.mxu0
    %v1840 = vadd.f32 0.0, %v1839
    %v1841 = vpop.f32.mrf.mxu0
    %1842 = vmatprep.mubr.f32.mxu0 0.0
    %1843 = vmatmul.mubr.f32.gmra.mxu0 %v136
    %v1844 = vpop.f32.mrf.mxu0
    %v1845 = vadd.f32 0.0, %v1844
    %v1846 = vpop.f32.mrf.mxu0
    %1847 = vmatprep.mubr.f32.mxu0 0.0
    %1848 = vmatmul.mubr.f32.gmra.mxu0 %v137
    %v1849 = vpop.f32.mrf.mxu0
    %v1850 = vadd.f32 0.0, %v1849
    %v1851 = vpop.f32.mrf.mxu0
    %1852 = vmatprep.mubr.f32.mxu0 0.0
    %1853 = vmatmul.mubr.f32.gmra.mxu0 %v138
    %v1854 = vpop.f32.mrf.mxu0
    %v1855 = vadd.f32 0.0, %v1854
    %v1856 = vpop.f32.mrf.mxu0
    %1857 = vmatprep.mubr.f32.mxu0 0.0
    %1858 = vmatmul.mubr.f32.gmra.mxu0 %v139
    %v1859 = vpop.f32.mrf.mxu0
    %v1860 = vadd.f32 0.0, %v1859
    %v1861 = vpop.f32.mrf.mxu0
    %1862 = vmatprep.mubr.f32.mxu0 0.0
    %1863 = vmatmul.mubr.f32.gmra.mxu0 %v140
    %v1864 = vpop.f32.mrf.mxu0
    %v1865 = vadd.f32 0.0, %v1864
    %v1866 = vpop.f32.mrf.mxu0
    %1867 = vmatprep.mubr.f32.mxu0 0.0
    %1868 = vmatmul.mubr.f32.gmra.mxu0 %v141
    %v1869 = vpop.f32.mrf.mxu0
    %v1870 = vadd.f32 0.0, %v1869
    %v1871 = vpop.f32.mrf.mxu0
    %1872 = vmatprep.mubr.f32.mxu0 0.0
    %1873 = vmatmul.mubr.f32.gmra.mxu0 %v142
    %v1874 = vpop.f32.mrf.mxu0
    %v1875 = vadd.f32 0.0, %v1874
    %v1876 = vpop.f32.mrf.mxu0
    %1877 = vmatprep.mubr.f32.mxu0 0.0
    %1878 = vmatmul.mubr.f32.gmra.mxu0 %v143
    %v1879 = vpop.f32.mrf.mxu0
    %v1880 = vadd.f32 0.0, %v1879
    %v1881 = vpop.f32.mrf.mxu0
    %1882 = vmatprep.mubr.f32.mxu0 0.0
    %1883 = vmatmul.mubr.f32.gmra.mxu0 %v144
    %v1884 = vpop.f32.mrf.mxu0
    %v1885 = vadd.f32 0.0, %v1884
    %v1886 = vpop.f32.mrf.mxu0
    %1887 = vmatprep.mubr.f32.mxu0 0.0
    %1888 = vmatmul.mubr.f32.gmra.mxu0 %v145
    %v1889 = vpop.f32.mrf.mxu0
    %v1890 = vadd.f32 0.0, %v1889
    %v1891 = vpop.f32.mrf.mxu0
    %1892 = vmatprep.mubr.f32.mxu0 0.0
    %1893 = vmatmul.mubr.f32.gmra.mxu0 %v146
    %v1894 = vpop.f32.mrf.mxu0
    %v1895 = vadd.f32 0.0, %v1894
    %v1896 = vpop.f32.mrf.mxu0
    %1897 = vmatprep.mubr.f32.mxu0 0.0
    %1898 = vmatmul.mubr.f32.gmra.mxu0 %v147
    %v1899 = vpop.f32.mrf.mxu0
    %v1900 = vadd.f32 0.0, %v1899
    %v1901 = vpop.f32.mrf.mxu0
    %1902 = vmatprep.mubr.f32.mxu0 0.0
    %1903 = vmatmul.mubr.f32.gmra.mxu0 %v148
    %v1904 = vpop.f32.mrf.mxu0
    %v1905 = vadd.f32 0.0, %v1904
    %v1906 = vpop.f32.mrf.mxu0
    %1907 = vmatprep.mubr.f32.mxu0 0.0
    %1908 = vmatmul.mubr.f32.gmra.mxu0 %v149
    %v1909 = vpop.f32.mrf.mxu0
    %v1910 = vadd.f32 0.0, %v1909
    %v1911 = vpop.f32.mrf.mxu0
    %1912 = vmatprep.mubr.f32.mxu0 0.0
    %1913 = vmatmul.mubr.f32.gmra.mxu0 %v150
    %v1914 = vpop.f32.mrf.mxu0
    %v1915 = vadd.f32 0.0, %v1914
    %v1916 = vpop.f32.mrf.mxu0
    %1917 = vmatprep.mubr.f32.mxu0 0.0
    %1918 = vmatmul.mubr.f32.gmra.mxu0 %v151
    %v1919 = vpop.f32.mrf.mxu0
    %v1920 = vadd.f32 0.0, %v1919
    %v1921 = vpop.f32.mrf.mxu0
    %1922 = vmatprep.mubr.f32.mxu0 0.0
    %1923 = vmatmul.mubr.f32.gmra.mxu0 %v152
    %v1924 = vpop.f32.mrf.mxu0
    %v1925 = vadd.f32 0.0, %v1924
    %v1926 = vpop.f32.mrf.mxu0
    %1927 = vmatprep.mubr.f32.mxu0 0.0
    %1928 = vmatmul.mubr.f32.gmra.mxu0 %v153
    %v1929 = vpop.f32.mrf.mxu0
    %v1930 = vadd.f32 0.0, %v1929
    %v1931 = vpop.f32.mrf.mxu0
    %1932 = vmatprep.mubr.f32.mxu0 0.0
    %1933 = vmatmul.mubr.f32.gmra.mxu0 %v154
    %v1934 = vpop.f32.mrf.mxu0
    %v1935 = vadd.f32 0.0, %v1934
    %v1936 = vpop.f32.mrf.mxu0
    %1937 = vmatprep.mubr.f32.mxu0 0.0
    %1938 = vmatmul.mubr.f32.gmra.mxu0 %v155
    %v1939 = vpop.f32.mrf.mxu0
    %v1940 = vadd.f32 0.0, %v1939
    %v1941 = vpop.f32.mrf.mxu0
    %1942 = vmatprep.mubr.f32.mxu0 0.0
    %1943 = vmatmul.mubr.f32.gmra.mxu0 %v156
    %v1944 = vpop.f32.mrf.mxu0
    %v1945 = vadd.f32 0.0, %v1944
    %v1946 = vpop.f32.mrf.mxu0
    %1947 = vmatprep.mubr.f32.mxu0 0.0
    %1948 = vmatmul.mubr.f32.gmra.mxu0 %v157
    %v1949 = vpop.f32.mrf.mxu0
    %v1950 = vadd.f32 0.0, %v1949
    %v1951 = vpop.f32.mrf.mxu0
    %1952 = vmatprep.mubr.f32.mxu0 0.0
    %1953 = vmatmul.mubr.f32.gmra.mxu0 %v158
    %v1954 = vpop.f32.mrf.mxu0
    %v1955 = vadd.f32 0.0, %v1954
    %v1956 = vpop.f32.mrf.mxu0
    %1957 = vmatprep.mubr.f32.mxu0 0.0
    %1958 = vmatmul.mubr.f32.gmra.mxu0 %v159
    %v1959 = vpop.f32.mrf.mxu0
    %v1960 = vadd.f32 0.0, %v1959
    %v1961 = vpop.f32.mrf.mxu0
    %1962 = vmatprep.mubr.f32.mxu0 0.0
    %1963 = vmatmul.mubr.f32.gmra.mxu0 %v160
    %v1964 = vpop.f32.mrf.mxu0
    %v1965 = vadd.f32 0.0, %v1964
    %v1966 = vpop.f32.mrf.mxu0
    %1967 = vmatprep.mubr.f32.mxu0 0.0
    %1968 = vmatmul.mubr.f32.gmra.mxu0 %v161
    %v1969 = vpop.f32.mrf.mxu0
    %v1970 = vadd.f32 0.0, %v1969
    %v1971 = vpop.f32.mrf.mxu0
    %1972 = vmatprep.mubr.f32.mxu0 0.0
    %1973 = vmatmul.mubr.f32.gmra.mxu0 %v162
    %v1974 = vpop.f32.mrf.mxu0
    %v1975 = vadd.f32 0.0, %v1974
    %v1976 = vpop.f32.mrf.mxu0
    %1977 = vmatprep.mubr.f32.mxu0 0.0
    %1978 = vmatmul.mubr.f32.gmra.mxu0 %v163
    %v1979 = vpop.f32.mrf.mxu0
    %v1980 = vadd.f32 0.0, %v1979
    %v1981 = vpop.f32.mrf.mxu0
    %1982 = vmatprep.mubr.f32.mxu0 0.0
    %1983 = vmatmul.mubr.f32.gmra.mxu0 %v164
    %v1984 = vpop.f32.mrf.mxu0
    %v1985 = vadd.f32 0.0, %v1984
    %v1986 = vpop.f32.mrf.mxu0
    %1987 = vmatprep.mubr.f32.mxu0 0.0
    %1988 = vmatmul.mubr.f32.gmra.mxu0 %v165
    %v1989 = vpop.f32.mrf.mxu0
    %v1990 = vadd.f32 0.0, %v1989
    %v1991 = vpop.f32.mrf.mxu0
    %1992 = vmatprep.mubr.f32.mxu0 0.0
    %1993 = vmatmul.mubr.f32.gmra.mxu0 %v166
    %v1994 = vpop.f32.mrf.mxu0
    %v1995 = vadd.f32 0.0, %v1994
    %v1996 = vpop.f32.mrf.mxu0
    %1997 = vmatprep.mubr.f32.mxu0 0.0
    %1998 = vmatmul.mubr.f32.gmra.mxu0 %v167
    %v1999 = vpop.f32.mrf.mxu0
    %v2000 = vadd.f32 0.0, %v1999
    %v2001 = vpop.f32.mrf.mxu0
    %2002 = vmatprep.mubr.f32.mxu0 0.0
    %2003 = vmatmul.mubr.f32.gmra.mxu0 %v168
    %v2004 = vpop.f32.mrf.mxu0
    %v2005 = vadd.f32 0.0, %v2004
    %v2006 = vpop.f32.mrf.mxu0
    %2007 = vmatprep.mubr.f32.mxu0 0.0
    %2008 = vmatmul.mubr.f32.gmra.mxu0 %v169
    %v2009 = vpop.f32.mrf.mxu0
    %v2010 = vadd.f32 0.0, %v2009
    %v2011 = vpop.f32.mrf.mxu0
    %2012 = vmatprep.mubr.f32.mxu0 0.0
    %2013 = vmatmul.mubr.f32.gmra.mxu0 %v170
    %v2014 = vpop.f32.mrf.mxu0
    %v2015 = vadd.f32 0.0, %v2014
    %v2016 = vpop.f32.mrf.mxu0
    %2017 = vmatprep.mubr.f32.mxu0 0.0
    %2018 = vmatmul.mubr.f32.gmra.mxu0 %v171
    %v2019 = vpop.f32.mrf.mxu0
    %v2020 = vadd.f32 0.0, %v2019
    %v2021 = vpop.f32.mrf.mxu0
    %2022 = vmatprep.mubr.f32.mxu0 0.0
    %2023 = vmatmul.mubr.f32.gmra.mxu0 %v172
    %v2024 = vpop.f32.mrf.mxu0
    %v2025 = vadd.f32 0.0, %v2024
    %v2026 = vpop.f32.mrf.mxu0
    %2027 = vmatprep.mubr.f32.mxu0 0.0
    %2028 = vmatmul.mubr.f32.gmra.mxu0 %v173
    %v2029 = vpop.f32.mrf.mxu0
    %v2030 = vadd.f32 0.0, %v2029
    %v2031 = vpop.f32.mrf.mxu0
    %2032 = vmatprep.mubr.f32.mxu0 0.0
    %2033 = vmatmul.mubr.f32.gmra.mxu0 %v174
    %v2034 = vpop.f32.mrf.mxu0
    %v2035 = vadd.f32 0.0, %v2034
    %v2036 = vpop.f32.mrf.mxu0
    %2037 = vmatprep.mubr.f32.mxu0 0.0
    %2038 = vmatmul.mubr.f32.gmra.mxu0 %v175
    %v2039 = vpop.f32.mrf.mxu0
    %v2040 = vadd.f32 0.0, %v2039
    %v2041 = vpop.f32.mrf.mxu0
    %2042 = vmatprep.mubr.f32.mxu0 0.0
    %2043 = vmatmul.mubr.f32.gmra.mxu0 %v176
    %v2044 = vpop.f32.mrf.mxu0
    %v2045 = vadd.f32 0.0, %v2044
    %v2046 = vpop.f32.mrf.mxu0
    %2047 = vmatprep.mubr.f32.mxu0 0.0
    %2048 = vmatmul.mubr.f32.gmra.mxu0 %v177
    %v2049 = vpop.f32.mrf.mxu0
    %v2050 = vadd.f32 0.0, %v2049
    %v2051 = vpop.f32.mrf.mxu0
    %2052 = vmatprep.mubr.f32.mxu0 0.0
    %2053 = vmatmul.mubr.f32.gmra.mxu0 %v178
    %v2054 = vpop.f32.mrf.mxu0
    %v2055 = vadd.f32 0.0, %v2054
    %v2056 = vpop.f32.mrf.mxu0
    %2057 = vmatprep.mubr.f32.mxu0 0.0
    %2058 = vmatmul.mubr.f32.gmra.mxu0 %v179
    %v2059 = vpop.f32.mrf.mxu0
    %v2060 = vadd.f32 0.0, %v2059
    %v2061 = vpop.f32.mrf.mxu0
    %2062 = vmatprep.mubr.f32.mxu0 0.0
    %2063 = vmatmul.mubr.f32.gmra.mxu0 %v180
    %v2064 = vpop.f32.mrf.mxu0
    %v2065 = vadd.f32 0.0, %v2064
    %v2066 = vpop.f32.mrf.mxu0
    %2067 = vmatprep.mubr.f32.mxu0 0.0
    %2068 = vmatmul.mubr.f32.gmra.mxu0 %v181
    %v2069 = vpop.f32.mrf.mxu0
    %v2070 = vadd.f32 0.0, %v2069
    %v2071 = vpop.f32.mrf.mxu0
    %2072 = vdwg.mxu0
    %v2074 = vsel %vm1017, %v1915, 0
    %v2077 = vsel %vm1017, %v1920, 0
    %v2080 = vsel %vm1017, %v1925, 0
    %v2083 = vsel %vm1017, %v1930, 0
    %v2086 = vsel %vm1017, %v1935, 0
    %v2089 = vsel %vm1017, %v1940, 0
    %v2092 = vsel %vm1017, %v1945, 0
    %v2095 = vsel %vm1017, %v1950, 0
    %v2098 = vsel %vm1017, %v1955, 0
    %v2101 = vsel %vm1017, %v1960, 0
    %v2104 = vsel %vm1017, %v1965, 0
    %v2107 = vsel %vm1017, %v1970, 0
    %v2110 = vsel %vm1017, %v1975, 0
    %v2113 = vsel %vm1017, %v1980, 0
    %v2116 = vsel %vm1017, %v1985, 0
    %v2119 = vsel %vm1017, %v1990, 0
    %2121 = vmatprep.subr.mxu0 0.0
    %2122 = vmatpush1.msra.mxu0 0.0
    %2123 = vmatprep.subr.mxu0 0.0
    %2124 = vmatpush1.msra.mxu0 0.0
    %2125 = vmatprep.subr.mxu0 0.0
    %2126 = vmatpush1.msra.mxu0 0.0
    %2127 = vmatprep.subr.mxu0 0.0
    %2128 = vmatpush1.msra.mxu0 0.0
    %2129 = vmatprep.subr.mxu0 0.0
    %2130 = vmatpush1.msra.mxu0 0.0
    %2131 = vmatprep.subr.mxu0 0.0
    %2132 = vmatpush1.msra.mxu0 0.0
    %2133 = vmatprep.subr.mxu0 0.0
    %2134 = vmatpush1.msra.mxu0 0.0
    %2135 = vmatprep.subr.mxu0 0.0
    %2136 = vmatpush1.msra.mxu0 0.0
    %2137 = vmatprep.subr.mxu0 0.0
    %2138 = vmatpush1.msra.mxu0 0.0
    %2139 = vmatprep.subr.mxu0 0.0
    %2140 = vmatpush1.msra.mxu0 0.0
    %2141 = vmatprep.subr.mxu0 0.0
    %2142 = vmatpush1.msra.mxu0 0.0
    %2143 = vmatprep.subr.mxu0 0.0
    %2144 = vmatpush1.msra.mxu0 0.0
    %2145 = vmatprep.subr.mxu0 0.0
    %2146 = vmatpush1.msra.mxu0 0.0
    %2147 = vmatprep.subr.mxu0 0.0
    %2148 = vmatpush1.msra.mxu0 %v1068
    %2149 = vmatprep.subr.mxu0 0.0
    %2150 = vmatpush1.msra.mxu0 %v186
    %2151 = vmatprep.subr.mxu0 0.0
    %2152 = vmatpush1.msra.mxu0 %v185
    %2153 = vmatprep.subr.mxu0 0.0
    %2154 = vmatpush2.msra.mxu0 0.0
    %2155 = vmatprep.subr.mxu0 0.0
    %2156 = vmatpush2.msra.mxu0 0.0
    %2157 = vmatprep.subr.mxu0 0.0
    %2158 = vmatpush2.msra.mxu0 0.0
    %2159 = vmatprep.subr.mxu0 0.0
    %2160 = vmatpush2.msra.mxu0 0.0
    %2161 = vmatprep.subr.mxu0 0.0
    %2162 = vmatpush2.msra.mxu0 0.0
    %2163 = vmatprep.subr.mxu0 0.0
    %2164 = vmatpush2.msra.mxu0 0.0
    %2165 = vmatprep.subr.mxu0 0.0
    %2166 = vmatpush2.msra.mxu0 0.0
    %2167 = vmatprep.subr.mxu0 0.0
    %2168 = vmatpush2.msra.mxu0 0.0
    %2169 = vmatprep.subr.mxu0 0.0
    %2170 = vmatpush2.msra.mxu0 0.0
    %2171 = vmatprep.subr.mxu0 0.0
    %2172 = vmatpush2.msra.mxu0 0.0
    %2173 = vmatprep.subr.mxu0 0.0
    %2174 = vmatpush2.msra.mxu0 0.0
    %2175 = vmatprep.subr.mxu0 0.0
    %2176 = vmatpush2.msra.mxu0 0.0
    %2177 = vmatprep.subr.mxu0 0.0
    %2178 = vmatpush2.msra.mxu0 0.0
    %2179 = vmatprep.subr.mxu0 0.0
    %2180 = vmatpush2.msra.mxu0 0.0
    %2181 = vmatprep.subr.mxu0 0.0
    %2182 = vmatpush2.msra.mxu0 0.0
    %2183 = vmatprep.subr.mxu0 0.0
    %2184 = vmatpush2.msra.mxu0 0.0
    %2185 = vmatprep.mubr.f32.mxu0 0.0
    %2186 = vmatmul.mubr.f32.gmra.mxu0 %v2074
    %v2187 = vpop.f32.mrf.mxu0
    %v2188 = vadd.f32 0.0, %v2187
    %v2189 = vpop.f32.mrf.mxu0
    %2190 = vmatprep.mubr.f32.mxu0 0.0
    %2191 = vmatmul.mubr.f32.gmra.mxu0 %v2077
    %v2192 = vpop.f32.mrf.mxu0
    %v2193 = vadd.f32 0.0, %v2192
    %v2194 = vpop.f32.mrf.mxu0
    %2195 = vmatprep.mubr.f32.mxu0 0.0
    %2196 = vmatmul.mubr.f32.gmra.mxu0 %v2080
    %v2197 = vpop.f32.mrf.mxu0
    %v2198 = vadd.f32 0.0, %v2197
    %v2199 = vpop.f32.mrf.mxu0
    %2200 = vmatprep.mubr.f32.mxu0 0.0
    %2201 = vmatmul.mubr.f32.gmra.mxu0 %v2083
    %v2202 = vpop.f32.mrf.mxu0
    %v2203 = vadd.f32 0.0, %v2202
    %v2204 = vpop.f32.mrf.mxu0
    %2205 = vmatprep.mubr.f32.mxu0 0.0
    %2206 = vmatmul.mubr.f32.gmra.mxu0 %v2086
    %v2207 = vpop.f32.mrf.mxu0
    %v2208 = vadd.f32 0.0, %v2207
    %v2209 = vpop.f32.mrf.mxu0
    %2210 = vmatprep.mubr.f32.mxu0 0.0
    %2211 = vmatmul.mubr.f32.gmra.mxu0 %v2089
    %v2212 = vpop.f32.mrf.mxu0
    %v2213 = vadd.f32 0.0, %v2212
    %v2214 = vpop.f32.mrf.mxu0
    %2215 = vmatprep.mubr.f32.mxu0 0.0
    %2216 = vmatmul.mubr.f32.gmra.mxu0 %v2092
    %v2217 = vpop.f32.mrf.mxu0
    %v2218 = vadd.f32 0.0, %v2217
    %v2219 = vpop.f32.mrf.mxu0
    %2220 = vmatprep.mubr.f32.mxu0 0.0
    %2221 = vmatmul.mubr.f32.gmra.mxu0 %v2095
    %v2222 = vpop.f32.mrf.mxu0
    %v2223 = vadd.f32 0.0, %v2222
    %v2224 = vpop.f32.mrf.mxu0
    %2225 = vmatprep.mubr.f32.mxu0 0.0
    %2226 = vmatmul.mubr.f32.gmra.mxu0 %v2098
    %v2227 = vpop.f32.mrf.mxu0
    %v2228 = vadd.f32 0.0, %v2227
    %v2229 = vpop.f32.mrf.mxu0
    %2230 = vmatprep.mubr.f32.mxu0 0.0
    %2231 = vmatmul.mubr.f32.gmra.mxu0 %v2101
    %v2232 = vpop.f32.mrf.mxu0
    %v2233 = vadd.f32 0.0, %v2232
    %v2234 = vpop.f32.mrf.mxu0
    %2235 = vmatprep.mubr.f32.mxu0 0.0
    %2236 = vmatmul.mubr.f32.gmra.mxu0 %v2104
    %v2237 = vpop.f32.mrf.mxu0
    %v2238 = vadd.f32 0.0, %v2237
    %v2239 = vpop.f32.mrf.mxu0
    %2240 = vmatprep.mubr.f32.mxu0 0.0
    %2241 = vmatmul.mubr.f32.gmra.mxu0 %v2107
    %v2242 = vpop.f32.mrf.mxu0
    %v2243 = vadd.f32 0.0, %v2242
    %v2244 = vpop.f32.mrf.mxu0
    %2245 = vmatprep.mubr.f32.mxu0 0.0
    %2246 = vmatmul.mubr.f32.gmra.mxu0 %v2110
    %v2247 = vpop.f32.mrf.mxu0
    %v2248 = vadd.f32 0.0, %v2247
    %v2249 = vpop.f32.mrf.mxu0
    %2250 = vmatprep.mubr.f32.mxu0 0.0
    %2251 = vmatmul.mubr.f32.gmra.mxu0 %v2113
    %v2252 = vpop.f32.mrf.mxu0
    %v2253 = vadd.f32 0.0, %v2252
    %v2254 = vpop.f32.mrf.mxu0
    %2255 = vmatprep.mubr.f32.mxu0 0.0
    %2256 = vmatmul.mubr.f32.gmra.mxu0 %v2116
    %v2257 = vpop.f32.mrf.mxu0
    %v2258 = vadd.f32 0.0, %v2257
    %v2259 = vpop.f32.mrf.mxu0
    %2260 = vmatprep.mubr.f32.mxu0 0.0
    %2261 = vmatmul.mubr.f32.gmra.mxu0 %v2119
    %v2262 = vpop.f32.mrf.mxu0
    %v2263 = vadd.f32 0.0, %v2262
    %v2264 = vpop.f32.mrf.mxu0
    %2265 = vdwg.mxu0
    %v2267 = vsel %vm1017, %v1835, 0
    %v2270 = vsel %vm1017, %v1840, 0
    %v2273 = vsel %vm1017, %v1845, 0
    %v2276 = vsel %vm1017, %v1850, 0
    %v2279 = vsel %vm1017, %v1855, 0
    %v2282 = vsel %vm1017, %v1860, 0
    %v2285 = vsel %vm1017, %v1865, 0
    %v2288 = vsel %vm1017, %v1870, 0
    %v2291 = vsel %vm1017, %v1875, 0
    %v2294 = vsel %vm1017, %v1880, 0
    %v2297 = vsel %vm1017, %v1885, 0
    %v2300 = vsel %vm1017, %v1890, 0
    %v2303 = vsel %vm1017, %v1895, 0
    %v2306 = vsel %vm1017, %v1900, 0
    %v2309 = vsel %vm1017, %v1905, 0
    %v2312 = vsel %vm1017, %v1910, 0
    %2314 = vmatprep.subr.mxu0 0.0
    %2315 = vmatpush1.msra.mxu0 0.0
    %2316 = vmatprep.subr.mxu0 0.0
    %2317 = vmatpush1.msra.mxu0 0.0
    %2318 = vmatprep.subr.mxu0 0.0
    %2319 = vmatpush1.msra.mxu0 0.0
    %2320 = vmatprep.subr.mxu0 0.0
    %2321 = vmatpush1.msra.mxu0 0.0
    %2322 = vmatprep.subr.mxu0 0.0
    %2323 = vmatpush1.msra.mxu0 0.0
    %2324 = vmatprep.subr.mxu0 0.0
    %2325 = vmatpush1.msra.mxu0 0.0
    %2326 = vmatprep.subr.mxu0 0.0
    %2327 = vmatpush1.msra.mxu0 0.0
    %2328 = vmatprep.subr.mxu0 0.0
    %2329 = vmatpush1.msra.mxu0 0.0
    %2330 = vmatprep.subr.mxu0 0.0
    %2331 = vmatpush1.msra.mxu0 0.0
    %2332 = vmatprep.subr.mxu0 0.0
    %2333 = vmatpush1.msra.mxu0 0.0
    %2334 = vmatprep.subr.mxu0 0.0
    %2335 = vmatpush1.msra.mxu0 0.0
    %2336 = vmatprep.subr.mxu0 0.0
    %2337 = vmatpush1.msra.mxu0 0.0
    %2338 = vmatprep.subr.mxu0 0.0
    %2339 = vmatpush1.msra.mxu0 0.0
    %2340 = vmatprep.subr.mxu0 0.0
    %2341 = vmatpush1.msra.mxu0 %v1264
    %2342 = vmatprep.subr.mxu0 0.0
    %2343 = vmatpush1.msra.mxu0 %v183
    %2344 = vmatprep.subr.mxu0 0.0
    %2345 = vmatpush1.msra.mxu0 %v182
    %2346 = vmatprep.subr.mxu0 0.0
    %2347 = vmatpush2.msra.mxu0 0.0
    %2348 = vmatprep.subr.mxu0 0.0
    %2349 = vmatpush2.msra.mxu0 0.0
    %2350 = vmatprep.subr.mxu0 0.0
    %2351 = vmatpush2.msra.mxu0 0.0
    %2352 = vmatprep.subr.mxu0 0.0
    %2353 = vmatpush2.msra.mxu0 0.0
    %2354 = vmatprep.subr.mxu0 0.0
    %2355 = vmatpush2.msra.mxu0 0.0
    %2356 = vmatprep.subr.mxu0 0.0
    %2357 = vmatpush2.msra.mxu0 0.0
    %2358 = vmatprep.subr.mxu0 0.0
    %2359 = vmatpush2.msra.mxu0 0.0
    %2360 = vmatprep.subr.mxu0 0.0
    %2361 = vmatpush2.msra.mxu0 0.0
    %2362 = vmatprep.subr.mxu0 0.0
    %2363 = vmatpush2.msra.mxu0 0.0
    %2364 = vmatprep.subr.mxu0 0.0
    %2365 = vmatpush2.msra.mxu0 0.0
    %2366 = vmatprep.subr.mxu0 0.0
    %2367 = vmatpush2.msra.mxu0 0.0
    %2368 = vmatprep.subr.mxu0 0.0
    %2369 = vmatpush2.msra.mxu0 0.0
    %2370 = vmatprep.subr.mxu0 0.0
    %2371 = vmatpush2.msra.mxu0 0.0
    %2372 = vmatprep.subr.mxu0 0.0
    %2373 = vmatpush2.msra.mxu0 0.0
    %2374 = vmatprep.subr.mxu0 0.0
    %2375 = vmatpush2.msra.mxu0 0.0
    %2376 = vmatprep.subr.mxu0 0.0
    %2377 = vmatpush2.msra.mxu0 0.0
    %2378 = vmatprep.mubr.f32.mxu0 0.0
    %2379 = vmatmul.mubr.f32.gmra.mxu0 %v2267
    %v2380 = vpop.f32.mrf.mxu0
    %v2381 = vadd.f32 %v2188, %v2380
    %v2382 = vpop.f32.mrf.mxu0
    %2383 = vmatprep.mubr.f32.mxu0 0.0
    %2384 = vmatmul.mubr.f32.gmra.mxu0 %v2270
    %v2385 = vpop.f32.mrf.mxu0
    %v2386 = vadd.f32 %v2193, %v2385
    %v2387 = vpop.f32.mrf.mxu0
    %2388 = vmatprep.mubr.f32.mxu0 0.0
    %2389 = vmatmul.mubr.f32.gmra.mxu0 %v2273
    %v2390 = vpop.f32.mrf.mxu0
    %v2391 = vadd.f32 %v2198, %v2390
    %v2392 = vpop.f32.mrf.mxu0
    %2393 = vmatprep.mubr.f32.mxu0 0.0
    %2394 = vmatmul.mubr.f32.gmra.mxu0 %v2276
    %v2395 = vpop.f32.mrf.mxu0
    %v2396 = vadd.f32 %v2203, %v2395
    %v2397 = vpop.f32.mrf.mxu0
    %2398 = vmatprep.mubr.f32.mxu0 0.0
    %2399 = vmatmul.mubr.f32.gmra.mxu0 %v2279
    %v2400 = vpop.f32.mrf.mxu0
    %v2401 = vadd.f32 %v2208, %v2400
    %v2402 = vpop.f32.mrf.mxu0
    %2403 = vmatprep.mubr.f32.mxu0 0.0
    %2404 = vmatmul.mubr.f32.gmra.mxu0 %v2282
    %v2405 = vpop.f32.mrf.mxu0
    %v2406 = vadd.f32 %v2213, %v2405
    %v2407 = vpop.f32.mrf.mxu0
    %2408 = vmatprep.mubr.f32.mxu0 0.0
    %2409 = vmatmul.mubr.f32.gmra.mxu0 %v2285
    %v2410 = vpop.f32.mrf.mxu0
    %v2411 = vadd.f32 %v2218, %v2410
    %v2412 = vpop.f32.mrf.mxu0
    %2413 = vmatprep.mubr.f32.mxu0 0.0
    %2414 = vmatmul.mubr.f32.gmra.mxu0 %v2288
    %v2415 = vpop.f32.mrf.mxu0
    %v2416 = vadd.f32 %v2223, %v2415
    %v2417 = vpop.f32.mrf.mxu0
    %2418 = vmatprep.mubr.f32.mxu0 0.0
    %2419 = vmatmul.mubr.f32.gmra.mxu0 %v2291
    %v2420 = vpop.f32.mrf.mxu0
    %v2421 = vadd.f32 %v2228, %v2420
    %v2422 = vpop.f32.mrf.mxu0
    %2423 = vmatprep.mubr.f32.mxu0 0.0
    %2424 = vmatmul.mubr.f32.gmra.mxu0 %v2294
    %v2425 = vpop.f32.mrf.mxu0
    %v2426 = vadd.f32 %v2233, %v2425
    %v2427 = vpop.f32.mrf.mxu0
    %2428 = vmatprep.mubr.f32.mxu0 0.0
    %2429 = vmatmul.mubr.f32.gmra.mxu0 %v2297
    %v2430 = vpop.f32.mrf.mxu0
    %v2431 = vadd.f32 %v2238, %v2430
    %v2432 = vpop.f32.mrf.mxu0
    %2433 = vmatprep.mubr.f32.mxu0 0.0
    %2434 = vmatmul.mubr.f32.gmra.mxu0 %v2300
    %v2435 = vpop.f32.mrf.mxu0
    %v2436 = vadd.f32 %v2243, %v2435
    %v2437 = vpop.f32.mrf.mxu0
    %2438 = vmatprep.mubr.f32.mxu0 0.0
    %2439 = vmatmul.mubr.f32.gmra.mxu0 %v2303
    %v2440 = vpop.f32.mrf.mxu0
    %v2441 = vadd.f32 %v2248, %v2440
    %v2442 = vpop.f32.mrf.mxu0
    %2443 = vmatprep.mubr.f32.mxu0 0.0
    %2444 = vmatmul.mubr.f32.gmra.mxu0 %v2306
    %v2445 = vpop.f32.mrf.mxu0
    %v2446 = vadd.f32 %v2253, %v2445
    %v2447 = vpop.f32.mrf.mxu0
    %2448 = vmatprep.mubr.f32.mxu0 0.0
    %2449 = vmatmul.mubr.f32.gmra.mxu0 %v2309
    %v2450 = vpop.f32.mrf.mxu0
    %v2451 = vadd.f32 %v2258, %v2450
    %v2452 = vpop.f32.mrf.mxu0
    %2453 = vmatprep.mubr.f32.mxu0 0.0
    %2454 = vmatmul.mubr.f32.gmra.mxu0 %v2312
    %v2455 = vpop.f32.mrf.mxu0
    %v2456 = vadd.f32 %v2263, %v2455
    %v2457 = vpop.f32.mrf.mxu0
    %2458 = vdwg.mxu0
    %v2460 = vsel %vm1017, %v1995, 0
    %v2463 = vsel %vm1017, %v2000, 0
    %v2466 = vsel %vm1017, %v2005, 0
    %v2469 = vsel %vm1017, %v2010, 0
    %v2472 = vsel %vm1017, %v2015, 0
    %v2475 = vsel %vm1017, %v2020, 0
    %v2478 = vsel %vm1017, %v2025, 0
    %v2481 = vsel %vm1017, %v2030, 0
    %v2484 = vsel %vm1017, %v2035, 0
    %v2487 = vsel %vm1017, %v2040, 0
    %v2490 = vsel %vm1017, %v2045, 0
    %v2493 = vsel %vm1017, %v2050, 0
    %v2496 = vsel %vm1017, %v2055, 0
    %v2499 = vsel %vm1017, %v2060, 0
    %v2502 = vsel %vm1017, %v2065, 0
    %v2505 = vsel %vm1017, %v2070, 0
    %2507 = vmatprep.subr.mxu0 0.0
    %2508 = vmatpush1.msra.mxu0 0.0
    %2509 = vmatprep.subr.mxu0 0.0
    %2510 = vmatpush1.msra.mxu0 0.0
    %2511 = vmatprep.subr.mxu0 0.0
    %2512 = vmatpush1.msra.mxu0 0.0
    %2513 = vmatprep.subr.mxu0 0.0
    %2514 = vmatpush1.msra.mxu0 0.0
    %2515 = vmatprep.subr.mxu0 0.0
    %2516 = vmatpush1.msra.mxu0 0.0
    %2517 = vmatprep.subr.mxu0 0.0
    %2518 = vmatpush1.msra.mxu0 0.0
    %2519 = vmatprep.subr.mxu0 0.0
    %2520 = vmatpush1.msra.mxu0 0.0
    %2521 = vmatprep.subr.mxu0 0.0
    %2522 = vmatpush1.msra.mxu0 0.0
    %2523 = vmatprep.subr.mxu0 0.0
    %2524 = vmatpush1.msra.mxu0 0.0
    %2525 = vmatprep.subr.mxu0 0.0
    %2526 = vmatpush1.msra.mxu0 0.0
    %2527 = vmatprep.subr.mxu0 0.0
    %2528 = vmatpush1.msra.mxu0 0.0
    %2529 = vmatprep.subr.mxu0 0.0
    %2530 = vmatpush1.msra.mxu0 0.0
    %2531 = vmatprep.subr.mxu0 0.0
    %2532 = vmatpush1.msra.mxu0 0.0
    %2533 = vmatprep.subr.mxu0 0.0
    %2534 = vmatpush1.msra.mxu0 %v1460
    %2535 = vmatprep.subr.mxu0 0.0
    %2536 = vmatpush1.msra.mxu0 %v189
    %2537 = vmatprep.subr.mxu0 0.0
    %2538 = vmatpush1.msra.mxu0 %v188
    %2539 = vmatprep.subr.mxu0 0.0
    %2540 = vmatpush2.msra.mxu0 0.0
    %2541 = vmatprep.subr.mxu0 0.0
    %2542 = vmatpush2.msra.mxu0 0.0
    %2543 = vmatprep.subr.mxu0 0.0
    %2544 = vmatpush2.msra.mxu0 0.0
    %2545 = vmatprep.subr.mxu0 0.0
    %2546 = vmatpush2.msra.mxu0 0.0
    %2547 = vmatprep.subr.mxu0 0.0
    %2548 = vmatpush2.msra.mxu0 0.0
    %2549 = vmatprep.subr.mxu0 0.0
    %2550 = vmatpush2.msra.mxu0 0.0
    %2551 = vmatprep.subr.mxu0 0.0
    %2552 = vmatpush2.msra.mxu0 0.0
    %2553 = vmatprep.subr.mxu0 0.0
    %2554 = vmatpush2.msra.mxu0 0.0
    %2555 = vmatprep.subr.mxu0 0.0
    %2556 = vmatpush2.msra.mxu0 0.0
    %2557 = vmatprep.subr.mxu0 0.0
    %2558 = vmatpush2.msra.mxu0 0.0
    %2559 = vmatprep.subr.mxu0 0.0
    %2560 = vmatpush2.msra.mxu0 0.0
    %2561 = vmatprep.subr.mxu0 0.0
    %2562 = vmatpush2.msra.mxu0 0.0
    %2563 = vmatprep.subr.mxu0 0.0
    %2564 = vmatpush2.msra.mxu0 0.0
    %2565 = vmatprep.subr.mxu0 0.0
    %2566 = vmatpush2.msra.mxu0 0.0
    %2567 = vmatprep.subr.mxu0 0.0
    %2568 = vmatpush2.msra.mxu0 0.0
    %2569 = vmatprep.subr.mxu0 0.0
    %2570 = vmatpush2.msra.mxu0 0.0
    %2571 = vmatprep.mubr.f32.mxu0 0.0
    %2572 = vmatmul.mubr.f32.gmra.mxu0 %v2460
    %v2573 = vpop.f32.mrf.mxu0
    %v2574 = vadd.f32 0.0, %v2573
    %v2575 = vpop.f32.mrf.mxu0
    %2576 = vmatprep.mubr.f32.mxu0 0.0
    %2577 = vmatmul.mubr.f32.gmra.mxu0 %v2463
    %v2578 = vpop.f32.mrf.mxu0
    %v2579 = vadd.f32 0.0, %v2578
    %v2580 = vpop.f32.mrf.mxu0
    %2581 = vmatprep.mubr.f32.mxu0 0.0
    %2582 = vmatmul.mubr.f32.gmra.mxu0 %v2466
    %v2583 = vpop.f32.mrf.mxu0
    %v2584 = vadd.f32 0.0, %v2583
    %v2585 = vpop.f32.mrf.mxu0
    %2586 = vmatprep.mubr.f32.mxu0 0.0
    %2587 = vmatmul.mubr.f32.gmra.mxu0 %v2469
    %v2588 = vpop.f32.mrf.mxu0
    %v2589 = vadd.f32 0.0, %v2588
    %v2590 = vpop.f32.mrf.mxu0
    %2591 = vmatprep.mubr.f32.mxu0 0.0
    %2592 = vmatmul.mubr.f32.gmra.mxu0 %v2472
    %v2593 = vpop.f32.mrf.mxu0
    %v2594 = vadd.f32 0.0, %v2593
    %v2595 = vpop.f32.mrf.mxu0
    %2596 = vmatprep.mubr.f32.mxu0 0.0
    %2597 = vmatmul.mubr.f32.gmra.mxu0 %v2475
    %v2598 = vpop.f32.mrf.mxu0
    %v2599 = vadd.f32 0.0, %v2598
    %v2600 = vpop.f32.mrf.mxu0
    %2601 = vmatprep.mubr.f32.mxu0 0.0
    %2602 = vmatmul.mubr.f32.gmra.mxu0 %v2478
    %v2603 = vpop.f32.mrf.mxu0
    %v2604 = vadd.f32 0.0, %v2603
    %v2605 = vpop.f32.mrf.mxu0
    %2606 = vmatprep.mubr.f32.mxu0 0.0
    %2607 = vmatmul.mubr.f32.gmra.mxu0 %v2481
    %v2608 = vpop.f32.mrf.mxu0
    %v2609 = vadd.f32 0.0, %v2608
    %v2610 = vpop.f32.mrf.mxu0
    %2611 = vmatprep.mubr.f32.mxu0 0.0
    %2612 = vmatmul.mubr.f32.gmra.mxu0 %v2484
    %v2613 = vpop.f32.mrf.mxu0
    %v2614 = vadd.f32 0.0, %v2613
    %v2615 = vpop.f32.mrf.mxu0
    %2616 = vmatprep.mubr.f32.mxu0 0.0
    %2617 = vmatmul.mubr.f32.gmra.mxu0 %v2487
    %v2618 = vpop.f32.mrf.mxu0
    %v2619 = vadd.f32 0.0, %v2618
    %v2620 = vpop.f32.mrf.mxu0
    %2621 = vmatprep.mubr.f32.mxu0 0.0
    %2622 = vmatmul.mubr.f32.gmra.mxu0 %v2490
    %v2623 = vpop.f32.mrf.mxu0
    %v2624 = vadd.f32 0.0, %v2623
    %v2625 = vpop.f32.mrf.mxu0
    %2626 = vmatprep.mubr.f32.mxu0 0.0
    %2627 = vmatmul.mubr.f32.gmra.mxu0 %v2493
    %v2628 = vpop.f32.mrf.mxu0
    %v2629 = vadd.f32 0.0, %v2628
    %v2630 = vpop.f32.mrf.mxu0
    %2631 = vmatprep.mubr.f32.mxu0 0.0
    %2632 = vmatmul.mubr.f32.gmra.mxu0 %v2496
    %v2633 = vpop.f32.mrf.mxu0
    %v2634 = vadd.f32 0.0, %v2633
    %v2635 = vpop.f32.mrf.mxu0
    %2636 = vmatprep.mubr.f32.mxu0 0.0
    %2637 = vmatmul.mubr.f32.gmra.mxu0 %v2499
    %v2638 = vpop.f32.mrf.mxu0
    %v2639 = vadd.f32 0.0, %v2638
    %v2640 = vpop.f32.mrf.mxu0
    %2641 = vmatprep.mubr.f32.mxu0 0.0
    %2642 = vmatmul.mubr.f32.gmra.mxu0 %v2502
    %v2643 = vpop.f32.mrf.mxu0
    %v2644 = vadd.f32 0.0, %v2643
    %v2645 = vpop.f32.mrf.mxu0
    %2646 = vmatprep.mubr.f32.mxu0 0.0
    %2647 = vmatmul.mubr.f32.gmra.mxu0 %v2505
    %v2648 = vpop.f32.mrf.mxu0
    %v2649 = vadd.f32 0.0, %v2648
    %v2650 = vpop.f32.mrf.mxu0
    %2651 = vdwg.mxu0
    %v2652 = vadd.f32 %v2381, %v2574
    %v2653 = vadd.f32 %v2386, %v2579
    %v2654 = vadd.f32 %v2391, %v2584
    %v2655 = vadd.f32 %v2396, %v2589
    %v2656 = vadd.f32 %v2401, %v2594
    %v2657 = vadd.f32 %v2406, %v2599
    %v2658 = vadd.f32 %v2411, %v2604
    %v2659 = vadd.f32 %v2416, %v2609
    %v2660 = vadd.f32 %v2421, %v2614
    %v2661 = vadd.f32 %v2426, %v2619
    %v2662 = vadd.f32 %v2431, %v2624
    %v2663 = vadd.f32 %v2436, %v2629
    %v2664 = vadd.f32 %v2441, %v2634
    %v2665 = vadd.f32 %v2446, %v2639
    %v2666 = vadd.f32 %v2451, %v2644
    %v2667 = vadd.f32 %v2456, %v2649
    %2668 = vmatprep.subr.mxu0 0.0
    %2669 = vmatpush1.msra.mxu0 %v709
    %2670 = vmatprep.subr.mxu0 0.0
    %2671 = vmatpush1.msra.mxu0 %v704
    %2672 = vmatprep.subr.mxu0 0.0
    %2673 = vmatpush1.msra.mxu0 %v699
    %2674 = vmatprep.subr.mxu0 0.0
    %2675 = vmatpush1.msra.mxu0 %v694
    %2676 = vmatprep.subr.mxu0 0.0
    %2677 = vmatpush1.msra.mxu0 %v689
    %2678 = vmatprep.subr.mxu0 0.0
    %2679 = vmatpush1.msra.mxu0 %v684
    %2680 = vmatprep.subr.mxu0 0.0
    %2681 = vmatpush1.msra.mxu0 %v679
    %2682 = vmatprep.subr.mxu0 0.0
    %2683 = vmatpush1.msra.mxu0 %v674
    %2684 = vmatprep.subr.mxu0 0.0
    %2685 = vmatpush1.msra.mxu0 %v669
    %2686 = vmatprep.subr.mxu0 0.0
    %2687 = vmatpush1.msra.mxu0 %v664
    %2688 = vmatprep.subr.mxu0 0.0
    %2689 = vmatpush1.msra.mxu0 %v659
    %2690 = vmatprep.subr.mxu0 0.0
    %2691 = vmatpush1.msra.mxu0 %v654
    %2692 = vmatprep.subr.mxu0 0.0
    %2693 = vmatpush1.msra.mxu0 %v649
    %2694 = vmatprep.subr.mxu0 0.0
    %2695 = vmatpush1.msra.mxu0 %v644
    %2696 = vmatprep.subr.mxu0 0.0
    %2697 = vmatpush1.msra.mxu0 %v639
    %2698 = vmatprep.subr.mxu0 0.0
    %2699 = vmatpush1.msra.mxu0 %v634
    %2700 = vmatprep.subr.mxu0 0.0
    %2701 = vmatpush2.msra.mxu0 0.0
    %2702 = vmatprep.subr.mxu0 0.0
    %2703 = vmatpush2.msra.mxu0 0.0
    %2704 = vmatprep.subr.mxu0 0.0
    %2705 = vmatpush2.msra.mxu0 0.0
    %2706 = vmatprep.subr.mxu0 0.0
    %2707 = vmatpush2.msra.mxu0 0.0
    %2708 = vmatprep.subr.mxu0 0.0
    %2709 = vmatpush2.msra.mxu0 0.0
    %2710 = vmatprep.subr.mxu0 0.0
    %2711 = vmatpush2.msra.mxu0 0.0
    %2712 = vmatprep.subr.mxu0 0.0
    %2713 = vmatpush2.msra.mxu0 0.0
    %2714 = vmatprep.subr.mxu0 0.0
    %2715 = vmatpush2.msra.mxu0 0.0
    %2716 = vmatprep.subr.mxu0 0.0
    %2717 = vmatpush2.msra.mxu0 0.0
    %2718 = vmatprep.subr.mxu0 0.0
    %2719 = vmatpush2.msra.mxu0 0.0
    %2720 = vmatprep.subr.mxu0 0.0
    %2721 = vmatpush2.msra.mxu0 0.0
    %2722 = vmatprep.subr.mxu0 0.0
    %2723 = vmatpush2.msra.mxu0 0.0
    %2724 = vmatprep.subr.mxu0 0.0
    %2725 = vmatpush2.msra.mxu0 0.0
    %2726 = vmatprep.subr.mxu0 0.0
    %2727 = vmatpush2.msra.mxu0 0.0
    %2728 = vmatprep.subr.mxu0 0.0
    %2729 = vmatpush2.msra.mxu0 0.0
    %2730 = vmatprep.subr.mxu0 0.0
    %2731 = vmatpush2.msra.mxu0 0.0
    %2732 = vmatprep.mubr.f32.mxu0 0.0
    %2733 = vmatmul.mubr.f32.gmra.mxu0 %v150
    %v2734 = vpop.f32.mrf.mxu0
    %v2735 = vadd.f32 0.0, %v2734
    %v2736 = vpop.f32.mrf.mxu0
    %2737 = vmatprep.mubr.f32.mxu0 0.0
    %2738 = vmatmul.mubr.f32.gmra.mxu0 %v151
    %v2739 = vpop.f32.mrf.mxu0
    %v2740 = vadd.f32 0.0, %v2739
    %v2741 = vpop.f32.mrf.mxu0
    %2742 = vmatprep.mubr.f32.mxu0 0.0
    %2743 = vmatmul.mubr.f32.gmra.mxu0 %v152
    %v2744 = vpop.f32.mrf.mxu0
    %v2745 = vadd.f32 0.0, %v2744
    %v2746 = vpop.f32.mrf.mxu0
    %2747 = vmatprep.mubr.f32.mxu0 0.0
    %2748 = vmatmul.mubr.f32.gmra.mxu0 %v153
    %v2749 = vpop.f32.mrf.mxu0
    %v2750 = vadd.f32 0.0, %v2749
    %v2751 = vpop.f32.mrf.mxu0
    %2752 = vmatprep.mubr.f32.mxu0 0.0
    %2753 = vmatmul.mubr.f32.gmra.mxu0 %v154
    %v2754 = vpop.f32.mrf.mxu0
    %v2755 = vadd.f32 0.0, %v2754
    %v2756 = vpop.f32.mrf.mxu0
    %2757 = vmatprep.mubr.f32.mxu0 0.0
    %2758 = vmatmul.mubr.f32.gmra.mxu0 %v155
    %v2759 = vpop.f32.mrf.mxu0
    %v2760 = vadd.f32 0.0, %v2759
    %v2761 = vpop.f32.mrf.mxu0
    %2762 = vmatprep.mubr.f32.mxu0 0.0
    %2763 = vmatmul.mubr.f32.gmra.mxu0 %v156
    %v2764 = vpop.f32.mrf.mxu0
    %v2765 = vadd.f32 0.0, %v2764
    %v2766 = vpop.f32.mrf.mxu0
    %2767 = vmatprep.mubr.f32.mxu0 0.0
    %2768 = vmatmul.mubr.f32.gmra.mxu0 %v157
    %v2769 = vpop.f32.mrf.mxu0
    %v2770 = vadd.f32 0.0, %v2769
    %v2771 = vpop.f32.mrf.mxu0
    %2772 = vmatprep.mubr.f32.mxu0 0.0
    %2773 = vmatmul.mubr.f32.gmra.mxu0 %v158
    %v2774 = vpop.f32.mrf.mxu0
    %v2775 = vadd.f32 0.0, %v2774
    %v2776 = vpop.f32.mrf.mxu0
    %2777 = vmatprep.mubr.f32.mxu0 0.0
    %2778 = vmatmul.mubr.f32.gmra.mxu0 %v159
    %v2779 = vpop.f32.mrf.mxu0
    %v2780 = vadd.f32 0.0, %v2779
    %v2781 = vpop.f32.mrf.mxu0
    %2782 = vmatprep.mubr.f32.mxu0 0.0
    %2783 = vmatmul.mubr.f32.gmra.mxu0 %v160
    %v2784 = vpop.f32.mrf.mxu0
    %v2785 = vadd.f32 0.0, %v2784
    %v2786 = vpop.f32.mrf.mxu0
    %2787 = vmatprep.mubr.f32.mxu0 0.0
    %2788 = vmatmul.mubr.f32.gmra.mxu0 %v161
    %v2789 = vpop.f32.mrf.mxu0
    %v2790 = vadd.f32 0.0, %v2789
    %v2791 = vpop.f32.mrf.mxu0
    %2792 = vmatprep.mubr.f32.mxu0 0.0
    %2793 = vmatmul.mubr.f32.gmra.mxu0 %v162
    %v2794 = vpop.f32.mrf.mxu0
    %v2795 = vadd.f32 0.0, %v2794
    %v2796 = vpop.f32.mrf.mxu0
    %2797 = vmatprep.mubr.f32.mxu0 0.0
    %2798 = vmatmul.mubr.f32.gmra.mxu0 %v163
    %v2799 = vpop.f32.mrf.mxu0
    %v2800 = vadd.f32 0.0, %v2799
    %v2801 = vpop.f32.mrf.mxu0
    %2802 = vmatprep.mubr.f32.mxu0 0.0
    %2803 = vmatmul.mubr.f32.gmra.mxu0 %v164
    %v2804 = vpop.f32.mrf.mxu0
    %v2805 = vadd.f32 0.0, %v2804
    %v2806 = vpop.f32.mrf.mxu0
    %2807 = vmatprep.mubr.f32.mxu0 0.0
    %2808 = vmatmul.mubr.f32.gmra.mxu0 %v165
    %v2809 = vpop.f32.mrf.mxu0
    %v2810 = vadd.f32 0.0, %v2809
    %v2811 = vpop.f32.mrf.mxu0
    %2812 = vdwg.mxu0
    %vm2813 = vcmask 130048
    %v2815 = vsel %vm2813, %v1607, 0
    %v2818 = vsel %vm2813, %v1608, 0
    %v2821 = vsel %vm2813, %v1609, 0
    %v2824 = vsel %vm2813, %v1610, 0
    %v2827 = vsel %vm2813, %v1611, 0
    %v2830 = vsel %vm2813, %v1612, 0
    %v2833 = vsel %vm2813, %v1613, 0
    %v2836 = vsel %vm2813, %v1614, 0
    %v2839 = vsel %vm2813, %v1615, 0
    %v2842 = vsel %vm2813, %v1616, 0
    %v2845 = vsel %vm2813, %v1617, 0
    %v2848 = vsel %vm2813, %v1618, 0
    %v2851 = vsel %vm2813, %v1619, 0
    %v2854 = vsel %vm2813, %v1620, 0
    %v2857 = vsel %vm2813, %v1621, 0
    %v2860 = vsel %vm2813, %v1622, 0
    %v2863 = vsel %vm2813, %v2652, 0
    %v2866 = vsel %vm2813, %v2653, 0
    %v2869 = vsel %vm2813, %v2654, 0
    %v2872 = vsel %vm2813, %v2655, 0
    %v2875 = vsel %vm2813, %v2656, 0
    %v2878 = vsel %vm2813, %v2657, 0
    %v2881 = vsel %vm2813, %v2658, 0
    %v2884 = vsel %vm2813, %v2659, 0
    %v2887 = vsel %vm2813, %v2660, 0
    %v2890 = vsel %vm2813, %v2661, 0
    %v2893 = vsel %vm2813, %v2662, 0
    %v2896 = vsel %vm2813, %v2663, 0
    %v2899 = vsel %vm2813, %v2664, 0
    %v2902 = vsel %vm2813, %v2665, 0
    %v2905 = vsel %vm2813, %v2666, 0
    %v2908 = vsel %vm2813, %v2667, 0
    %2910 = vmatprep.subr.mxu0 0.0
    %2911 = vmatpush1.msra.mxu0 0.0
    %2912 = vmatprep.subr.mxu0 0.0
    %2913 = vmatpush1.msra.mxu0 0.0
    %2914 = vmatprep.subr.mxu0 0.0
    %2915 = vmatpush1.msra.mxu0 0.0
    %2916 = vmatprep.subr.mxu0 0.0
    %2917 = vmatpush1.msra.mxu0 0.0
    %2918 = vmatprep.subr.mxu0 0.0
    %2919 = vmatpush1.msra.mxu0 0.0
    %2920 = vmatprep.subr.mxu0 0.0
    %2921 = vmatpush1.msra.mxu0 0.0
    %2922 = vmatprep.subr.mxu0 0.0
    %2923 = vmatpush1.msra.mxu0 0.0
    %2924 = vmatprep.subr.mxu0 0.0
    %2925 = vmatpush1.msra.mxu0 0.0
    %2926 = vmatprep.subr.mxu0 0.0
    %2927 = vmatpush1.msra.mxu0 0.0
    %2928 = vmatprep.subr.mxu0 0.0
    %2929 = vmatpush1.msra.mxu0 0.0
    %2930 = vmatprep.subr.mxu0 0.0
    %2931 = vmatpush1.msra.mxu0 0.0
    %2932 = vmatprep.subr.mxu0 0.0
    %2933 = vmatpush1.msra.mxu0 0.0
    %2934 = vmatprep.subr.mxu0 0.0
    %2935 = vmatpush1.msra.mxu0 0.0
    %2936 = vmatprep.subr.mxu0 0.0
    %2937 = vmatpush1.msra.mxu0 0.0
    %2938 = vmatprep.subr.mxu0 %v194
    %2939 = vmatpush1.msra.mxu0 %v193
    %2940 = vmatprep.subr.mxu0 %v192
    %2941 = vmatpush1.msra.mxu0 %v191
    %2942 = vmatprep.subr.mxu0 0.0
    %2943 = vmatpush2.msra.mxu0 0.0
    %2944 = vmatprep.subr.mxu0 0.0
    %2945 = vmatpush2.msra.mxu0 0.0
    %2946 = vmatprep.subr.mxu0 0.0
    %2947 = vmatpush2.msra.mxu0 0.0
    %2948 = vmatprep.subr.mxu0 0.0
    %2949 = vmatpush2.msra.mxu0 0.0
    %2950 = vmatprep.subr.mxu0 0.0
    %2951 = vmatpush2.msra.mxu0 0.0
    %2952 = vmatprep.subr.mxu0 0.0
    %2953 = vmatpush2.msra.mxu0 0.0
    %2954 = vmatprep.subr.mxu0 0.0
    %2955 = vmatpush2.msra.mxu0 0.0
    %2956 = vmatprep.subr.mxu0 0.0
    %2957 = vmatpush2.msra.mxu0 0.0
    %2958 = vmatprep.subr.mxu0 0.0
    %2959 = vmatpush2.msra.mxu0 0.0
    %2960 = vmatprep.subr.mxu0 0.0
    %2961 = vmatpush2.msra.mxu0 0.0
    %2962 = vmatprep.subr.mxu0 0.0
    %2963 = vmatpush2.msra.mxu0 0.0
    %2964 = vmatprep.subr.mxu0 0.0
    %2965 = vmatpush2.msra.mxu0 0.0
    %2966 = vmatprep.subr.mxu0 0.0
    %2967 = vmatpush2.msra.mxu0 0.0
    %2968 = vmatprep.subr.mxu0 0.0
    %2969 = vmatpush2.msra.mxu0 0.0
    %2970 = vmatprep.subr.mxu0 0.0
    %2971 = vmatpush2.msra.mxu0 0.0
    %2972 = vmatprep.subr.mxu0 0.0
    %2973 = vmatpush2.msra.mxu0 0.0
    %2974 = vmatprep.mubr.f32.mxu0 0.0
    %2975 = vmatmul.mubr.f32.gmra.mxu0 %v2815
    %v2976 = vpop.f32.mrf.mxu0
    %v2977 = vadd.f32 0.0, %v2976
    %v2978 = vpop.f32.mrf.mxu0
    %v2979 = vadd.f32 0.0, %v2978
    %2980 = vmatprep.mubr.f32.mxu0 0.0
    %2981 = vmatmul.mubr.f32.gmra.mxu0 %v2818
    %v2982 = vpop.f32.mrf.mxu0
    %v2983 = vadd.f32 0.0, %v2982
    %v2984 = vpop.f32.mrf.mxu0
    %v2985 = vadd.f32 0.0, %v2984
    %2986 = vmatprep.mubr.f32.mxu0 0.0
    %2987 = vmatmul.mubr.f32.gmra.mxu0 %v2821
    %v2988 = vpop.f32.mrf.mxu0
    %v2989 = vadd.f32 0.0, %v2988
    %v2990 = vpop.f32.mrf.mxu0
    %v2991 = vadd.f32 0.0, %v2990
    %2992 = vmatprep.mubr.f32.mxu0 0.0
    %2993 = vmatmul.mubr.f32.gmra.mxu0 %v2824
    %v2994 = vpop.f32.mrf.mxu0
    %v2995 = vadd.f32 0.0, %v2994
    %v2996 = vpop.f32.mrf.mxu0
    %v2997 = vadd.f32 0.0, %v2996
    %2998 = vmatprep.mubr.f32.mxu0 0.0
    %2999 = vmatmul.mubr.f32.gmra.mxu0 %v2827
    %v3000 = vpop.f32.mrf.mxu0
    %v3001 = vadd.f32 0.0, %v3000
    %v3002 = vpop.f32.mrf.mxu0
    %v3003 = vadd.f32 0.0, %v3002
    %3004 = vmatprep.mubr.f32.mxu0 0.0
    %3005 = vmatmul.mubr.f32.gmra.mxu0 %v2830
    %v3006 = vpop.f32.mrf.mxu0
    %v3007 = vadd.f32 0.0, %v3006
    %v3008 = vpop.f32.mrf.mxu0
    %v3009 = vadd.f32 0.0, %v3008
    %3010 = vmatprep.mubr.f32.mxu0 0.0
    %3011 = vmatmul.mubr.f32.gmra.mxu0 %v2833
    %v3012 = vpop.f32.mrf.mxu0
    %v3013 = vadd.f32 0.0, %v3012
    %v3014 = vpop.f32.mrf.mxu0
    %v3015 = vadd.f32 0.0, %v3014
    %3016 = vmatprep.mubr.f32.mxu0 0.0
    %3017 = vmatmul.mubr.f32.gmra.mxu0 %v2836
    %v3018 = vpop.f32.mrf.mxu0
    %v3019 = vadd.f32 0.0, %v3018
    %v3020 = vpop.f32.mrf.mxu0
    %v3021 = vadd.f32 0.0, %v3020
    %3022 = vmatprep.mubr.f32.mxu0 0.0
    %3023 = vmatmul.mubr.f32.gmra.mxu0 %v2839
    %v3024 = vpop.f32.mrf.mxu0
    %v3025 = vadd.f32 0.0, %v3024
    %v3026 = vpop.f32.mrf.mxu0
    %v3027 = vadd.f32 0.0, %v3026
    %3028 = vmatprep.mubr.f32.mxu0 0.0
    %3029 = vmatmul.mubr.f32.gmra.mxu0 %v2842
    %v3030 = vpop.f32.mrf.mxu0
    %v3031 = vadd.f32 0.0, %v3030
    %v3032 = vpop.f32.mrf.mxu0
    %v3033 = vadd.f32 0.0, %v3032
    %3034 = vmatprep.mubr.f32.mxu0 0.0
    %3035 = vmatmul.mubr.f32.gmra.mxu0 %v2845
    %v3036 = vpop.f32.mrf.mxu0
    %v3037 = vadd.f32 0.0, %v3036
    %v3038 = vpop.f32.mrf.mxu0
    %v3039 = vadd.f32 0.0, %v3038
    %3040 = vmatprep.mubr.f32.mxu0 0.0
    %3041 = vmatmul.mubr.f32.gmra.mxu0 %v2848
    %v3042 = vpop.f32.mrf.mxu0
    %v3043 = vadd.f32 0.0, %v3042
    %v3044 = vpop.f32.mrf.mxu0
    %v3045 = vadd.f32 0.0, %v3044
    %3046 = vmatprep.mubr.f32.mxu0 0.0
    %3047 = vmatmul.mubr.f32.gmra.mxu0 %v2851
    %v3048 = vpop.f32.mrf.mxu0
    %v3049 = vadd.f32 0.0, %v3048
    %v3050 = vpop.f32.mrf.mxu0
    %v3051 = vadd.f32 0.0, %v3050
    %3052 = vmatprep.mubr.f32.mxu0 0.0
    %3053 = vmatmul.mubr.f32.gmra.mxu0 %v2854
    %v3054 = vpop.f32.mrf.mxu0
    %v3055 = vadd.f32 0.0, %v3054
    %v3056 = vpop.f32.mrf.mxu0
    %v3057 = vadd.f32 0.0, %v3056
    %3058 = vmatprep.mubr.f32.mxu0 0.0
    %3059 = vmatmul.mubr.f32.gmra.mxu0 %v2857
    %v3060 = vpop.f32.mrf.mxu0
    %v3061 = vadd.f32 0.0, %v3060
    %v3062 = vpop.f32.mrf.mxu0
    %v3063 = vadd.f32 0.0, %v3062
    %3064 = vmatprep.mubr.f32.mxu0 0.0
    %3065 = vmatmul.mubr.f32.gmra.mxu0 %v2860
    %v3066 = vpop.f32.mrf.mxu0
    %v3067 = vadd.f32 0.0, %v3066
    %v3068 = vpop.f32.mrf.mxu0
    %v3069 = vadd.f32 0.0, %v3068
    %3070 = vmatprep.mubr.f32.mxu0 0.0
    %3071 = vmatmul.mubr.f32.gmra.mxu0 %v2863
    %v3072 = vpop.f32.mrf.mxu0
    %v3073 = vadd.f32 0.0, %v3072
    %v3074 = vpop.f32.mrf.mxu0
    %v3075 = vadd.f32 0.0, %v3074
    %3076 = vmatprep.mubr.f32.mxu0 0.0
    %3077 = vmatmul.mubr.f32.gmra.mxu0 %v2866
    %v3078 = vpop.f32.mrf.mxu0
    %v3079 = vadd.f32 0.0, %v3078
    %v3080 = vpop.f32.mrf.mxu0
    %v3081 = vadd.f32 0.0, %v3080
    %3082 = vmatprep.mubr.f32.mxu0 0.0
    %3083 = vmatmul.mubr.f32.gmra.mxu0 %v2869
    %v3084 = vpop.f32.mrf.mxu0
    %v3085 = vadd.f32 0.0, %v3084
    %v3086 = vpop.f32.mrf.mxu0
    %v3087 = vadd.f32 0.0, %v3086
    %3088 = vmatprep.mubr.f32.mxu0 0.0
    %3089 = vmatmul.mubr.f32.gmra.mxu0 %v2872
    %v3090 = vpop.f32.mrf.mxu0
    %v3091 = vadd.f32 0.0, %v3090
    %v3092 = vpop.f32.mrf.mxu0
    %v3093 = vadd.f32 0.0, %v3092
    %3094 = vmatprep.mubr.f32.mxu0 0.0
    %3095 = vmatmul.mubr.f32.gmra.mxu0 %v2875
    %v3096 = vpop.f32.mrf.mxu0
    %v3097 = vadd.f32 0.0, %v3096
    %v3098 = vpop.f32.mrf.mxu0
    %v3099 = vadd.f32 0.0, %v3098
    %3100 = vmatprep.mubr.f32.mxu0 0.0
    %3101 = vmatmul.mubr.f32.gmra.mxu0 %v2878
    %v3102 = vpop.f32.mrf.mxu0
    %v3103 = vadd.f32 0.0, %v3102
    %v3104 = vpop.f32.mrf.mxu0
    %v3105 = vadd.f32 0.0, %v3104
    %3106 = vmatprep.mubr.f32.mxu0 0.0
    %3107 = vmatmul.mubr.f32.gmra.mxu0 %v2881
    %v3108 = vpop.f32.mrf.mxu0
    %v3109 = vadd.f32 0.0, %v3108
    %v3110 = vpop.f32.mrf.mxu0
    %v3111 = vadd.f32 0.0, %v3110
    %3112 = vmatprep.mubr.f32.mxu0 0.0
    %3113 = vmatmul.mubr.f32.gmra.mxu0 %v2884
    %v3114 = vpop.f32.mrf.mxu0
    %v3115 = vadd.f32 0.0, %v3114
    %v3116 = vpop.f32.mrf.mxu0
    %v3117 = vadd.f32 0.0, %v3116
    %3118 = vmatprep.mubr.f32.mxu0 0.0
    %3119 = vmatmul.mubr.f32.gmra.mxu0 %v2887
    %v3120 = vpop.f32.mrf.mxu0
    %v3121 = vadd.f32 0.0, %v3120
    %v3122 = vpop.f32.mrf.mxu0
    %v3123 = vadd.f32 0.0, %v3122
    %3124 = vmatprep.mubr.f32.mxu0 0.0
    %3125 = vmatmul.mubr.f32.gmra.mxu0 %v2890
    %v3126 = vpop.f32.mrf.mxu0
    %v3127 = vadd.f32 0.0, %v3126
    %v3128 = vpop.f32.mrf.mxu0
    %v3129 = vadd.f32 0.0, %v3128
    %3130 = vmatprep.mubr.f32.mxu0 0.0
    %3131 = vmatmul.mubr.f32.gmra.mxu0 %v2893
    %v3132 = vpop.f32.mrf.mxu0
    %v3133 = vadd.f32 0.0, %v3132
    %v3134 = vpop.f32.mrf.mxu0
    %v3135 = vadd.f32 0.0, %v3134
    %3136 = vmatprep.mubr.f32.mxu0 0.0
    %3137 = vmatmul.mubr.f32.gmra.mxu0 %v2896
    %v3138 = vpop.f32.mrf.mxu0
    %v3139 = vadd.f32 0.0, %v3138
    %v3140 = vpop.f32.mrf.mxu0
    %v3141 = vadd.f32 0.0, %v3140
    %3142 = vmatprep.mubr.f32.mxu0 0.0
    %3143 = vmatmul.mubr.f32.gmra.mxu0 %v2899
    %v3144 = vpop.f32.mrf.mxu0
    %v3145 = vadd.f32 0.0, %v3144
    %v3146 = vpop.f32.mrf.mxu0
    %v3147 = vadd.f32 0.0, %v3146
    %3148 = vmatprep.mubr.f32.mxu0 0.0
    %3149 = vmatmul.mubr.f32.gmra.mxu0 %v2902
    %v3150 = vpop.f32.mrf.mxu0
    %v3151 = vadd.f32 0.0, %v3150
    %v3152 = vpop.f32.mrf.mxu0
    %v3153 = vadd.f32 0.0, %v3152
    %3154 = vmatprep.mubr.f32.mxu0 0.0
    %3155 = vmatmul.mubr.f32.gmra.mxu0 %v2905
    %v3156 = vpop.f32.mrf.mxu0
    %v3157 = vadd.f32 0.0, %v3156
    %v3158 = vpop.f32.mrf.mxu0
    %v3159 = vadd.f32 0.0, %v3158
    %3160 = vmatprep.mubr.f32.mxu0 0.0
    %3161 = vmatmul.mubr.f32.gmra.mxu0 %v2908
    %v3162 = vpop.f32.mrf.mxu0
    %v3163 = vadd.f32 0.0, %v3162
    %v3164 = vpop.f32.mrf.mxu0
    %v3165 = vadd.f32 0.0, %v3164
    %3166 = vdwg.mxu0
    %3168 = vset.pattern.permute.xlu0 0
    %3169 = vperm.xlu0 %3168, %v38
    %v3170 = vpop.permute.xlu0 %3169
    %3173 = vset.pattern.permute.xlu0 0
    %3174 = vperm.xlu0 %3173, %v39
    %v3175 = vpop.permute.xlu0 %3174
    %3178 = vset.pattern.permute.xlu0 0
    %3179 = vperm.xlu0 %3178, %v40
    %v3180 = vpop.permute.xlu0 %3179
    %3183 = vset.pattern.permute.xlu0 0
    %3184 = vperm.xlu0 %3183, %v41
    %v3185 = vpop.permute.xlu0 %3184
    %3188 = vset.pattern.permute.xlu0 0
    %3189 = vperm.xlu0 %3188, %v42
    %v3190 = vpop.permute.xlu0 %3189
    %3193 = vset.pattern.permute.xlu0 0
    %3194 = vperm.xlu0 %3193, %v43
    %v3195 = vpop.permute.xlu0 %3194
    %3198 = vset.pattern.permute.xlu0 0
    %3199 = vperm.xlu0 %3198, %v44
    %v3200 = vpop.permute.xlu0 %3199
    %3203 = vset.pattern.permute.xlu0 0
    %3204 = vperm.xlu0 %3203, %v45
    %v3205 = vpop.permute.xlu0 %3204
    %3208 = vset.pattern.permute.xlu0 0
    %3209 = vperm.xlu0 %3208, %v46
    %v3210 = vpop.permute.xlu0 %3209
    %3213 = vset.pattern.permute.xlu0 0
    %3214 = vperm.xlu0 %3213, %v47
    %v3215 = vpop.permute.xlu0 %3214
    %3218 = vset.pattern.permute.xlu0 0
    %3219 = vperm.xlu0 %3218, %v48
    %v3220 = vpop.permute.xlu0 %3219
    %3223 = vset.pattern.permute.xlu0 0
    %3224 = vperm.xlu0 %3223, %v49
    %v3225 = vpop.permute.xlu0 %3224
    %3228 = vset.pattern.permute.xlu0 0
    %3229 = vperm.xlu0 %3228, %v50
    %v3230 = vpop.permute.xlu0 %3229
    %3233 = vset.pattern.permute.xlu0 0
    %3234 = vperm.xlu0 %3233, %v51
    %v3235 = vpop.permute.xlu0 %3234
    %3238 = vset.pattern.permute.xlu0 0
    %3239 = vperm.xlu0 %3238, %v52
    %v3240 = vpop.permute.xlu0 %3239
    %3243 = vset.pattern.permute.xlu0 0
    %3244 = vperm.xlu0 %3243, %v53
    %v3245 = vpop.permute.xlu0 %3244
    %3248 = vset.pattern.permute.xlu0 0
    %3249 = vperm.xlu0 %3248, %v54
    %v3250 = vpop.permute.xlu0 %3249
    %3253 = vset.pattern.permute.xlu0 0
    %3254 = vperm.xlu0 %3253, %v55
    %v3255 = vpop.permute.xlu0 %3254
    %3258 = vset.pattern.permute.xlu0 0
    %3259 = vperm.xlu0 %3258, %v56
    %v3260 = vpop.permute.xlu0 %3259
    %3263 = vset.pattern.permute.xlu0 0
    %3264 = vperm.xlu0 %3263, %v57
    %v3265 = vpop.permute.xlu0 %3264
    %3268 = vset.pattern.permute.xlu0 0
    %3269 = vperm.xlu0 %3268, %v58
    %v3270 = vpop.permute.xlu0 %3269
    %3273 = vset.pattern.permute.xlu0 0
    %3274 = vperm.xlu0 %3273, %v59
    %v3275 = vpop.permute.xlu0 %3274
    %3278 = vset.pattern.permute.xlu0 0
    %3279 = vperm.xlu0 %3278, %v60
    %v3280 = vpop.permute.xlu0 %3279
    %3283 = vset.pattern.permute.xlu0 0
    %3284 = vperm.xlu0 %3283, %v61
    %v3285 = vpop.permute.xlu0 %3284
    %3288 = vset.pattern.permute.xlu0 0
    %3289 = vperm.xlu0 %3288, %v62
    %v3290 = vpop.permute.xlu0 %3289
    %3293 = vset.pattern.permute.xlu0 0
    %3294 = vperm.xlu0 %3293, %v63
    %v3295 = vpop.permute.xlu0 %3294
    %3298 = vset.pattern.permute.xlu0 0
    %3299 = vperm.xlu0 %3298, %v64
    %v3300 = vpop.permute.xlu0 %3299
    %3303 = vset.pattern.permute.xlu0 0
    %3304 = vperm.xlu0 %3303, %v65
    %v3305 = vpop.permute.xlu0 %3304
    %3308 = vset.pattern.permute.xlu0 0
    %3309 = vperm.xlu0 %3308, %v66
    %v3310 = vpop.permute.xlu0 %3309
    %3313 = vset.pattern.permute.xlu0 0
    %3314 = vperm.xlu0 %3313, %v67
    %v3315 = vpop.permute.xlu0 %3314
    %3318 = vset.pattern.permute.xlu0 0
    %3319 = vperm.xlu0 %3318, %v68
    %v3320 = vpop.permute.xlu0 %3319
    %3323 = vset.pattern.permute.xlu0 0
    %3324 = vperm.xlu0 %3323, %v69
    %v3325 = vpop.permute.xlu0 %3324
    %v3327 = vadd.f32 %v3170, %v2977
    %v3328 = vadd.f32 %v3170, %v2979
    %v3329 = vadd.f32 %v3175, %v2983
    %v3330 = vadd.f32 %v3175, %v2985
    %v3331 = vadd.f32 %v3180, %v2989
    %v3332 = vadd.f32 %v3180, %v2991
    %v3333 = vadd.f32 %v3185, %v2995
    %v3334 = vadd.f32 %v3185, %v2997
    %v3335 = vadd.f32 %v3190, %v3001
    %v3336 = vadd.f32 %v3190, %v3003
    %v3337 = vadd.f32 %v3195, %v3007
    %v3338 = vadd.f32 %v3195, %v3009
    %v3339 = vadd.f32 %v3200, %v3013
    %v3340 = vadd.f32 %v3200, %v3015
    %v3341 = vadd.f32 %v3205, %v3019
    %v3342 = vadd.f32 %v3205, %v3021
    %v3343 = vadd.f32 %v3210, %v3025
    %v3344 = vadd.f32 %v3210, %v3027
    %v3345 = vadd.f32 %v3215, %v3031
    %v3346 = vadd.f32 %v3215, %v3033
    %v3347 = vadd.f32 %v3220, %v3037
    %v3348 = vadd.f32 %v3220, %v3039
    %v3349 = vadd.f32 %v3225, %v3043
    %v3350 = vadd.f32 %v3225, %v3045
    %v3351 = vadd.f32 %v3230, %v3049
    %v3352 = vadd.f32 %v3230, %v3051
    %v3353 = vadd.f32 %v3235, %v3055
    %v3354 = vadd.f32 %v3235, %v3057
    %v3355 = vadd.f32 %v3240, %v3061
    %v3356 = vadd.f32 %v3240, %v3063
    %v3357 = vadd.f32 %v3245, %v3067
    %v3358 = vadd.f32 %v3245, %v3069
    %v3359 = vadd.f32 %v3250, %v3073
    %v3360 = vadd.f32 %v3250, %v3075
    %v3361 = vadd.f32 %v3255, %v3079
    %v3362 = vadd.f32 %v3255, %v3081
    %v3363 = vadd.f32 %v3260, %v3085
    %v3364 = vadd.f32 %v3260, %v3087
    %v3365 = vadd.f32 %v3265, %v3091
    %v3366 = vadd.f32 %v3265, %v3093
    %v3367 = vadd.f32 %v3270, %v3097
    %v3368 = vadd.f32 %v3270, %v3099
    %v3369 = vadd.f32 %v3275, %v3103
    %v3370 = vadd.f32 %v3275, %v3105
    %v3371 = vadd.f32 %v3280, %v3109
    %v3372 = vadd.f32 %v3280, %v3111
    %v3373 = vadd.f32 %v3285, %v3115
    %v3374 = vadd.f32 %v3285, %v3117
    %v3375 = vadd.f32 %v3290, %v3121
    %v3376 = vadd.f32 %v3290, %v3123
    %v3377 = vadd.f32 %v3295, %v3127
    %v3378 = vadd.f32 %v3295, %v3129
    %v3379 = vadd.f32 %v3300, %v3133
    %v3380 = vadd.f32 %v3300, %v3135
    %v3381 = vadd.f32 %v3305, %v3139
    %v3382 = vadd.f32 %v3305, %v3141
    %v3383 = vadd.f32 %v3310, %v3145
    %v3384 = vadd.f32 %v3310, %v3147
    %v3385 = vadd.f32 %v3315, %v3151
    %v3386 = vadd.f32 %v3315, %v3153
    %v3387 = vadd.f32 %v3320, %v3157
    %v3388 = vadd.f32 %v3320, %v3159
    %v3389 = vadd.f32 %v3325, %v3163
    %v3390 = vadd.f32 %v3325, %v3165
    %v3392 = vsel %vm1017, %v1690, 0
    %v3395 = vsel %vm1017, %v1695, 0
    %v3398 = vsel %vm1017, %v1700, 0
    %v3401 = vsel %vm1017, %v1705, 0
    %v3404 = vsel %vm1017, %v1710, 0
    %v3407 = vsel %vm1017, %v1715, 0
    %v3410 = vsel %vm1017, %v1720, 0
    %v3413 = vsel %vm1017, %v1725, 0
    %v3416 = vsel %vm1017, %v1730, 0
    %v3419 = vsel %vm1017, %v1735, 0
    %v3422 = vsel %vm1017, %v1740, 0
    %v3425 = vsel %vm1017, %v1745, 0
    %v3428 = vsel %vm1017, %v1750, 0
    %v3431 = vsel %vm1017, %v1755, 0
    %v3434 = vsel %vm1017, %v1760, 0
    %v3437 = vsel %vm1017, %v1765, 0
    %v3440 = vsel %vm1017, %v2735, 0
    %v3443 = vsel %vm1017, %v2740, 0
    %v3446 = vsel %vm1017, %v2745, 0
    %v3449 = vsel %vm1017, %v2750, 0
    %v3452 = vsel %vm1017, %v2755, 0
    %v3455 = vsel %vm1017, %v2760, 0
    %v3458 = vsel %vm1017, %v2765, 0
    %v3461 = vsel %vm1017, %v2770, 0
    %v3464 = vsel %vm1017, %v2775, 0
    %v3467 = vsel %vm1017, %v2780, 0
    %v3470 = vsel %vm1017, %v2785, 0
    %v3473 = vsel %vm1017, %v2790, 0
    %v3476 = vsel %vm1017, %v2795, 0
    %v3479 = vsel %vm1017, %v2800, 0
    %v3482 = vsel %vm1017, %v2805, 0
    %v3485 = vsel %vm1017, %v2810, 0
    %v3488 = vsel %vm1066, %v197, 0
    %3490 = vmatprep.subr.mxu0 0.0
    %3491 = vmatpush1.msra.mxu0 0.0
    %3492 = vmatprep.subr.mxu0 0.0
    %3493 = vmatpush1.msra.mxu0 0.0
    %3494 = vmatprep.subr.mxu0 0.0
    %3495 = vmatpush1.msra.mxu0 0.0
    %3496 = vmatprep.subr.mxu0 0.0
    %3497 = vmatpush1.msra.mxu0 0.0
    %3498 = vmatprep.subr.mxu0 0.0
    %3499 = vmatpush1.msra.mxu0 0.0
    %3500 = vmatprep.subr.mxu0 0.0
    %3501 = vmatpush1.msra.mxu0 0.0
    %3502 = vmatprep.subr.mxu0 0.0
    %3503 = vmatpush1.msra.mxu0 0.0
    %3504 = vmatprep.subr.mxu0 0.0
    %3505 = vmatpush1.msra.mxu0 0.0
    %3506 = vmatprep.subr.mxu0 0.0
    %3507 = vmatpush1.msra.mxu0 0.0
    %3508 = vmatprep.subr.mxu0 0.0
    %3509 = vmatpush1.msra.mxu0 0.0
    %3510 = vmatprep.subr.mxu0 0.0
    %3511 = vmatpush1.msra.mxu0 0.0
    %3512 = vmatprep.subr.mxu0 0.0
    %3513 = vmatpush1.msra.mxu0 0.0
    %3514 = vmatprep.subr.mxu0 0.0
    %3515 = vmatpush1.msra.mxu0 0.0
    %3516 = vmatprep.subr.mxu0 0.0
    %3517 = vmatpush1.msra.mxu0 %v3488
    %3518 = vmatprep.subr.mxu0 0.0
    %3519 = vmatpush1.msra.mxu0 %v196
    %3520 = vmatprep.subr.mxu0 0.0
    %3521 = vmatpush1.msra.mxu0 %v195
    %3522 = vmatprep.subr.mxu0 0.0
    %3523 = vmatpush2.msra.mxu0 0.0
    %3524 = vmatprep.subr.mxu0 0.0
    %3525 = vmatpush2.msra.mxu0 0.0
    %3526 = vmatprep.subr.mxu0 0.0
    %3527 = vmatpush2.msra.mxu0 0.0
    %3528 = vmatprep.subr.mxu0 0.0
    %3529 = vmatpush2.msra.mxu0 0.0
    %3530 = vmatprep.subr.mxu0 0.0
    %3531 = vmatpush2.msra.mxu0 0.0
    %3532 = vmatprep.subr.mxu0 0.0
    %3533 = vmatpush2.msra.mxu0 0.0
    %3534 = vmatprep.subr.mxu0 0.0
    %3535 = vmatpush2.msra.mxu0 0.0
    %3536 = vmatprep.subr.mxu0 0.0
    %3537 = vmatpush2.msra.mxu0 0.0
    %3538 = vmatprep.subr.mxu0 0.0
    %3539 = vmatpush2.msra.mxu0 0.0
    %3540 = vmatprep.subr.mxu0 0.0
    %3541 = vmatpush2.msra.mxu0 0.0
    %3542 = vmatprep.subr.mxu0 0.0
    %3543 = vmatpush2.msra.mxu0 0.0
    %3544 = vmatprep.subr.mxu0 0.0
    %3545 = vmatpush2.msra.mxu0 0.0
    %3546 = vmatprep.subr.mxu0 0.0
    %3547 = vmatpush2.msra.mxu0 0.0
    %3548 = vmatprep.subr.mxu0 0.0
    %3549 = vmatpush2.msra.mxu0 0.0
    %3550 = vmatprep.subr.mxu0 0.0
    %3551 = vmatpush2.msra.mxu0 0.0
    %3552 = vmatprep.subr.mxu0 0.0
    %3553 = vmatpush2.msra.mxu0 0.0
    %3554 = vmatprep.mubr.f32.mxu0 0.0
    %3555 = vmatmul.mubr.f32.gmra.mxu0 %v3392
    %v3556 = vpop.f32.mrf.mxu0
    %v3557 = vadd.f32 0.0, %v3556
    %v3558 = vpop.f32.mrf.mxu0
    %3559 = vmatprep.mubr.f32.mxu0 0.0
    %3560 = vmatmul.mubr.f32.gmra.mxu0 %v3395
    %v3561 = vpop.f32.mrf.mxu0
    %v3562 = vadd.f32 0.0, %v3561
    %v3563 = vpop.f32.mrf.mxu0
    %3564 = vmatprep.mubr.f32.mxu0 0.0
    %3565 = vmatmul.mubr.f32.gmra.mxu0 %v3398
    %v3566 = vpop.f32.mrf.mxu0
    %v3567 = vadd.f32 0.0, %v3566
    %v3568 = vpop.f32.mrf.mxu0
    %3569 = vmatprep.mubr.f32.mxu0 0.0
    %3570 = vmatmul.mubr.f32.gmra.mxu0 %v3401
    %v3571 = vpop.f32.mrf.mxu0
    %v3572 = vadd.f32 0.0, %v3571
    %v3573 = vpop.f32.mrf.mxu0
    %3574 = vmatprep.mubr.f32.mxu0 0.0
    %3575 = vmatmul.mubr.f32.gmra.mxu0 %v3404
    %v3576 = vpop.f32.mrf.mxu0
    %v3577 = vadd.f32 0.0, %v3576
    %v3578 = vpop.f32.mrf.mxu0
    %3579 = vmatprep.mubr.f32.mxu0 0.0
    %3580 = vmatmul.mubr.f32.gmra.mxu0 %v3407
    %v3581 = vpop.f32.mrf.mxu0
    %v3582 = vadd.f32 0.0, %v3581
    %v3583 = vpop.f32.mrf.mxu0
    %3584 = vmatprep.mubr.f32.mxu0 0.0
    %3585 = vmatmul.mubr.f32.gmra.mxu0 %v3410
    %v3586 = vpop.f32.mrf.mxu0
    %v3587 = vadd.f32 0.0, %v3586
    %v3588 = vpop.f32.mrf.mxu0
    %3589 = vmatprep.mubr.f32.mxu0 0.0
    %3590 = vmatmul.mubr.f32.gmra.mxu0 %v3413
    %v3591 = vpop.f32.mrf.mxu0
    %v3592 = vadd.f32 0.0, %v3591
    %v3593 = vpop.f32.mrf.mxu0
    %3594 = vmatprep.mubr.f32.mxu0 0.0
    %3595 = vmatmul.mubr.f32.gmra.mxu0 %v3416
    %v3596 = vpop.f32.mrf.mxu0
    %v3597 = vadd.f32 0.0, %v3596
    %v3598 = vpop.f32.mrf.mxu0
    %3599 = vmatprep.mubr.f32.mxu0 0.0
    %3600 = vmatmul.mubr.f32.gmra.mxu0 %v3419
    %v3601 = vpop.f32.mrf.mxu0
    %v3602 = vadd.f32 0.0, %v3601
    %v3603 = vpop.f32.mrf.mxu0
    %3604 = vmatprep.mubr.f32.mxu0 0.0
    %3605 = vmatmul.mubr.f32.gmra.mxu0 %v3422
    %v3606 = vpop.f32.mrf.mxu0
    %v3607 = vadd.f32 0.0, %v3606
    %v3608 = vpop.f32.mrf.mxu0
    %3609 = vmatprep.mubr.f32.mxu0 0.0
    %3610 = vmatmul.mubr.f32.gmra.mxu0 %v3425
    %v3611 = vpop.f32.mrf.mxu0
    %v3612 = vadd.f32 0.0, %v3611
    %v3613 = vpop.f32.mrf.mxu0
    %3614 = vmatprep.mubr.f32.mxu0 0.0
    %3615 = vmatmul.mubr.f32.gmra.mxu0 %v3428
    %v3616 = vpop.f32.mrf.mxu0
    %v3617 = vadd.f32 0.0, %v3616
    %v3618 = vpop.f32.mrf.mxu0
    %3619 = vmatprep.mubr.f32.mxu0 0.0
    %3620 = vmatmul.mubr.f32.gmra.mxu0 %v3431
    %v3621 = vpop.f32.mrf.mxu0
    %v3622 = vadd.f32 0.0, %v3621
    %v3623 = vpop.f32.mrf.mxu0
    %3624 = vmatprep.mubr.f32.mxu0 0.0
    %3625 = vmatmul.mubr.f32.gmra.mxu0 %v3434
    %v3626 = vpop.f32.mrf.mxu0
    %v3627 = vadd.f32 0.0, %v3626
    %v3628 = vpop.f32.mrf.mxu0
    %3629 = vmatprep.mubr.f32.mxu0 0.0
    %3630 = vmatmul.mubr.f32.gmra.mxu0 %v3437
    %v3631 = vpop.f32.mrf.mxu0
    %v3632 = vadd.f32 0.0, %v3631
    %v3633 = vpop.f32.mrf.mxu0
    %3634 = vmatprep.mubr.f32.mxu0 0.0
    %3635 = vmatmul.mubr.f32.gmra.mxu0 %v3440
    %v3636 = vpop.f32.mrf.mxu0
    %v3637 = vadd.f32 0.0, %v3636
    %v3638 = vpop.f32.mrf.mxu0
    %3639 = vmatprep.mubr.f32.mxu0 0.0
    %3640 = vmatmul.mubr.f32.gmra.mxu0 %v3443
    %v3641 = vpop.f32.mrf.mxu0
    %v3642 = vadd.f32 0.0, %v3641
    %v3643 = vpop.f32.mrf.mxu0
    %3644 = vmatprep.mubr.f32.mxu0 0.0
    %3645 = vmatmul.mubr.f32.gmra.mxu0 %v3446
    %v3646 = vpop.f32.mrf.mxu0
    %v3647 = vadd.f32 0.0, %v3646
    %v3648 = vpop.f32.mrf.mxu0
    %3649 = vmatprep.mubr.f32.mxu0 0.0
    %3650 = vmatmul.mubr.f32.gmra.mxu0 %v3449
    %v3651 = vpop.f32.mrf.mxu0
    %v3652 = vadd.f32 0.0, %v3651
    %v3653 = vpop.f32.mrf.mxu0
    %3654 = vmatprep.mubr.f32.mxu0 0.0
    %3655 = vmatmul.mubr.f32.gmra.mxu0 %v3452
    %v3656 = vpop.f32.mrf.mxu0
    %v3657 = vadd.f32 0.0, %v3656
    %v3658 = vpop.f32.mrf.mxu0
    %3659 = vmatprep.mubr.f32.mxu0 0.0
    %3660 = vmatmul.mubr.f32.gmra.mxu0 %v3455
    %v3661 = vpop.f32.mrf.mxu0
    %v3662 = vadd.f32 0.0, %v3661
    %v3663 = vpop.f32.mrf.mxu0
    %3664 = vmatprep.mubr.f32.mxu0 0.0
    %3665 = vmatmul.mubr.f32.gmra.mxu0 %v3458
    %v3666 = vpop.f32.mrf.mxu0
    %v3667 = vadd.f32 0.0, %v3666
    %v3668 = vpop.f32.mrf.mxu0
    %3669 = vmatprep.mubr.f32.mxu0 0.0
    %3670 = vmatmul.mubr.f32.gmra.mxu0 %v3461
    %v3671 = vpop.f32.mrf.mxu0
    %v3672 = vadd.f32 0.0, %v3671
    %v3673 = vpop.f32.mrf.mxu0
    %3674 = vmatprep.mubr.f32.mxu0 0.0
    %3675 = vmatmul.mubr.f32.gmra.mxu0 %v3464
    %v3676 = vpop.f32.mrf.mxu0
    %v3677 = vadd.f32 0.0, %v3676
    %v3678 = vpop.f32.mrf.mxu0
    %3679 = vmatprep.mubr.f32.mxu0 0.0
    %3680 = vmatmul.mubr.f32.gmra.mxu0 %v3467
    %v3681 = vpop.f32.mrf.mxu0
    %v3682 = vadd.f32 0.0, %v3681
    %v3683 = vpop.f32.mrf.mxu0
    %3684 = vmatprep.mubr.f32.mxu0 0.0
    %3685 = vmatmul.mubr.f32.gmra.mxu0 %v3470
    %v3686 = vpop.f32.mrf.mxu0
    %v3687 = vadd.f32 0.0, %v3686
    %v3688 = vpop.f32.mrf.mxu0
    %3689 = vmatprep.mubr.f32.mxu0 0.0
    %3690 = vmatmul.mubr.f32.gmra.mxu0 %v3473
    %v3691 = vpop.f32.mrf.mxu0
    %v3692 = vadd.f32 0.0, %v3691
    %v3693 = vpop.f32.mrf.mxu0
    %3694 = vmatprep.mubr.f32.mxu0 0.0
    %3695 = vmatmul.mubr.f32.gmra.mxu0 %v3476
    %v3696 = vpop.f32.mrf.mxu0
    %v3697 = vadd.f32 0.0, %v3696
    %v3698 = vpop.f32.mrf.mxu0
    %3699 = vmatprep.mubr.f32.mxu0 0.0
    %3700 = vmatmul.mubr.f32.gmra.mxu0 %v3479
    %v3701 = vpop.f32.mrf.mxu0
    %v3702 = vadd.f32 0.0, %v3701
    %v3703 = vpop.f32.mrf.mxu0
    %3704 = vmatprep.mubr.f32.mxu0 0.0
    %3705 = vmatmul.mubr.f32.gmra.mxu0 %v3482
    %v3706 = vpop.f32.mrf.mxu0
    %v3707 = vadd.f32 0.0, %v3706
    %v3708 = vpop.f32.mrf.mxu0
    %3709 = vmatprep.mubr.f32.mxu0 0.0
    %3710 = vmatmul.mubr.f32.gmra.mxu0 %v3485
    %v3711 = vpop.f32.mrf.mxu0
    %v3712 = vadd.f32 0.0, %v3711
    %v3713 = vpop.f32.mrf.mxu0
    %3714 = vdwg.mxu0
    %v3715 = vadd.f32 %v3170, %v3557
    %v3716 = vadd.f32 %v3175, %v3562
    %v3717 = vadd.f32 %v3180, %v3567
    %v3718 = vadd.f32 %v3185, %v3572
    %v3719 = vadd.f32 %v3190, %v3577
    %v3720 = vadd.f32 %v3195, %v3582
    %v3721 = vadd.f32 %v3200, %v3587
    %v3722 = vadd.f32 %v3205, %v3592
    %v3723 = vadd.f32 %v3210, %v3597
    %v3724 = vadd.f32 %v3215, %v3602
    %v3725 = vadd.f32 %v3220, %v3607
    %v3726 = vadd.f32 %v3225, %v3612
    %v3727 = vadd.f32 %v3230, %v3617
    %v3728 = vadd.f32 %v3235, %v3622
    %v3729 = vadd.f32 %v3240, %v3627
    %v3730 = vadd.f32 %v3245, %v3632
    %v3731 = vadd.f32 %v3250, %v3637
    %v3732 = vadd.f32 %v3255, %v3642
    %v3733 = vadd.f32 %v3260, %v3647
    %v3734 = vadd.f32 %v3265, %v3652
    %v3735 = vadd.f32 %v3270, %v3657
    %v3736 = vadd.f32 %v3275, %v3662
    %v3737 = vadd.f32 %v3280, %v3667
    %v3738 = vadd.f32 %v3285, %v3672
    %v3739 = vadd.f32 %v3290, %v3677
    %v3740 = vadd.f32 %v3295, %v3682
    %v3741 = vadd.f32 %v3300, %v3687
    %v3742 = vadd.f32 %v3305, %v3692
    %v3743 = vadd.f32 %v3310, %v3697
    %v3744 = vadd.f32 %v3315, %v3702
    %v3745 = vadd.f32 %v3320, %v3707
    %v3746 = vadd.f32 %v3325, %v3712
    %3747 = vst [vmem:[#allocation2] sm:$0xff] %v3327
    %3748 = vst [vmem:[#allocation2 + $0x8] sm:$0xff] %v3328
    %3749 = vst [vmem:[#allocation2 + $0x10] sm:$0xff] %v3329
    %3750 = vst [vmem:[#allocation2 + $0x18] sm:$0xff] %v3330
    %3751 = vst [vmem:[#allocation2 + $0x20] sm:$0xff] %v3331
    %3752 = vst [vmem:[#allocation2 + $0x28] sm:$0xff] %v3332
    %3753 = vst [vmem:[#allocation2 + $0x30] sm:$0xff] %v3333
    %3754 = vst [vmem:[#allocation2 + $0x38] sm:$0xff] %v3334
    %3755 = vst [vmem:[#allocation2 + $0x40] sm:$0xff] %v3335
    %3756 = vst [vmem:[#allocation2 + $0x48] sm:$0xff] %v3336
    %3757 = vst [vmem:[#allocation2 + $0x50] sm:$0xff] %v3337
    %3758 = vst [vmem:[#allocation2 + $0x58] sm:$0xff] %v3338
    %3759 = vst [vmem:[#allocation2 + $0x60] sm:$0xff] %v3339
    %3760 = vst [vmem:[#allocation2 + $0x68] sm:$0xff] %v3340
    %3761 = vst [vmem:[#allocation2 + $0x70] sm:$0xff] %v3341
    %3762 = vst [vmem:[#allocation2 + $0x78] sm:$0xff] %v3342
    %3763 = vst [vmem:[#allocation2 + $0x80] sm:$0xff] %v3343
    %3764 = vst [vmem:[#allocation2 + $0x88] sm:$0xff] %v3344
    %3765 = vst [vmem:[#allocation2 + $0x90] sm:$0xff] %v3345
    %3766 = vst [vmem:[#allocation2 + $0x98] sm:$0xff] %v3346
    %3767 = vst [vmem:[#allocation2 + $0xa0] sm:$0xff] %v3347
    %3768 = vst [vmem:[#allocation2 + $0xa8] sm:$0xff] %v3348
    %3769 = vst [vmem:[#allocation2 + $0xb0] sm:$0xff] %v3349
    %3770 = vst [vmem:[#allocation2 + $0xb8] sm:$0xff] %v3350
    %3771 = vst [vmem:[#allocation2 + $0xc0] sm:$0xff] %v3351
    %3772 = vst [vmem:[#allocation2 + $0xc8] sm:$0xff] %v3352
    %3773 = vst [vmem:[#allocation2 + $0xd0] sm:$0xff] %v3353
    %3774 = vst [vmem:[#allocation2 + $0xd8] sm:$0xff] %v3354
    %3775 = vst [vmem:[#allocation2 + $0xe0] sm:$0xff] %v3355
    %3776 = vst [vmem:[#allocation2 + $0xe8] sm:$0xff] %v3356
    %3777 = vst [vmem:[#allocation2 + $0xf0] sm:$0xff] %v3357
    %3778 = vst [vmem:[#allocation2 + $0xf8] sm:$0xff] %v3358
    %3779 = vst [vmem:[#allocation2 + $0x100] sm:$0xff] %v3359
    %3780 = vst [vmem:[#allocation2 + $0x108] sm:$0xff] %v3360
    %3781 = vst [vmem:[#allocation2 + $0x110] sm:$0xff] %v3361
    %3782 = vst [vmem:[#allocation2 + $0x118] sm:$0xff] %v3362
    %3783 = vst [vmem:[#allocation2 + $0x120] sm:$0xff] %v3363
    %3784 = vst [vmem:[#allocation2 + $0x128] sm:$0xff] %v3364
    %3785 = vst [vmem:[#allocation2 + $0x130] sm:$0xff] %v3365
    %3786 = vst [vmem:[#allocation2 + $0x138] sm:$0xff] %v3366
    %3787 = vst [vmem:[#allocation2 + $0x140] sm:$0xff] %v3367
    %3788 = vst [vmem:[#allocation2 + $0x148] sm:$0xff] %v3368
    %3789 = vst [vmem:[#allocation2 + $0x150] sm:$0xff] %v3369
    %3790 = vst [vmem:[#allocation2 + $0x158] sm:$0xff] %v3370
    %3791 = vst [vmem:[#allocation2 + $0x160] sm:$0xff] %v3371
    %3792 = vst [vmem:[#allocation2 + $0x168] sm:$0xff] %v3372
    %3793 = vst [vmem:[#allocation2 + $0x170] sm:$0xff] %v3373
    %3794 = vst [vmem:[#allocation2 + $0x178] sm:$0xff] %v3374
    %3795 = vst [vmem:[#allocation2 + $0x180] sm:$0xff] %v3375
    %3796 = vst [vmem:[#allocation2 + $0x188] sm:$0xff] %v3376
    %3797 = vst [vmem:[#allocation2 + $0x190] sm:$0xff] %v3377
    %3798 = vst [vmem:[#allocation2 + $0x198] sm:$0xff] %v3378
    %3799 = vst [vmem:[#allocation2 + $0x1a0] sm:$0xff] %v3379
    %3800 = vst [vmem:[#allocation2 + $0x1a8] sm:$0xff] %v3380
    %3801 = vst [vmem:[#allocation2 + $0x1b0] sm:$0xff] %v3381
    %3802 = vst [vmem:[#allocation2 + $0x1b8] sm:$0xff] %v3382
    %3803 = vst [vmem:[#allocation2 + $0x1c0] sm:$0xff] %v3383
    %3804 = vst [vmem:[#allocation2 + $0x1c8] sm:$0xff] %v3384
    %3805 = vst [vmem:[#allocation2 + $0x1d0] sm:$0xff] %v3385
    %3806 = vst [vmem:[#allocation2 + $0x1d8] sm:$0xff] %v3386
    %3807 = vst [vmem:[#allocation2 + $0x1e0] sm:$0xff] %v3387
    %3808 = vst [vmem:[#allocation2 + $0x1e8] sm:$0xff] %v3388
    %3809 = vst [vmem:[#allocation2 + $0x1f0] sm:$0xff] %v3389
    %3810 = vst [vmem:[#allocation2 + $0x1f8] sm:$0xff] %v3390
    %3811 = vst.msk [vmem:[%s11] sm:$0xff] %vm2813, %v3715
    %3812 = vst.msk [vmem:[%s11 + $0x8] sm:$0xff] %vm2813, %v3716
    %3813 = vst.msk [vmem:[%s11 + $0x10] sm:$0xff] %vm2813, %v3717
    %3814 = vst.msk [vmem:[%s11 + $0x18] sm:$0xff] %vm2813, %v3718
    %3815 = vst.msk [vmem:[%s11 + $0x20] sm:$0xff] %vm2813, %v3719
    %3816 = vst.msk [vmem:[%s11 + $0x28] sm:$0xff] %vm2813, %v3720
    %3817 = vst.msk [vmem:[%s11 + $0x30] sm:$0xff] %vm2813, %v3721
    %3818 = vst.msk [vmem:[%s11 + $0x38] sm:$0xff] %vm2813, %v3722
    %3819 = vst.msk [vmem:[%s11 + $0x40] sm:$0xff] %vm2813, %v3723
    %3820 = vst.msk [vmem:[%s11 + $0x48] sm:$0xff] %vm2813, %v3724
    %3821 = vst.msk [vmem:[%s11 + $0x50] sm:$0xff] %vm2813, %v3725
    %3822 = vst.msk [vmem:[%s11 + $0x58] sm:$0xff] %vm2813, %v3726
    %3823 = vst.msk [vmem:[%s11 + $0x60] sm:$0xff] %vm2813, %v3727
    %3824 = vst.msk [vmem:[%s11 + $0x68] sm:$0xff] %vm2813, %v3728
    %3825 = vst.msk [vmem:[%s11 + $0x70] sm:$0xff] %vm2813, %v3729
    %3826 = vst.msk [vmem:[%s11 + $0x78] sm:$0xff] %vm2813, %v3730
    %3827 = vst.msk [vmem:[%s11 + $0x80] sm:$0xff] %vm2813, %v3731
    %3828 = vst.msk [vmem:[%s11 + $0x88] sm:$0xff] %vm2813, %v3732
    %3829 = vst.msk [vmem:[%s11 + $0x90] sm:$0xff] %vm2813, %v3733
    %3830 = vst.msk [vmem:[%s11 + $0x98] sm:$0xff] %vm2813, %v3734
    %3831 = vst.msk [vmem:[%s11 + $0xa0] sm:$0xff] %vm2813, %v3735
    %3832 = vst.msk [vmem:[%s11 + $0xa8] sm:$0xff] %vm2813, %v3736
    %3833 = vst.msk [vmem:[%s11 + $0xb0] sm:$0xff] %vm2813, %v3737
    %3834 = vst.msk [vmem:[%s11 + $0xb8] sm:$0xff] %vm2813, %v3738
    %3835 = vst.msk [vmem:[%s11 + $0xc0] sm:$0xff] %vm2813, %v3739
    %3836 = vst.msk [vmem:[%s11 + $0xc8] sm:$0xff] %vm2813, %v3740
    %3837 = vst.msk [vmem:[%s11 + $0xd0] sm:$0xff] %vm2813, %v3741
    %3838 = vst.msk [vmem:[%s11 + $0xd8] sm:$0xff] %vm2813, %v3742
    %3839 = vst.msk [vmem:[%s11 + $0xe0] sm:$0xff] %vm2813, %v3743
    %3840 = vst.msk [vmem:[%s11 + $0xe8] sm:$0xff] %vm2813, %v3744
    %3841 = vst.msk [vmem:[%s11 + $0xf0] sm:$0xff] %vm2813, %v3745
    %3842 = vst.msk [vmem:[%s11 + $0xf8] sm:$0xff] %vm2813, %v3746
    // Predicated region
    $region42: #{tpu_custom_call.1} parent=1 // pred_check
      _
    $region43: #{tpu_custom_call.1} parent=1 // pred_check_branch
      %3844 = sbr.rel (0) target = $region45
    $region44: #{tpu_custom_call.1} parent=1 // pred_region
      %s3846 = ssub.s32 8192, 8192
      %3847 = vsyncadd [#allocation3], %s3846
      %s3848 = sshll.u32 [#allocation2], 4
      %s3849 = int_to_ptr.vmem [resolvable:$true] %s3848
      %3854 = dma.vmem_to_hbm [thread:$0]  %s3849, 8192, %s10, [#allocation3], 256, 256, 16
    $region45: #{tpu_custom_call.1} parent=1 // pred_fallthru
      _
    // Predicated region
    $region46: #{tpu_custom_call.1} parent=1 // pred_check
      _
    $region47: #{tpu_custom_call.1} parent=1 // pred_check_branch
      %3856 = sbr.rel (0) target = $region49
    $region48: #{tpu_custom_call.1} parent=1 // pred_region
      _
    $region49: #{tpu_custom_call.1} parent=1 // pred_fallthru
      _
    // Predicated region
    $region50: #{tpu_custom_call.1} parent=1 // pred_check
      _
    $region51: #{tpu_custom_call.1} parent=1 // pred_check_branch
      %3858 = sbr.rel (0) target = $region53
    $region52: #{tpu_custom_call.1} parent=1 // pred_region
      %3859 = dma.done [#allocation3], 8192
    $region53: #{tpu_custom_call.1} parent=1 // pred_fallthru
      _
    // Predicated region
    $region54: #{tpu_custom_call.1} parent=1 // pred_check
      _
    $region55: #{tpu_custom_call.1} parent=1 // pred_check_branch
      %3861 = sbr.rel (0) target = $region57
    $region56: #{tpu_custom_call.1} parent=1 // pred_region
      _
    $region57: #{tpu_custom_call.1} parent=1 // pred_fallthru
      _
    %3862 = vsyncpa [#allocation3], 1

</llo_original>
